<compile_context>
chip_gen: v7x
topology: tpu7x:2x2x1
jax: 0.10.0
libtpu: 0.0.40
codegen_flags: <defaults>
</compile_context>

<pallas_src>
import jax
import jax.numpy as jnp
from jax.experimental import pallas as pl
from jax.experimental.pallas import tpu as pltpu


# ----------------------------------------------------------------------------
# Fused kernel: conv1+ReLU -> conv2+ReLU -> MaxPool1d(2)
#               -> 2-layer LSTM (last step) -> fc1+ReLU -> fc2
# Activation layout: time-major flattened rows (row = t*BP + b), channels on
# the lane axis.  Conv weights pre-packed to (K, Cin, Cout) bf16.
# ----------------------------------------------------------------------------
def fused_kernel(x_ref, w1_ref, b1_ref, w2_ref, b2_ref,
                 wih0_ref, whh0_ref, bl0_ref,
                 w1cat_ref, bl1_ref,
                 fw1_ref, fb1_ref, fw2_ref, fb2_ref,
                 out_ref, g0_ref):
    f32 = jnp.float32
    bf16 = jnp.bfloat16

    BP = out_ref.shape[0]            # sublane-padded batch (multiple of 8)
    N = x_ref.shape[0]               # L * BP rows (time-major, flattened)
    H = whh0_ref.shape[0]            # 64
    H4 = 4 * H
    L = N // BP
    T = L // 2                       # pooled sequence length

    # Time-shift helpers: all slices / concatenations are 8-sublane aligned
    # (BP is a multiple of 8) -> pure vreg arrangement, no masked stores.
    def shift_back(a):               # time block t <- block t-1 (block 0 = pad)
        z = jnp.zeros((BP, a.shape[1]), a.dtype)
        return jnp.concatenate([z, a[0:N - BP, :]], axis=0)

    def shift_fwd(a):                # time block t <- block t+1 (last = pad)
        z = jnp.zeros((BP, a.shape[1]), a.dtype)
        return jnp.concatenate([a[BP:N, :], z], axis=0)

    # ---- conv1 (k=3, pad=1) + ReLU: 3 shifted bf16 matmuls, f32 accumulate --
    x = x_ref[...]                                              # (N, Cin) f32
    h1 = (jnp.dot(shift_back(x).astype(bf16), w1_ref[0], preferred_element_type=f32)
          + jnp.dot(x.astype(bf16),           w1_ref[1], preferred_element_type=f32)
          + jnp.dot(shift_fwd(x).astype(bf16), w1_ref[2], preferred_element_type=f32)
          + b1_ref[...])                                        # (N, C1)
    h1 = jnp.maximum(h1, 0.0)

    # ---- conv2 (k=3, pad=1) + ReLU (no VMEM round trip) ---------------------
    h2 = (jnp.dot(shift_back(h1).astype(bf16), w2_ref[0], preferred_element_type=f32)
          + jnp.dot(h1.astype(bf16),           w2_ref[1], preferred_element_type=f32)
          + jnp.dot(shift_fwd(h1).astype(bf16), w2_ref[2], preferred_element_type=f32)
          + b2_ref[...])                                        # (N, C2)
    h2 = jnp.maximum(h2, 0.0)

    # ---- MaxPool1d(kernel=2): even time blocks of `m` hold the pooled values
    m = jnp.maximum(h2, shift_fwd(h2))                          # (N, C2)

    # ---- LSTM layer-0 input projection, hoisted off the serial chain --------
    # One big matmul over all time blocks; stored to an aligned VMEM scratch so
    # the unrolled recurrence only loads one (BP, 4H) slice per step.
    g0_ref[...] = (jnp.dot(m.astype(bf16), wih0_ref[...], preferred_element_type=f32)
                   + bl0_ref[...])                              # (N, 4H)

    bl1b = jnp.broadcast_to(bl1_ref[...], (BP, H4))             # hoisted broadcast

    def cell(gates, c):
        # i/f/o columns of the packed weights/biases are pre-scaled by 0.5, so a
        # single tanh over the whole gate tile yields tanh(z/2) for i/f/o and
        # tanh(z) for g.  PyTorch gate order: i, f, g, o.
        tg = jnp.tanh(gates)
        i = 0.5 * (tg[:, 0:H] + 1.0)
        f = 0.5 * (tg[:, H:2 * H] + 1.0)
        g = tg[:, 2 * H:3 * H]
        o = 0.5 * (tg[:, 3 * H:4 * H] + 1.0)
        c_new = f * c + i * g
        return o * jnp.tanh(c_new), c_new

    zero = jnp.zeros((BP, H), f32)
    h0, c0, h1s, c1s = zero, zero, zero, zero
    for t in range(T):               # fully unrolled: T static, slices static
        base = 2 * t * BP            # pooled step t lives in even time block 2t
        gates0 = (g0_ref[base:base + BP, :]
                  + jnp.dot(h0.astype(bf16), whh0_ref[...],
                            preferred_element_type=f32))
        h0, c0 = cell(gates0, c0)
        # merged layer-1 matmul: [h0 | h1] (BP,128) x (128, 4H)
        hcat = jnp.concatenate([h0, h1s], axis=1).astype(bf16)
        gates1 = bl1b + jnp.dot(hcat, w1cat_ref[...], preferred_element_type=f32)
        h1s, c1s = cell(gates1, c1s)

    # ---- head: fc1 (64->32) + ReLU + fc2 (32->1) ----------------------------
    zf = (jnp.dot(h1s.astype(bf16), fw1_ref[...], preferred_element_type=f32)
          + fb1_ref[...])
    zf = jnp.maximum(zf, 0.0)                                   # (BP, 32)
    out_ref[...] = jnp.sum(zf * fw2_ref[...], axis=1, keepdims=True) + fb2_ref[...]


# ----------------------------------------------------------------------------
# Parameter init (deterministic, synthetic — PyTorch-layout tensors).
# ----------------------------------------------------------------------------
def init_params(key, input_size, cnn_channels, hidden=64):
    C1 = cnn_channels
    C2 = cnn_channels // 2
    ks = jax.random.split(key, 16)

    def w(k, shape, scale=0.1):
        return (scale * jax.random.normal(k, shape)).astype(jnp.float32)

    return dict(
        conv1_w=w(ks[0], (C1, input_size, 3)), conv1_b=w(ks[1], (C1,)),
        conv2_w=w(ks[2], (C2, C1, 3)),        conv2_b=w(ks[3], (C2,)),
        w_ih_l0=w(ks[4], (4 * hidden, C2)),   w_hh_l0=w(ks[5], (4 * hidden, hidden)),
        b_ih_l0=w(ks[6], (4 * hidden,)),      b_hh_l0=w(ks[7], (4 * hidden,)),
        w_ih_l1=w(ks[8], (4 * hidden, hidden)), w_hh_l1=w(ks[9], (4 * hidden, hidden)),
        b_ih_l1=w(ks[10], (4 * hidden,)),     b_hh_l1=w(ks[11], (4 * hidden,)),
        fc1_w=w(ks[12], (32, hidden)),        fc1_b=w(ks[13], (32,)),
        fc2_w=w(ks[14], (1, 32)),             fc2_b=w(ks[15], (1,)),
    )


# One-time weight repacking (outside the jitted forward; runs at load time).
def pack_params(params, hidden=64):
    H = hidden
    f32, bf16 = jnp.float32, jnp.bfloat16

    # PyTorch gate order (i, f, g, o).  Pre-scale i/f/o by 0.5 so the kernel can
    # evaluate sigmoid(z) = 0.5*(tanh(z/2)+1) with ONE tanh over the gate tile.
    gate_scale = jnp.concatenate([
        jnp.full((H,), 0.5, f32), jnp.full((H,), 0.5, f32),
        jnp.ones((H,), f32),      jnp.full((H,), 0.5, f32)])

    wih0 = params["w_ih_l0"].T * gate_scale[None, :]            # (C2, 4H)
    whh0 = params["w_hh_l0"].T * gate_scale[None, :]            # (H, 4H)
    bl0 = (params["b_ih_l0"] + params["b_hh_l0"]) * gate_scale
    # Layer-1 input + recurrent weights stacked along K so the recurrence does
    # a single K=128 matmul per step: [h0 | h1] @ w1cat.
    w1cat = jnp.concatenate(
        [params["w_ih_l1"].T, params["w_hh_l1"].T], axis=0) * gate_scale[None, :]
    bl1 = (params["b_ih_l1"] + params["b_hh_l1"]) * gate_scale

    return dict(
        w1=jnp.transpose(params["conv1_w"], (2, 1, 0)).astype(bf16),   # (3, Cin, C1)
        b1=params["conv1_b"].reshape(1, -1).astype(f32),
        w2=jnp.transpose(params["conv2_w"], (2, 1, 0)).astype(bf16),   # (3, C1, C2)
        b2=params["conv2_b"].reshape(1, -1).astype(f32),
        wih0=wih0.astype(bf16),                                        # (C2, 4H)
        whh0=whh0.astype(bf16),                                        # (H, 4H)
        bl0=bl0.reshape(1, 4 * H).astype(f32),
        w1cat=w1cat.astype(bf16),                                      # (2H, 4H)
        bl1=bl1.reshape(1, 4 * H).astype(f32),
        fw1=params["fc1_w"].T.astype(bf16),                            # (H, 32)
        fb1=params["fc1_b"].reshape(1, 32).astype(f32),
        fw2=params["fc2_w"].reshape(1, 32).astype(f32),
        fb2=params["fc2_b"].reshape(1, 1).astype(f32),
    )


@jax.jit
def cnn_lstm_forward(x, packed):
    # x: (B, L, input_size) -- batch_first, same as the PyTorch module input.
    B, L, Cin = x.shape
    BP = ((B + 7) // 8) * 8          # pad batch to one full sublane tile
    H = packed["whh0"].shape[0]

    # Time-major layout, batch zero-padded to BP rows per time step, flattened
    # to rows (row = t*BP + b): every in-kernel time shift / pool / LSTM slice
    # is then an 8-sublane-aligned block.
    xt = jnp.transpose(x.astype(jnp.float32), (1, 0, 2))        # (L, B, Cin)
    if BP != B:
        xt = jnp.pad(xt, ((0, 0), (0, BP - B), (0, 0)))
    x_flat = xt.reshape(L * BP, Cin)

    out = pl.pallas_call(
        fused_kernel,
        out_shape=jax.ShapeDtypeStruct((BP, 1), jnp.float32),
        scratch_shapes=[
            pltpu.VMEM((L * BP, 4 * H), jnp.float32),   # hoisted layer-0 gate proj
        ],
    )(x_flat,
      packed["w1"], packed["b1"], packed["w2"], packed["b2"],
      packed["wih0"], packed["whh0"], packed["bl0"],
      packed["w1cat"], packed["bl1"],
      packed["fw1"], packed["fb1"], packed["fw2"], packed["fb2"])
    return out[:B]                   # drop the zero-padded batch rows


if __name__ == "__main__":
    # Small shapes consistent with the module:
    #   batch=2, sequence_length=16, input_size=8, cnn_channels=16
    #   (hidden=64 and fc 64->32->1 are fixed by the module)
    B, L, INPUT_SIZE, CNN_CH = 2, 16, 8, 16

    key = jax.random.PRNGKey(0)
    k_x, k_p = jax.random.split(key)
    x = jax.random.normal(k_x, (B, L, INPUT_SIZE), dtype=jnp.float32)
    params = init_params(k_p, INPUT_SIZE, CNN_CH)
    packed = pack_params(params)     # one-time repacking, outside jit

    y = cnn_lstm_forward(x, packed)
    y = jax.block_until_ready(y)

    assert y.shape == (B, 1), y.shape
    assert bool(jnp.all(jnp.isfinite(y))), "non-finite output"
    print("KERNEL_OK")
</pallas_src>

<mosaic_0001>
module attributes {stable_mosaic.version = 11 : i64} {
  func.func @fused_kernel(%arg0: memref<128x8xf32, #tpu.memory_space<vmem>>, %arg1: memref<3x8x16xbf16, #tpu.memory_space<vmem>>, %arg2: memref<1x16xf32, #tpu.memory_space<vmem>>, %arg3: memref<3x16x8xbf16, #tpu.memory_space<vmem>>, %arg4: memref<1x8xf32, #tpu.memory_space<vmem>>, %arg5: memref<8x256xbf16, #tpu.memory_space<vmem>>, %arg6: memref<64x256xbf16, #tpu.memory_space<vmem>>, %arg7: memref<1x256xf32, #tpu.memory_space<vmem>>, %arg8: memref<128x256xbf16, #tpu.memory_space<vmem>>, %arg9: memref<1x256xf32, #tpu.memory_space<vmem>>, %arg10: memref<64x32xbf16, #tpu.memory_space<vmem>>, %arg11: memref<1x32xf32, #tpu.memory_space<vmem>>, %arg12: memref<1x32xf32, #tpu.memory_space<vmem>>, %arg13: memref<1x1xf32, #tpu.memory_space<vmem>>, %arg14: memref<8x1xf32, #tpu.memory_space<vmem>>, %arg15: memref<128x256xf32, #tpu.memory_space<vmem>>) attributes {dimension_semantics = [], scalar_prefetch = 0 : i64, scratch_operands = 1 : i64, tpu.core_type = #tpu.core_type<tc>} {
    %c0 = arith.constant 0 : index
    %c0_0 = arith.constant 0 : index
    %0 = vector.load %arg0[%c0, %c0_0] : memref<128x8xf32, #tpu.memory_space<vmem>>, vector<128x8xf32>
    %cst = arith.constant 0.000000e+00 : f32
    %1 = vector.broadcast %cst : f32 to vector<8x8xf32>
    %2 = vector.extract_strided_slice %0 {offsets = [0, 0], sizes = [120, 8], strides = [1, 1]} : vector<128x8xf32> to vector<120x8xf32>
    %3 = tpu.concatenate %1, %2 in 0 : vector<8x8xf32>, vector<120x8xf32> -> vector<128x8xf32>
    %4 = arith.truncf %3 : vector<128x8xf32> to vector<128x8xbf16>
    %c0_1 = arith.constant 0 : index
    %c0_2 = arith.constant 0 : index
    %c0_3 = arith.constant 0 : index
    %5 = vector.load %arg1[%c0_1, %c0_2, %c0_3] : memref<3x8x16xbf16, #tpu.memory_space<vmem>>, vector<1x8x16xbf16>
    %6 = vector.shape_cast %5 : vector<1x8x16xbf16> to vector<8x16xbf16>
    %cst_4 = arith.constant dense<0.000000e+00> : vector<128x16xf32>
    %7 = tpu.matmul %4, %6, %cst_4 {dimension_numbers = #tpu.dot_dimension_numbers<[1], [0], [0], [1], [0, 0, 1, 1], [], []>} : vector<128x8xbf16>, vector<8x16xbf16>, vector<128x16xf32> -> vector<128x16xf32>
    %8 = arith.truncf %0 : vector<128x8xf32> to vector<128x8xbf16>
    %c1 = arith.constant 1 : index
    %c0_5 = arith.constant 0 : index
    %c0_6 = arith.constant 0 : index
    %9 = vector.load %arg1[%c1, %c0_5, %c0_6] : memref<3x8x16xbf16, #tpu.memory_space<vmem>>, vector<1x8x16xbf16>
    %10 = vector.shape_cast %9 : vector<1x8x16xbf16> to vector<8x16xbf16>
    %cst_7 = arith.constant dense<0.000000e+00> : vector<128x16xf32>
    %11 = tpu.matmul %8, %10, %cst_7 {dimension_numbers = #tpu.dot_dimension_numbers<[1], [0], [0], [1], [0, 0, 1, 1], [], []>} : vector<128x8xbf16>, vector<8x16xbf16>, vector<128x16xf32> -> vector<128x16xf32>
    %12 = arith.addf %7, %11 : vector<128x16xf32>
    %cst_8 = arith.constant 0.000000e+00 : f32
    %13 = vector.broadcast %cst_8 : f32 to vector<8x8xf32>
    %14 = vector.extract_strided_slice %0 {offsets = [8, 0], sizes = [120, 8], strides = [1, 1]} : vector<128x8xf32> to vector<120x8xf32>
    %15 = tpu.concatenate %14, %13 in 0 : vector<120x8xf32>, vector<8x8xf32> -> vector<128x8xf32>
    %16 = arith.truncf %15 : vector<128x8xf32> to vector<128x8xbf16>
    %c2 = arith.constant 2 : index
    %c0_9 = arith.constant 0 : index
    %c0_10 = arith.constant 0 : index
    %17 = vector.load %arg1[%c2, %c0_9, %c0_10] : memref<3x8x16xbf16, #tpu.memory_space<vmem>>, vector<1x8x16xbf16>
    %18 = vector.shape_cast %17 : vector<1x8x16xbf16> to vector<8x16xbf16>
    %cst_11 = arith.constant dense<0.000000e+00> : vector<128x16xf32>
    %19 = tpu.matmul %16, %18, %cst_11 {dimension_numbers = #tpu.dot_dimension_numbers<[1], [0], [0], [1], [0, 0, 1, 1], [], []>} : vector<128x8xbf16>, vector<8x16xbf16>, vector<128x16xf32> -> vector<128x16xf32>
    %20 = arith.addf %12, %19 : vector<128x16xf32>
    %c0_12 = arith.constant 0 : index
    %c0_13 = arith.constant 0 : index
    %21 = vector.load %arg2[%c0_12, %c0_13] : memref<1x16xf32, #tpu.memory_space<vmem>>, vector<1x16xf32>
    %22 = vector.broadcast %21 : vector<1x16xf32> to vector<128x16xf32>
    %23 = arith.addf %20, %22 : vector<128x16xf32>
    %cst_14 = arith.constant 0.000000e+00 : f32
    %24 = vector.broadcast %cst_14 : f32 to vector<128x16xf32>
    %25 = arith.maximumf %23, %24 : vector<128x16xf32>
    %cst_15 = arith.constant 0.000000e+00 : f32
    %26 = vector.broadcast %cst_15 : f32 to vector<8x16xf32>
    %27 = vector.extract_strided_slice %25 {offsets = [0, 0], sizes = [120, 16], strides = [1, 1]} : vector<128x16xf32> to vector<120x16xf32>
    %28 = tpu.concatenate %26, %27 in 0 : vector<8x16xf32>, vector<120x16xf32> -> vector<128x16xf32>
    %29 = arith.truncf %28 : vector<128x16xf32> to vector<128x16xbf16>
    %c0_16 = arith.constant 0 : index
    %c0_17 = arith.constant 0 : index
    %c0_18 = arith.constant 0 : index
    %30 = vector.load %arg3[%c0_16, %c0_17, %c0_18] : memref<3x16x8xbf16, #tpu.memory_space<vmem>>, vector<1x16x8xbf16>
    %31 = vector.shape_cast %30 : vector<1x16x8xbf16> to vector<16x8xbf16>
    %cst_19 = arith.constant dense<0.000000e+00> : vector<128x8xf32>
    %32 = tpu.matmul %29, %31, %cst_19 {dimension_numbers = #tpu.dot_dimension_numbers<[1], [0], [0], [1], [0, 0, 1, 1], [], []>} : vector<128x16xbf16>, vector<16x8xbf16>, vector<128x8xf32> -> vector<128x8xf32>
    %33 = arith.truncf %25 : vector<128x16xf32> to vector<128x16xbf16>
    %c1_20 = arith.constant 1 : index
    %c0_21 = arith.constant 0 : index
    %c0_22 = arith.constant 0 : index
    %34 = vector.load %arg3[%c1_20, %c0_21, %c0_22] : memref<3x16x8xbf16, #tpu.memory_space<vmem>>, vector<1x16x8xbf16>
    %35 = vector.shape_cast %34 : vector<1x16x8xbf16> to vector<16x8xbf16>
    %cst_23 = arith.constant dense<0.000000e+00> : vector<128x8xf32>
    %36 = tpu.matmul %33, %35, %cst_23 {dimension_numbers = #tpu.dot_dimension_numbers<[1], [0], [0], [1], [0, 0, 1, 1], [], []>} : vector<128x16xbf16>, vector<16x8xbf16>, vector<128x8xf32> -> vector<128x8xf32>
    %37 = arith.addf %32, %36 : vector<128x8xf32>
    %cst_24 = arith.constant 0.000000e+00 : f32
    %38 = vector.broadcast %cst_24 : f32 to vector<8x16xf32>
    %39 = vector.extract_strided_slice %25 {offsets = [8, 0], sizes = [120, 16], strides = [1, 1]} : vector<128x16xf32> to vector<120x16xf32>
    %40 = tpu.concatenate %39, %38 in 0 : vector<120x16xf32>, vector<8x16xf32> -> vector<128x16xf32>
    %41 = arith.truncf %40 : vector<128x16xf32> to vector<128x16xbf16>
    %c2_25 = arith.constant 2 : index
    %c0_26 = arith.constant 0 : index
    %c0_27 = arith.constant 0 : index
    %42 = vector.load %arg3[%c2_25, %c0_26, %c0_27] : memref<3x16x8xbf16, #tpu.memory_space<vmem>>, vector<1x16x8xbf16>
    %43 = vector.shape_cast %42 : vector<1x16x8xbf16> to vector<16x8xbf16>
    %cst_28 = arith.constant dense<0.000000e+00> : vector<128x8xf32>
    %44 = tpu.matmul %41, %43, %cst_28 {dimension_numbers = #tpu.dot_dimension_numbers<[1], [0], [0], [1], [0, 0, 1, 1], [], []>} : vector<128x16xbf16>, vector<16x8xbf16>, vector<128x8xf32> -> vector<128x8xf32>
    %45 = arith.addf %37, %44 : vector<128x8xf32>
    %c0_29 = arith.constant 0 : index
    %c0_30 = arith.constant 0 : index
    %46 = vector.load %arg4[%c0_29, %c0_30] : memref<1x8xf32, #tpu.memory_space<vmem>>, vector<1x8xf32>
    %47 = vector.broadcast %46 : vector<1x8xf32> to vector<128x8xf32>
    %48 = arith.addf %45, %47 : vector<128x8xf32>
    %cst_31 = arith.constant 0.000000e+00 : f32
    %49 = vector.broadcast %cst_31 : f32 to vector<128x8xf32>
    %50 = arith.maximumf %48, %49 : vector<128x8xf32>
    %cst_32 = arith.constant 0.000000e+00 : f32
    %51 = vector.broadcast %cst_32 : f32 to vector<8x8xf32>
    %52 = vector.extract_strided_slice %50 {offsets = [8, 0], sizes = [120, 8], strides = [1, 1]} : vector<128x8xf32> to vector<120x8xf32>
    %53 = tpu.concatenate %52, %51 in 0 : vector<120x8xf32>, vector<8x8xf32> -> vector<128x8xf32>
    %54 = arith.maximumf %50, %53 : vector<128x8xf32>
    %55 = arith.truncf %54 : vector<128x8xf32> to vector<128x8xbf16>
    %c0_33 = arith.constant 0 : index
    %c0_34 = arith.constant 0 : index
    %56 = vector.load %arg5[%c0_33, %c0_34] : memref<8x256xbf16, #tpu.memory_space<vmem>>, vector<8x256xbf16>
    %cst_35 = arith.constant dense<0.000000e+00> : vector<128x256xf32>
    %57 = tpu.matmul %55, %56, %cst_35 {dimension_numbers = #tpu.dot_dimension_numbers<[1], [0], [0], [1], [0, 0, 1, 1], [], []>} : vector<128x8xbf16>, vector<8x256xbf16>, vector<128x256xf32> -> vector<128x256xf32>
    %c0_36 = arith.constant 0 : index
    %c0_37 = arith.constant 0 : index
    %58 = vector.load %arg7[%c0_36, %c0_37] : memref<1x256xf32, #tpu.memory_space<vmem>>, vector<1x256xf32>
    %59 = vector.broadcast %58 : vector<1x256xf32> to vector<128x256xf32>
    %60 = arith.addf %57, %59 : vector<128x256xf32>
    %c0_38 = arith.constant 0 : index
    %c0_39 = arith.constant 0 : index
    %61 = vector.load %arg15[%c0_38, %c0_39] : memref<128x256xf32, #tpu.memory_space<vmem>>, vector<128x256xf32>
    tpu.vector_store %arg15[%c0_38, %c0_39], %60 {strides = array<i32>} : memref<128x256xf32, #tpu.memory_space<vmem>>, vector<128x256xf32>,
    %c0_40 = arith.constant 0 : index
    %c0_41 = arith.constant 0 : index
    %62 = vector.load %arg9[%c0_40, %c0_41] : memref<1x256xf32, #tpu.memory_space<vmem>>, vector<1x256xf32>
    %63 = vector.shape_cast %62 : vector<1x256xf32> to vector<1x256xf32>
    %64 = vector.broadcast %63 : vector<1x256xf32> to vector<8x256xf32>
    %cst_42 = arith.constant 0.000000e+00 : f32
    %65 = vector.broadcast %cst_42 : f32 to vector<8x64xf32>
    %c0_43 = arith.constant 0 : index
    %c0_44 = arith.constant 0 : index
    %66 = vector.load %arg15[%c0_43, %c0_44] : memref<128x256xf32, #tpu.memory_space<vmem>>, vector<8x256xf32>
    %67 = arith.truncf %65 : vector<8x64xf32> to vector<8x64xbf16>
    %c0_45 = arith.constant 0 : index
    %c0_46 = arith.constant 0 : index
    %68 = vector.load %arg6[%c0_45, %c0_46] : memref<64x256xbf16, #tpu.memory_space<vmem>>, vector<64x256xbf16>
    %cst_47 = arith.constant dense<0.000000e+00> : vector<8x256xf32>
    %69 = tpu.matmul %67, %68, %cst_47 {dimension_numbers = #tpu.dot_dimension_numbers<[1], [0], [0], [1], [0, 0, 1, 1], [], []>} : vector<8x64xbf16>, vector<64x256xbf16>, vector<8x256xf32> -> vector<8x256xf32>
    %70 = arith.addf %66, %69 : vector<8x256xf32>
    %71 = math.tanh %70 : vector<8x256xf32>
    %72 = vector.extract_strided_slice %71 {offsets = [0, 0], sizes = [8, 64], strides = [1, 1]} : vector<8x256xf32> to vector<8x64xf32>
    %cst_48 = arith.constant 1.000000e+00 : f32
    %73 = vector.broadcast %cst_48 : f32 to vector<8x64xf32>
    %74 = arith.addf %72, %73 : vector<8x64xf32>
    %cst_49 = arith.constant 5.000000e-01 : f32
    %75 = vector.broadcast %cst_49 : f32 to vector<8x64xf32>
    %76 = arith.mulf %75, %74 : vector<8x64xf32>
    %77 = vector.extract_strided_slice %71 {offsets = [0, 64], sizes = [8, 64], strides = [1, 1]} : vector<8x256xf32> to vector<8x64xf32>
    %cst_50 = arith.constant 1.000000e+00 : f32
    %78 = vector.broadcast %cst_50 : f32 to vector<8x64xf32>
    %79 = arith.addf %77, %78 : vector<8x64xf32>
    %cst_51 = arith.constant 5.000000e-01 : f32
    %80 = vector.broadcast %cst_51 : f32 to vector<8x64xf32>
    %81 = arith.mulf %80, %79 : vector<8x64xf32>
    %82 = vector.extract_strided_slice %71 {offsets = [0, 128], sizes = [8, 64], strides = [1, 1]} : vector<8x256xf32> to vector<8x64xf32>
    %83 = vector.extract_strided_slice %71 {offsets = [0, 192], sizes = [8, 64], strides = [1, 1]} : vector<8x256xf32> to vector<8x64xf32>
    %cst_52 = arith.constant 1.000000e+00 : f32
    %84 = vector.broadcast %cst_52 : f32 to vector<8x64xf32>
    %85 = arith.addf %83, %84 : vector<8x64xf32>
    %cst_53 = arith.constant 5.000000e-01 : f32
    %86 = vector.broadcast %cst_53 : f32 to vector<8x64xf32>
    %87 = arith.mulf %86, %85 : vector<8x64xf32>
    %88 = arith.mulf %81, %65 : vector<8x64xf32>
    %89 = arith.mulf %76, %82 : vector<8x64xf32>
    %90 = arith.addf %88, %89 : vector<8x64xf32>
    %91 = math.tanh %90 : vector<8x64xf32>
    %92 = arith.mulf %87, %91 : vector<8x64xf32>
    %93 = tpu.concatenate %92, %65 in 1 : vector<8x64xf32>, vector<8x64xf32> -> vector<8x128xf32>
    %94 = arith.truncf %93 : vector<8x128xf32> to vector<8x128xbf16>
    %c0_54 = arith.constant 0 : index
    %c0_55 = arith.constant 0 : index
    %95 = vector.load %arg8[%c0_54, %c0_55] : memref<128x256xbf16, #tpu.memory_space<vmem>>, vector<128x256xbf16>
    %cst_56 = arith.constant dense<0.000000e+00> : vector<8x256xf32>
    %96 = tpu.matmul %94, %95, %cst_56 {dimension_numbers = #tpu.dot_dimension_numbers<[1], [0], [0], [1], [0, 0, 1, 1], [], []>} : vector<8x128xbf16>, vector<128x256xbf16>, vector<8x256xf32> -> vector<8x256xf32>
    %97 = arith.addf %64, %96 : vector<8x256xf32>
    %98 = math.tanh %97 : vector<8x256xf32>
    %99 = vector.extract_strided_slice %98 {offsets = [0, 0], sizes = [8, 64], strides = [1, 1]} : vector<8x256xf32> to vector<8x64xf32>
    %cst_57 = arith.constant 1.000000e+00 : f32
    %100 = vector.broadcast %cst_57 : f32 to vector<8x64xf32>
    %101 = arith.addf %99, %100 : vector<8x64xf32>
    %cst_58 = arith.constant 5.000000e-01 : f32
    %102 = vector.broadcast %cst_58 : f32 to vector<8x64xf32>
    %103 = arith.mulf %102, %101 : vector<8x64xf32>
    %104 = vector.extract_strided_slice %98 {offsets = [0, 64], sizes = [8, 64], strides = [1, 1]} : vector<8x256xf32> to vector<8x64xf32>
    %cst_59 = arith.constant 1.000000e+00 : f32
    %105 = vector.broadcast %cst_59 : f32 to vector<8x64xf32>
    %106 = arith.addf %104, %105 : vector<8x64xf32>
    %cst_60 = arith.constant 5.000000e-01 : f32
    %107 = vector.broadcast %cst_60 : f32 to vector<8x64xf32>
    %108 = arith.mulf %107, %106 : vector<8x64xf32>
    %109 = vector.extract_strided_slice %98 {offsets = [0, 128], sizes = [8, 64], strides = [1, 1]} : vector<8x256xf32> to vector<8x64xf32>
    %110 = vector.extract_strided_slice %98 {offsets = [0, 192], sizes = [8, 64], strides = [1, 1]} : vector<8x256xf32> to vector<8x64xf32>
    %cst_61 = arith.constant 1.000000e+00 : f32
    %111 = vector.broadcast %cst_61 : f32 to vector<8x64xf32>
    %112 = arith.addf %110, %111 : vector<8x64xf32>
    %cst_62 = arith.constant 5.000000e-01 : f32
    %113 = vector.broadcast %cst_62 : f32 to vector<8x64xf32>
    %114 = arith.mulf %113, %112 : vector<8x64xf32>
    %115 = arith.mulf %108, %65 : vector<8x64xf32>
    %116 = arith.mulf %103, %109 : vector<8x64xf32>
    %117 = arith.addf %115, %116 : vector<8x64xf32>
    %118 = math.tanh %117 : vector<8x64xf32>
    %119 = arith.mulf %114, %118 : vector<8x64xf32>
    %c16 = arith.constant 16 : index
    %c0_63 = arith.constant 0 : index
    %120 = vector.load %arg15[%c16, %c0_63] : memref<128x256xf32, #tpu.memory_space<vmem>>, vector<8x256xf32>
    %121 = arith.truncf %92 : vector<8x64xf32> to vector<8x64xbf16>
    %c0_64 = arith.constant 0 : index
    %c0_65 = arith.constant 0 : index
    %122 = vector.load %arg6[%c0_64, %c0_65] : memref<64x256xbf16, #tpu.memory_space<vmem>>, vector<64x256xbf16>
    %cst_66 = arith.constant dense<0.000000e+00> : vector<8x256xf32>
    %123 = tpu.matmul %121, %122, %cst_66 {dimension_numbers = #tpu.dot_dimension_numbers<[1], [0], [0], [1], [0, 0, 1, 1], [], []>} : vector<8x64xbf16>, vector<64x256xbf16>, vector<8x256xf32> -> vector<8x256xf32>
    %124 = arith.addf %120, %123 : vector<8x256xf32>
    %125 = math.tanh %124 : vector<8x256xf32>
    %126 = vector.extract_strided_slice %125 {offsets = [0, 0], sizes = [8, 64], strides = [1, 1]} : vector<8x256xf32> to vector<8x64xf32>
    %cst_67 = arith.constant 1.000000e+00 : f32
    %127 = vector.broadcast %cst_67 : f32 to vector<8x64xf32>
    %128 = arith.addf %126, %127 : vector<8x64xf32>
    %cst_68 = arith.constant 5.000000e-01 : f32
    %129 = vector.broadcast %cst_68 : f32 to vector<8x64xf32>
    %130 = arith.mulf %129, %128 : vector<8x64xf32>
    %131 = vector.extract_strided_slice %125 {offsets = [0, 64], sizes = [8, 64], strides = [1, 1]} : vector<8x256xf32> to vector<8x64xf32>
    %cst_69 = arith.constant 1.000000e+00 : f32
    %132 = vector.broadcast %cst_69 : f32 to vector<8x64xf32>
    %133 = arith.addf %131, %132 : vector<8x64xf32>
    %cst_70 = arith.constant 5.000000e-01 : f32
    %134 = vector.broadcast %cst_70 : f32 to vector<8x64xf32>
    %135 = arith.mulf %134, %133 : vector<8x64xf32>
    %136 = vector.extract_strided_slice %125 {offsets = [0, 128], sizes = [8, 64], strides = [1, 1]} : vector<8x256xf32> to vector<8x64xf32>
    %137 = vector.extract_strided_slice %125 {offsets = [0, 192], sizes = [8, 64], strides = [1, 1]} : vector<8x256xf32> to vector<8x64xf32>
    %cst_71 = arith.constant 1.000000e+00 : f32
    %138 = vector.broadcast %cst_71 : f32 to vector<8x64xf32>
    %139 = arith.addf %137, %138 : vector<8x64xf32>
    %cst_72 = arith.constant 5.000000e-01 : f32
    %140 = vector.broadcast %cst_72 : f32 to vector<8x64xf32>
    %141 = arith.mulf %140, %139 : vector<8x64xf32>
    %142 = arith.mulf %135, %90 : vector<8x64xf32>
    %143 = arith.mulf %130, %136 : vector<8x64xf32>
    %144 = arith.addf %142, %143 : vector<8x64xf32>
    %145 = math.tanh %144 : vector<8x64xf32>
    %146 = arith.mulf %141, %145 : vector<8x64xf32>
    %147 = tpu.concatenate %146, %119 in 1 : vector<8x64xf32>, vector<8x64xf32> -> vector<8x128xf32>
    %148 = arith.truncf %147 : vector<8x128xf32> to vector<8x128xbf16>
    %c0_73 = arith.constant 0 : index
    %c0_74 = arith.constant 0 : index
    %149 = vector.load %arg8[%c0_73, %c0_74] : memref<128x256xbf16, #tpu.memory_space<vmem>>, vector<128x256xbf16>
    %cst_75 = arith.constant dense<0.000000e+00> : vector<8x256xf32>
    %150 = tpu.matmul %148, %149, %cst_75 {dimension_numbers = #tpu.dot_dimension_numbers<[1], [0], [0], [1], [0, 0, 1, 1], [], []>} : vector<8x128xbf16>, vector<128x256xbf16>, vector<8x256xf32> -> vector<8x256xf32>
    %151 = arith.addf %64, %150 : vector<8x256xf32>
    %152 = math.tanh %151 : vector<8x256xf32>
    %153 = vector.extract_strided_slice %152 {offsets = [0, 0], sizes = [8, 64], strides = [1, 1]} : vector<8x256xf32> to vector<8x64xf32>
    %cst_76 = arith.constant 1.000000e+00 : f32
    %154 = vector.broadcast %cst_76 : f32 to vector<8x64xf32>
    %155 = arith.addf %153, %154 : vector<8x64xf32>
    %cst_77 = arith.constant 5.000000e-01 : f32
    %156 = vector.broadcast %cst_77 : f32 to vector<8x64xf32>
    %157 = arith.mulf %156, %155 : vector<8x64xf32>
    %158 = vector.extract_strided_slice %152 {offsets = [0, 64], sizes = [8, 64], strides = [1, 1]} : vector<8x256xf32> to vector<8x64xf32>
    %cst_78 = arith.constant 1.000000e+00 : f32
    %159 = vector.broadcast %cst_78 : f32 to vector<8x64xf32>
    %160 = arith.addf %158, %159 : vector<8x64xf32>
    %cst_79 = arith.constant 5.000000e-01 : f32
    %161 = vector.broadcast %cst_79 : f32 to vector<8x64xf32>
    %162 = arith.mulf %161, %160 : vector<8x64xf32>
    %163 = vector.extract_strided_slice %152 {offsets = [0, 128], sizes = [8, 64], strides = [1, 1]} : vector<8x256xf32> to vector<8x64xf32>
    %164 = vector.extract_strided_slice %152 {offsets = [0, 192], sizes = [8, 64], strides = [1, 1]} : vector<8x256xf32> to vector<8x64xf32>
    %cst_80 = arith.constant 1.000000e+00 : f32
    %165 = vector.broadcast %cst_80 : f32 to vector<8x64xf32>
    %166 = arith.addf %164, %165 : vector<8x64xf32>
    %cst_81 = arith.constant 5.000000e-01 : f32
    %167 = vector.broadcast %cst_81 : f32 to vector<8x64xf32>
    %168 = arith.mulf %167, %166 : vector<8x64xf32>
    %169 = arith.mulf %162, %117 : vector<8x64xf32>
    %170 = arith.mulf %157, %163 : vector<8x64xf32>
    %171 = arith.addf %169, %170 : vector<8x64xf32>
    %172 = math.tanh %171 : vector<8x64xf32>
    %173 = arith.mulf %168, %172 : vector<8x64xf32>
    %c32 = arith.constant 32 : index
    %c0_82 = arith.constant 0 : index
    %174 = vector.load %arg15[%c32, %c0_82] : memref<128x256xf32, #tpu.memory_space<vmem>>, vector<8x256xf32>
    %175 = arith.truncf %146 : vector<8x64xf32> to vector<8x64xbf16>
    %c0_83 = arith.constant 0 : index
    %c0_84 = arith.constant 0 : index
    %176 = vector.load %arg6[%c0_83, %c0_84] : memref<64x256xbf16, #tpu.memory_space<vmem>>, vector<64x256xbf16>
    %cst_85 = arith.constant dense<0.000000e+00> : vector<8x256xf32>
    %177 = tpu.matmul %175, %176, %cst_85 {dimension_numbers = #tpu.dot_dimension_numbers<[1], [0], [0], [1], [0, 0, 1, 1], [], []>} : vector<8x64xbf16>, vector<64x256xbf16>, vector<8x256xf32> -> vector<8x256xf32>
    %178 = arith.addf %174, %177 : vector<8x256xf32>
    %179 = math.tanh %178 : vector<8x256xf32>
    %180 = vector.extract_strided_slice %179 {offsets = [0, 0], sizes = [8, 64], strides = [1, 1]} : vector<8x256xf32> to vector<8x64xf32>
    %cst_86 = arith.constant 1.000000e+00 : f32
    %181 = vector.broadcast %cst_86 : f32 to vector<8x64xf32>
    %182 = arith.addf %180, %181 : vector<8x64xf32>
    %cst_87 = arith.constant 5.000000e-01 : f32
    %183 = vector.broadcast %cst_87 : f32 to vector<8x64xf32>
    %184 = arith.mulf %183, %182 : vector<8x64xf32>
    %185 = vector.extract_strided_slice %179 {offsets = [0, 64], sizes = [8, 64], strides = [1, 1]} : vector<8x256xf32> to vector<8x64xf32>
    %cst_88 = arith.constant 1.000000e+00 : f32
    %186 = vector.broadcast %cst_88 : f32 to vector<8x64xf32>
    %187 = arith.addf %185, %186 : vector<8x64xf32>
    %cst_89 = arith.constant 5.000000e-01 : f32
    %188 = vector.broadcast %cst_89 : f32 to vector<8x64xf32>
    %189 = arith.mulf %188, %187 : vector<8x64xf32>
    %190 = vector.extract_strided_slice %179 {offsets = [0, 128], sizes = [8, 64], strides = [1, 1]} : vector<8x256xf32> to vector<8x64xf32>
    %191 = vector.extract_strided_slice %179 {offsets = [0, 192], sizes = [8, 64], strides = [1, 1]} : vector<8x256xf32> to vector<8x64xf32>
    %cst_90 = arith.constant 1.000000e+00 : f32
    %192 = vector.broadcast %cst_90 : f32 to vector<8x64xf32>
    %193 = arith.addf %191, %192 : vector<8x64xf32>
    %cst_91 = arith.constant 5.000000e-01 : f32
    %194 = vector.broadcast %cst_91 : f32 to vector<8x64xf32>
    %195 = arith.mulf %194, %193 : vector<8x64xf32>
    %196 = arith.mulf %189, %144 : vector<8x64xf32>
    %197 = arith.mulf %184, %190 : vector<8x64xf32>
    %198 = arith.addf %196, %197 : vector<8x64xf32>
    %199 = math.tanh %198 : vector<8x64xf32>
    %200 = arith.mulf %195, %199 : vector<8x64xf32>
    %201 = tpu.concatenate %200, %173 in 1 : vector<8x64xf32>, vector<8x64xf32> -> vector<8x128xf32>
    %202 = arith.truncf %201 : vector<8x128xf32> to vector<8x128xbf16>
    %c0_92 = arith.constant 0 : index
    %c0_93 = arith.constant 0 : index
    %203 = vector.load %arg8[%c0_92, %c0_93] : memref<128x256xbf16, #tpu.memory_space<vmem>>, vector<128x256xbf16>
    %cst_94 = arith.constant dense<0.000000e+00> : vector<8x256xf32>
    %204 = tpu.matmul %202, %203, %cst_94 {dimension_numbers = #tpu.dot_dimension_numbers<[1], [0], [0], [1], [0, 0, 1, 1], [], []>} : vector<8x128xbf16>, vector<128x256xbf16>, vector<8x256xf32> -> vector<8x256xf32>
    %205 = arith.addf %64, %204 : vector<8x256xf32>
    %206 = math.tanh %205 : vector<8x256xf32>
    %207 = vector.extract_strided_slice %206 {offsets = [0, 0], sizes = [8, 64], strides = [1, 1]} : vector<8x256xf32> to vector<8x64xf32>
    %cst_95 = arith.constant 1.000000e+00 : f32
    %208 = vector.broadcast %cst_95 : f32 to vector<8x64xf32>
    %209 = arith.addf %207, %208 : vector<8x64xf32>
    %cst_96 = arith.constant 5.000000e-01 : f32
    %210 = vector.broadcast %cst_96 : f32 to vector<8x64xf32>
    %211 = arith.mulf %210, %209 : vector<8x64xf32>
    %212 = vector.extract_strided_slice %206 {offsets = [0, 64], sizes = [8, 64], strides = [1, 1]} : vector<8x256xf32> to vector<8x64xf32>
    %cst_97 = arith.constant 1.000000e+00 : f32
    %213 = vector.broadcast %cst_97 : f32 to vector<8x64xf32>
    %214 = arith.addf %212, %213 : vector<8x64xf32>
    %cst_98 = arith.constant 5.000000e-01 : f32
    %215 = vector.broadcast %cst_98 : f32 to vector<8x64xf32>
    %216 = arith.mulf %215, %214 : vector<8x64xf32>
    %217 = vector.extract_strided_slice %206 {offsets = [0, 128], sizes = [8, 64], strides = [1, 1]} : vector<8x256xf32> to vector<8x64xf32>
    %218 = vector.extract_strided_slice %206 {offsets = [0, 192], sizes = [8, 64], strides = [1, 1]} : vector<8x256xf32> to vector<8x64xf32>
    %cst_99 = arith.constant 1.000000e+00 : f32
    %219 = vector.broadcast %cst_99 : f32 to vector<8x64xf32>
    %220 = arith.addf %218, %219 : vector<8x64xf32>
    %cst_100 = arith.constant 5.000000e-01 : f32
    %221 = vector.broadcast %cst_100 : f32 to vector<8x64xf32>
    %222 = arith.mulf %221, %220 : vector<8x64xf32>
    %223 = arith.mulf %216, %171 : vector<8x64xf32>
    %224 = arith.mulf %211, %217 : vector<8x64xf32>
    %225 = arith.addf %223, %224 : vector<8x64xf32>
    %226 = math.tanh %225 : vector<8x64xf32>
    %227 = arith.mulf %222, %226 : vector<8x64xf32>
    %c48 = arith.constant 48 : index
    %c0_101 = arith.constant 0 : index
    %228 = vector.load %arg15[%c48, %c0_101] : memref<128x256xf32, #tpu.memory_space<vmem>>, vector<8x256xf32>
    %229 = arith.truncf %200 : vector<8x64xf32> to vector<8x64xbf16>
    %c0_102 = arith.constant 0 : index
    %c0_103 = arith.constant 0 : index
    %230 = vector.load %arg6[%c0_102, %c0_103] : memref<64x256xbf16, #tpu.memory_space<vmem>>, vector<64x256xbf16>
    %cst_104 = arith.constant dense<0.000000e+00> : vector<8x256xf32>
    %231 = tpu.matmul %229, %230, %cst_104 {dimension_numbers = #tpu.dot_dimension_numbers<[1], [0], [0], [1], [0, 0, 1, 1], [], []>} : vector<8x64xbf16>, vector<64x256xbf16>, vector<8x256xf32> -> vector<8x256xf32>
    %232 = arith.addf %228, %231 : vector<8x256xf32>
    %233 = math.tanh %232 : vector<8x256xf32>
    %234 = vector.extract_strided_slice %233 {offsets = [0, 0], sizes = [8, 64], strides = [1, 1]} : vector<8x256xf32> to vector<8x64xf32>
    %cst_105 = arith.constant 1.000000e+00 : f32
    %235 = vector.broadcast %cst_105 : f32 to vector<8x64xf32>
    %236 = arith.addf %234, %235 : vector<8x64xf32>
    %cst_106 = arith.constant 5.000000e-01 : f32
    %237 = vector.broadcast %cst_106 : f32 to vector<8x64xf32>
    %238 = arith.mulf %237, %236 : vector<8x64xf32>
    %239 = vector.extract_strided_slice %233 {offsets = [0, 64], sizes = [8, 64], strides = [1, 1]} : vector<8x256xf32> to vector<8x64xf32>
    %cst_107 = arith.constant 1.000000e+00 : f32
    %240 = vector.broadcast %cst_107 : f32 to vector<8x64xf32>
    %241 = arith.addf %239, %240 : vector<8x64xf32>
    %cst_108 = arith.constant 5.000000e-01 : f32
    %242 = vector.broadcast %cst_108 : f32 to vector<8x64xf32>
    %243 = arith.mulf %242, %241 : vector<8x64xf32>
    %244 = vector.extract_strided_slice %233 {offsets = [0, 128], sizes = [8, 64], strides = [1, 1]} : vector<8x256xf32> to vector<8x64xf32>
    %245 = vector.extract_strided_slice %233 {offsets = [0, 192], sizes = [8, 64], strides = [1, 1]} : vector<8x256xf32> to vector<8x64xf32>
    %cst_109 = arith.constant 1.000000e+00 : f32
    %246 = vector.broadcast %cst_109 : f32 to vector<8x64xf32>
    %247 = arith.addf %245, %246 : vector<8x64xf32>
    %cst_110 = arith.constant 5.000000e-01 : f32
    %248 = vector.broadcast %cst_110 : f32 to vector<8x64xf32>
    %249 = arith.mulf %248, %247 : vector<8x64xf32>
    %250 = arith.mulf %243, %198 : vector<8x64xf32>
    %251 = arith.mulf %238, %244 : vector<8x64xf32>
    %252 = arith.addf %250, %251 : vector<8x64xf32>
    %253 = math.tanh %252 : vector<8x64xf32>
    %254 = arith.mulf %249, %253 : vector<8x64xf32>
    %255 = tpu.concatenate %254, %227 in 1 : vector<8x64xf32>, vector<8x64xf32> -> vector<8x128xf32>
    %256 = arith.truncf %255 : vector<8x128xf32> to vector<8x128xbf16>
    %c0_111 = arith.constant 0 : index
    %c0_112 = arith.constant 0 : index
    %257 = vector.load %arg8[%c0_111, %c0_112] : memref<128x256xbf16, #tpu.memory_space<vmem>>, vector<128x256xbf16>
    %cst_113 = arith.constant dense<0.000000e+00> : vector<8x256xf32>
    %258 = tpu.matmul %256, %257, %cst_113 {dimension_numbers = #tpu.dot_dimension_numbers<[1], [0], [0], [1], [0, 0, 1, 1], [], []>} : vector<8x128xbf16>, vector<128x256xbf16>, vector<8x256xf32> -> vector<8x256xf32>
    %259 = arith.addf %64, %258 : vector<8x256xf32>
    %260 = math.tanh %259 : vector<8x256xf32>
    %261 = vector.extract_strided_slice %260 {offsets = [0, 0], sizes = [8, 64], strides = [1, 1]} : vector<8x256xf32> to vector<8x64xf32>
    %cst_114 = arith.constant 1.000000e+00 : f32
    %262 = vector.broadcast %cst_114 : f32 to vector<8x64xf32>
    %263 = arith.addf %261, %262 : vector<8x64xf32>
    %cst_115 = arith.constant 5.000000e-01 : f32
    %264 = vector.broadcast %cst_115 : f32 to vector<8x64xf32>
    %265 = arith.mulf %264, %263 : vector<8x64xf32>
    %266 = vector.extract_strided_slice %260 {offsets = [0, 64], sizes = [8, 64], strides = [1, 1]} : vector<8x256xf32> to vector<8x64xf32>
    %cst_116 = arith.constant 1.000000e+00 : f32
    %267 = vector.broadcast %cst_116 : f32 to vector<8x64xf32>
    %268 = arith.addf %266, %267 : vector<8x64xf32>
    %cst_117 = arith.constant 5.000000e-01 : f32
    %269 = vector.broadcast %cst_117 : f32 to vector<8x64xf32>
    %270 = arith.mulf %269, %268 : vector<8x64xf32>
    %271 = vector.extract_strided_slice %260 {offsets = [0, 128], sizes = [8, 64], strides = [1, 1]} : vector<8x256xf32> to vector<8x64xf32>
    %272 = vector.extract_strided_slice %260 {offsets = [0, 192], sizes = [8, 64], strides = [1, 1]} : vector<8x256xf32> to vector<8x64xf32>
    %cst_118 = arith.constant 1.000000e+00 : f32
    %273 = vector.broadcast %cst_118 : f32 to vector<8x64xf32>
    %274 = arith.addf %272, %273 : vector<8x64xf32>
    %cst_119 = arith.constant 5.000000e-01 : f32
    %275 = vector.broadcast %cst_119 : f32 to vector<8x64xf32>
    %276 = arith.mulf %275, %274 : vector<8x64xf32>
    %277 = arith.mulf %270, %225 : vector<8x64xf32>
    %278 = arith.mulf %265, %271 : vector<8x64xf32>
    %279 = arith.addf %277, %278 : vector<8x64xf32>
    %280 = math.tanh %279 : vector<8x64xf32>
    %281 = arith.mulf %276, %280 : vector<8x64xf32>
    %c64 = arith.constant 64 : index
    %c0_120 = arith.constant 0 : index
    %282 = vector.load %arg15[%c64, %c0_120] : memref<128x256xf32, #tpu.memory_space<vmem>>, vector<8x256xf32>
    %283 = arith.truncf %254 : vector<8x64xf32> to vector<8x64xbf16>
    %c0_121 = arith.constant 0 : index
    %c0_122 = arith.constant 0 : index
    %284 = vector.load %arg6[%c0_121, %c0_122] : memref<64x256xbf16, #tpu.memory_space<vmem>>, vector<64x256xbf16>
    %cst_123 = arith.constant dense<0.000000e+00> : vector<8x256xf32>
    %285 = tpu.matmul %283, %284, %cst_123 {dimension_numbers = #tpu.dot_dimension_numbers<[1], [0], [0], [1], [0, 0, 1, 1], [], []>} : vector<8x64xbf16>, vector<64x256xbf16>, vector<8x256xf32> -> vector<8x256xf32>
    %286 = arith.addf %282, %285 : vector<8x256xf32>
    %287 = math.tanh %286 : vector<8x256xf32>
    %288 = vector.extract_strided_slice %287 {offsets = [0, 0], sizes = [8, 64], strides = [1, 1]} : vector<8x256xf32> to vector<8x64xf32>
    %cst_124 = arith.constant 1.000000e+00 : f32
    %289 = vector.broadcast %cst_124 : f32 to vector<8x64xf32>
    %290 = arith.addf %288, %289 : vector<8x64xf32>
    %cst_125 = arith.constant 5.000000e-01 : f32
    %291 = vector.broadcast %cst_125 : f32 to vector<8x64xf32>
    %292 = arith.mulf %291, %290 : vector<8x64xf32>
    %293 = vector.extract_strided_slice %287 {offsets = [0, 64], sizes = [8, 64], strides = [1, 1]} : vector<8x256xf32> to vector<8x64xf32>
    %cst_126 = arith.constant 1.000000e+00 : f32
    %294 = vector.broadcast %cst_126 : f32 to vector<8x64xf32>
    %295 = arith.addf %293, %294 : vector<8x64xf32>
    %cst_127 = arith.constant 5.000000e-01 : f32
    %296 = vector.broadcast %cst_127 : f32 to vector<8x64xf32>
    %297 = arith.mulf %296, %295 : vector<8x64xf32>
    %298 = vector.extract_strided_slice %287 {offsets = [0, 128], sizes = [8, 64], strides = [1, 1]} : vector<8x256xf32> to vector<8x64xf32>
    %299 = vector.extract_strided_slice %287 {offsets = [0, 192], sizes = [8, 64], strides = [1, 1]} : vector<8x256xf32> to vector<8x64xf32>
    %cst_128 = arith.constant 1.000000e+00 : f32
    %300 = vector.broadcast %cst_128 : f32 to vector<8x64xf32>
    %301 = arith.addf %299, %300 : vector<8x64xf32>
    %cst_129 = arith.constant 5.000000e-01 : f32
    %302 = vector.broadcast %cst_129 : f32 to vector<8x64xf32>
    %303 = arith.mulf %302, %301 : vector<8x64xf32>
    %304 = arith.mulf %297, %252 : vector<8x64xf32>
    %305 = arith.mulf %292, %298 : vector<8x64xf32>
    %306 = arith.addf %304, %305 : vector<8x64xf32>
    %307 = math.tanh %306 : vector<8x64xf32>
    %308 = arith.mulf %303, %307 : vector<8x64xf32>
    %309 = tpu.concatenate %308, %281 in 1 : vector<8x64xf32>, vector<8x64xf32> -> vector<8x128xf32>
    %310 = arith.truncf %309 : vector<8x128xf32> to vector<8x128xbf16>
    %c0_130 = arith.constant 0 : index
    %c0_131 = arith.constant 0 : index
    %311 = vector.load %arg8[%c0_130, %c0_131] : memref<128x256xbf16, #tpu.memory_space<vmem>>, vector<128x256xbf16>
    %cst_132 = arith.constant dense<0.000000e+00> : vector<8x256xf32>
    %312 = tpu.matmul %310, %311, %cst_132 {dimension_numbers = #tpu.dot_dimension_numbers<[1], [0], [0], [1], [0, 0, 1, 1], [], []>} : vector<8x128xbf16>, vector<128x256xbf16>, vector<8x256xf32> -> vector<8x256xf32>
    %313 = arith.addf %64, %312 : vector<8x256xf32>
    %314 = math.tanh %313 : vector<8x256xf32>
    %315 = vector.extract_strided_slice %314 {offsets = [0, 0], sizes = [8, 64], strides = [1, 1]} : vector<8x256xf32> to vector<8x64xf32>
    %cst_133 = arith.constant 1.000000e+00 : f32
    %316 = vector.broadcast %cst_133 : f32 to vector<8x64xf32>
    %317 = arith.addf %315, %316 : vector<8x64xf32>
    %cst_134 = arith.constant 5.000000e-01 : f32
    %318 = vector.broadcast %cst_134 : f32 to vector<8x64xf32>
    %319 = arith.mulf %318, %317 : vector<8x64xf32>
    %320 = vector.extract_strided_slice %314 {offsets = [0, 64], sizes = [8, 64], strides = [1, 1]} : vector<8x256xf32> to vector<8x64xf32>
    %cst_135 = arith.constant 1.000000e+00 : f32
    %321 = vector.broadcast %cst_135 : f32 to vector<8x64xf32>
    %322 = arith.addf %320, %321 : vector<8x64xf32>
    %cst_136 = arith.constant 5.000000e-01 : f32
    %323 = vector.broadcast %cst_136 : f32 to vector<8x64xf32>
    %324 = arith.mulf %323, %322 : vector<8x64xf32>
    %325 = vector.extract_strided_slice %314 {offsets = [0, 128], sizes = [8, 64], strides = [1, 1]} : vector<8x256xf32> to vector<8x64xf32>
    %326 = vector.extract_strided_slice %314 {offsets = [0, 192], sizes = [8, 64], strides = [1, 1]} : vector<8x256xf32> to vector<8x64xf32>
    %cst_137 = arith.constant 1.000000e+00 : f32
    %327 = vector.broadcast %cst_137 : f32 to vector<8x64xf32>
    %328 = arith.addf %326, %327 : vector<8x64xf32>
    %cst_138 = arith.constant 5.000000e-01 : f32
    %329 = vector.broadcast %cst_138 : f32 to vector<8x64xf32>
    %330 = arith.mulf %329, %328 : vector<8x64xf32>
    %331 = arith.mulf %324, %279 : vector<8x64xf32>
    %332 = arith.mulf %319, %325 : vector<8x64xf32>
    %333 = arith.addf %331, %332 : vector<8x64xf32>
    %334 = math.tanh %333 : vector<8x64xf32>
    %335 = arith.mulf %330, %334 : vector<8x64xf32>
    %c80 = arith.constant 80 : index
    %c0_139 = arith.constant 0 : index
    %336 = vector.load %arg15[%c80, %c0_139] : memref<128x256xf32, #tpu.memory_space<vmem>>, vector<8x256xf32>
    %337 = arith.truncf %308 : vector<8x64xf32> to vector<8x64xbf16>
    %c0_140 = arith.constant 0 : index
    %c0_141 = arith.constant 0 : index
    %338 = vector.load %arg6[%c0_140, %c0_141] : memref<64x256xbf16, #tpu.memory_space<vmem>>, vector<64x256xbf16>
    %cst_142 = arith.constant dense<0.000000e+00> : vector<8x256xf32>
    %339 = tpu.matmul %337, %338, %cst_142 {dimension_numbers = #tpu.dot_dimension_numbers<[1], [0], [0], [1], [0, 0, 1, 1], [], []>} : vector<8x64xbf16>, vector<64x256xbf16>, vector<8x256xf32> -> vector<8x256xf32>
    %340 = arith.addf %336, %339 : vector<8x256xf32>
    %341 = math.tanh %340 : vector<8x256xf32>
    %342 = vector.extract_strided_slice %341 {offsets = [0, 0], sizes = [8, 64], strides = [1, 1]} : vector<8x256xf32> to vector<8x64xf32>
    %cst_143 = arith.constant 1.000000e+00 : f32
    %343 = vector.broadcast %cst_143 : f32 to vector<8x64xf32>
    %344 = arith.addf %342, %343 : vector<8x64xf32>
    %cst_144 = arith.constant 5.000000e-01 : f32
    %345 = vector.broadcast %cst_144 : f32 to vector<8x64xf32>
    %346 = arith.mulf %345, %344 : vector<8x64xf32>
    %347 = vector.extract_strided_slice %341 {offsets = [0, 64], sizes = [8, 64], strides = [1, 1]} : vector<8x256xf32> to vector<8x64xf32>
    %cst_145 = arith.constant 1.000000e+00 : f32
    %348 = vector.broadcast %cst_145 : f32 to vector<8x64xf32>
    %349 = arith.addf %347, %348 : vector<8x64xf32>
    %cst_146 = arith.constant 5.000000e-01 : f32
    %350 = vector.broadcast %cst_146 : f32 to vector<8x64xf32>
    %351 = arith.mulf %350, %349 : vector<8x64xf32>
    %352 = vector.extract_strided_slice %341 {offsets = [0, 128], sizes = [8, 64], strides = [1, 1]} : vector<8x256xf32> to vector<8x64xf32>
    %353 = vector.extract_strided_slice %341 {offsets = [0, 192], sizes = [8, 64], strides = [1, 1]} : vector<8x256xf32> to vector<8x64xf32>
    %cst_147 = arith.constant 1.000000e+00 : f32
    %354 = vector.broadcast %cst_147 : f32 to vector<8x64xf32>
    %355 = arith.addf %353, %354 : vector<8x64xf32>
    %cst_148 = arith.constant 5.000000e-01 : f32
    %356 = vector.broadcast %cst_148 : f32 to vector<8x64xf32>
    %357 = arith.mulf %356, %355 : vector<8x64xf32>
    %358 = arith.mulf %351, %306 : vector<8x64xf32>
    %359 = arith.mulf %346, %352 : vector<8x64xf32>
    %360 = arith.addf %358, %359 : vector<8x64xf32>
    %361 = math.tanh %360 : vector<8x64xf32>
    %362 = arith.mulf %357, %361 : vector<8x64xf32>
    %363 = tpu.concatenate %362, %335 in 1 : vector<8x64xf32>, vector<8x64xf32> -> vector<8x128xf32>
    %364 = arith.truncf %363 : vector<8x128xf32> to vector<8x128xbf16>
    %c0_149 = arith.constant 0 : index
    %c0_150 = arith.constant 0 : index
    %365 = vector.load %arg8[%c0_149, %c0_150] : memref<128x256xbf16, #tpu.memory_space<vmem>>, vector<128x256xbf16>
    %cst_151 = arith.constant dense<0.000000e+00> : vector<8x256xf32>
    %366 = tpu.matmul %364, %365, %cst_151 {dimension_numbers = #tpu.dot_dimension_numbers<[1], [0], [0], [1], [0, 0, 1, 1], [], []>} : vector<8x128xbf16>, vector<128x256xbf16>, vector<8x256xf32> -> vector<8x256xf32>
    %367 = arith.addf %64, %366 : vector<8x256xf32>
    %368 = math.tanh %367 : vector<8x256xf32>
    %369 = vector.extract_strided_slice %368 {offsets = [0, 0], sizes = [8, 64], strides = [1, 1]} : vector<8x256xf32> to vector<8x64xf32>
    %cst_152 = arith.constant 1.000000e+00 : f32
    %370 = vector.broadcast %cst_152 : f32 to vector<8x64xf32>
    %371 = arith.addf %369, %370 : vector<8x64xf32>
    %cst_153 = arith.constant 5.000000e-01 : f32
    %372 = vector.broadcast %cst_153 : f32 to vector<8x64xf32>
    %373 = arith.mulf %372, %371 : vector<8x64xf32>
    %374 = vector.extract_strided_slice %368 {offsets = [0, 64], sizes = [8, 64], strides = [1, 1]} : vector<8x256xf32> to vector<8x64xf32>
    %cst_154 = arith.constant 1.000000e+00 : f32
    %375 = vector.broadcast %cst_154 : f32 to vector<8x64xf32>
    %376 = arith.addf %374, %375 : vector<8x64xf32>
    %cst_155 = arith.constant 5.000000e-01 : f32
    %377 = vector.broadcast %cst_155 : f32 to vector<8x64xf32>
    %378 = arith.mulf %377, %376 : vector<8x64xf32>
    %379 = vector.extract_strided_slice %368 {offsets = [0, 128], sizes = [8, 64], strides = [1, 1]} : vector<8x256xf32> to vector<8x64xf32>
    %380 = vector.extract_strided_slice %368 {offsets = [0, 192], sizes = [8, 64], strides = [1, 1]} : vector<8x256xf32> to vector<8x64xf32>
    %cst_156 = arith.constant 1.000000e+00 : f32
    %381 = vector.broadcast %cst_156 : f32 to vector<8x64xf32>
    %382 = arith.addf %380, %381 : vector<8x64xf32>
    %cst_157 = arith.constant 5.000000e-01 : f32
    %383 = vector.broadcast %cst_157 : f32 to vector<8x64xf32>
    %384 = arith.mulf %383, %382 : vector<8x64xf32>
    %385 = arith.mulf %378, %333 : vector<8x64xf32>
    %386 = arith.mulf %373, %379 : vector<8x64xf32>
    %387 = arith.addf %385, %386 : vector<8x64xf32>
    %388 = math.tanh %387 : vector<8x64xf32>
    %389 = arith.mulf %384, %388 : vector<8x64xf32>
    %c96 = arith.constant 96 : index
    %c0_158 = arith.constant 0 : index
    %390 = vector.load %arg15[%c96, %c0_158] : memref<128x256xf32, #tpu.memory_space<vmem>>, vector<8x256xf32>
    %391 = arith.truncf %362 : vector<8x64xf32> to vector<8x64xbf16>
    %c0_159 = arith.constant 0 : index
    %c0_160 = arith.constant 0 : index
    %392 = vector.load %arg6[%c0_159, %c0_160] : memref<64x256xbf16, #tpu.memory_space<vmem>>, vector<64x256xbf16>
    %cst_161 = arith.constant dense<0.000000e+00> : vector<8x256xf32>
    %393 = tpu.matmul %391, %392, %cst_161 {dimension_numbers = #tpu.dot_dimension_numbers<[1], [0], [0], [1], [0, 0, 1, 1], [], []>} : vector<8x64xbf16>, vector<64x256xbf16>, vector<8x256xf32> -> vector<8x256xf32>
    %394 = arith.addf %390, %393 : vector<8x256xf32>
    %395 = math.tanh %394 : vector<8x256xf32>
    %396 = vector.extract_strided_slice %395 {offsets = [0, 0], sizes = [8, 64], strides = [1, 1]} : vector<8x256xf32> to vector<8x64xf32>
    %cst_162 = arith.constant 1.000000e+00 : f32
    %397 = vector.broadcast %cst_162 : f32 to vector<8x64xf32>
    %398 = arith.addf %396, %397 : vector<8x64xf32>
    %cst_163 = arith.constant 5.000000e-01 : f32
    %399 = vector.broadcast %cst_163 : f32 to vector<8x64xf32>
    %400 = arith.mulf %399, %398 : vector<8x64xf32>
    %401 = vector.extract_strided_slice %395 {offsets = [0, 64], sizes = [8, 64], strides = [1, 1]} : vector<8x256xf32> to vector<8x64xf32>
    %cst_164 = arith.constant 1.000000e+00 : f32
    %402 = vector.broadcast %cst_164 : f32 to vector<8x64xf32>
    %403 = arith.addf %401, %402 : vector<8x64xf32>
    %cst_165 = arith.constant 5.000000e-01 : f32
    %404 = vector.broadcast %cst_165 : f32 to vector<8x64xf32>
    %405 = arith.mulf %404, %403 : vector<8x64xf32>
    %406 = vector.extract_strided_slice %395 {offsets = [0, 128], sizes = [8, 64], strides = [1, 1]} : vector<8x256xf32> to vector<8x64xf32>
    %407 = vector.extract_strided_slice %395 {offsets = [0, 192], sizes = [8, 64], strides = [1, 1]} : vector<8x256xf32> to vector<8x64xf32>
    %cst_166 = arith.constant 1.000000e+00 : f32
    %408 = vector.broadcast %cst_166 : f32 to vector<8x64xf32>
    %409 = arith.addf %407, %408 : vector<8x64xf32>
    %cst_167 = arith.constant 5.000000e-01 : f32
    %410 = vector.broadcast %cst_167 : f32 to vector<8x64xf32>
    %411 = arith.mulf %410, %409 : vector<8x64xf32>
    %412 = arith.mulf %405, %360 : vector<8x64xf32>
    %413 = arith.mulf %400, %406 : vector<8x64xf32>
    %414 = arith.addf %412, %413 : vector<8x64xf32>
    %415 = math.tanh %414 : vector<8x64xf32>
    %416 = arith.mulf %411, %415 : vector<8x64xf32>
    %417 = tpu.concatenate %416, %389 in 1 : vector<8x64xf32>, vector<8x64xf32> -> vector<8x128xf32>
    %418 = arith.truncf %417 : vector<8x128xf32> to vector<8x128xbf16>
    %c0_168 = arith.constant 0 : index
    %c0_169 = arith.constant 0 : index
    %419 = vector.load %arg8[%c0_168, %c0_169] : memref<128x256xbf16, #tpu.memory_space<vmem>>, vector<128x256xbf16>
    %cst_170 = arith.constant dense<0.000000e+00> : vector<8x256xf32>
    %420 = tpu.matmul %418, %419, %cst_170 {dimension_numbers = #tpu.dot_dimension_numbers<[1], [0], [0], [1], [0, 0, 1, 1], [], []>} : vector<8x128xbf16>, vector<128x256xbf16>, vector<8x256xf32> -> vector<8x256xf32>
    %421 = arith.addf %64, %420 : vector<8x256xf32>
    %422 = math.tanh %421 : vector<8x256xf32>
    %423 = vector.extract_strided_slice %422 {offsets = [0, 0], sizes = [8, 64], strides = [1, 1]} : vector<8x256xf32> to vector<8x64xf32>
    %cst_171 = arith.constant 1.000000e+00 : f32
    %424 = vector.broadcast %cst_171 : f32 to vector<8x64xf32>
    %425 = arith.addf %423, %424 : vector<8x64xf32>
    %cst_172 = arith.constant 5.000000e-01 : f32
    %426 = vector.broadcast %cst_172 : f32 to vector<8x64xf32>
    %427 = arith.mulf %426, %425 : vector<8x64xf32>
    %428 = vector.extract_strided_slice %422 {offsets = [0, 64], sizes = [8, 64], strides = [1, 1]} : vector<8x256xf32> to vector<8x64xf32>
    %cst_173 = arith.constant 1.000000e+00 : f32
    %429 = vector.broadcast %cst_173 : f32 to vector<8x64xf32>
    %430 = arith.addf %428, %429 : vector<8x64xf32>
    %cst_174 = arith.constant 5.000000e-01 : f32
    %431 = vector.broadcast %cst_174 : f32 to vector<8x64xf32>
    %432 = arith.mulf %431, %430 : vector<8x64xf32>
    %433 = vector.extract_strided_slice %422 {offsets = [0, 128], sizes = [8, 64], strides = [1, 1]} : vector<8x256xf32> to vector<8x64xf32>
    %434 = vector.extract_strided_slice %422 {offsets = [0, 192], sizes = [8, 64], strides = [1, 1]} : vector<8x256xf32> to vector<8x64xf32>
    %cst_175 = arith.constant 1.000000e+00 : f32
    %435 = vector.broadcast %cst_175 : f32 to vector<8x64xf32>
    %436 = arith.addf %434, %435 : vector<8x64xf32>
    %cst_176 = arith.constant 5.000000e-01 : f32
    %437 = vector.broadcast %cst_176 : f32 to vector<8x64xf32>
    %438 = arith.mulf %437, %436 : vector<8x64xf32>
    %439 = arith.mulf %432, %387 : vector<8x64xf32>
    %440 = arith.mulf %427, %433 : vector<8x64xf32>
    %441 = arith.addf %439, %440 : vector<8x64xf32>
    %442 = math.tanh %441 : vector<8x64xf32>
    %443 = arith.mulf %438, %442 : vector<8x64xf32>
    %c112 = arith.constant 112 : index
    %c0_177 = arith.constant 0 : index
    %444 = vector.load %arg15[%c112, %c0_177] : memref<128x256xf32, #tpu.memory_space<vmem>>, vector<8x256xf32>
    %445 = arith.truncf %416 : vector<8x64xf32> to vector<8x64xbf16>
    %c0_178 = arith.constant 0 : index
    %c0_179 = arith.constant 0 : index
    %446 = vector.load %arg6[%c0_178, %c0_179] : memref<64x256xbf16, #tpu.memory_space<vmem>>, vector<64x256xbf16>
    %cst_180 = arith.constant dense<0.000000e+00> : vector<8x256xf32>
    %447 = tpu.matmul %445, %446, %cst_180 {dimension_numbers = #tpu.dot_dimension_numbers<[1], [0], [0], [1], [0, 0, 1, 1], [], []>} : vector<8x64xbf16>, vector<64x256xbf16>, vector<8x256xf32> -> vector<8x256xf32>
    %448 = arith.addf %444, %447 : vector<8x256xf32>
    %449 = math.tanh %448 : vector<8x256xf32>
    %450 = vector.extract_strided_slice %449 {offsets = [0, 0], sizes = [8, 64], strides = [1, 1]} : vector<8x256xf32> to vector<8x64xf32>
    %cst_181 = arith.constant 1.000000e+00 : f32
    %451 = vector.broadcast %cst_181 : f32 to vector<8x64xf32>
    %452 = arith.addf %450, %451 : vector<8x64xf32>
    %cst_182 = arith.constant 5.000000e-01 : f32
    %453 = vector.broadcast %cst_182 : f32 to vector<8x64xf32>
    %454 = arith.mulf %453, %452 : vector<8x64xf32>
    %455 = vector.extract_strided_slice %449 {offsets = [0, 64], sizes = [8, 64], strides = [1, 1]} : vector<8x256xf32> to vector<8x64xf32>
    %cst_183 = arith.constant 1.000000e+00 : f32
    %456 = vector.broadcast %cst_183 : f32 to vector<8x64xf32>
    %457 = arith.addf %455, %456 : vector<8x64xf32>
    %cst_184 = arith.constant 5.000000e-01 : f32
    %458 = vector.broadcast %cst_184 : f32 to vector<8x64xf32>
    %459 = arith.mulf %458, %457 : vector<8x64xf32>
    %460 = vector.extract_strided_slice %449 {offsets = [0, 128], sizes = [8, 64], strides = [1, 1]} : vector<8x256xf32> to vector<8x64xf32>
    %461 = vector.extract_strided_slice %449 {offsets = [0, 192], sizes = [8, 64], strides = [1, 1]} : vector<8x256xf32> to vector<8x64xf32>
    %cst_185 = arith.constant 1.000000e+00 : f32
    %462 = vector.broadcast %cst_185 : f32 to vector<8x64xf32>
    %463 = arith.addf %461, %462 : vector<8x64xf32>
    %cst_186 = arith.constant 5.000000e-01 : f32
    %464 = vector.broadcast %cst_186 : f32 to vector<8x64xf32>
    %465 = arith.mulf %464, %463 : vector<8x64xf32>
    %466 = arith.mulf %459, %414 : vector<8x64xf32>
    %467 = arith.mulf %454, %460 : vector<8x64xf32>
    %468 = arith.addf %466, %467 : vector<8x64xf32>
    %469 = math.tanh %468 : vector<8x64xf32>
    %470 = arith.mulf %465, %469 : vector<8x64xf32>
    %471 = tpu.concatenate %470, %443 in 1 : vector<8x64xf32>, vector<8x64xf32> -> vector<8x128xf32>
    %472 = arith.truncf %471 : vector<8x128xf32> to vector<8x128xbf16>
    %c0_187 = arith.constant 0 : index
    %c0_188 = arith.constant 0 : index
    %473 = vector.load %arg8[%c0_187, %c0_188] : memref<128x256xbf16, #tpu.memory_space<vmem>>, vector<128x256xbf16>
    %cst_189 = arith.constant dense<0.000000e+00> : vector<8x256xf32>
    %474 = tpu.matmul %472, %473, %cst_189 {dimension_numbers = #tpu.dot_dimension_numbers<[1], [0], [0], [1], [0, 0, 1, 1], [], []>} : vector<8x128xbf16>, vector<128x256xbf16>, vector<8x256xf32> -> vector<8x256xf32>
    %475 = arith.addf %64, %474 : vector<8x256xf32>
    %476 = math.tanh %475 : vector<8x256xf32>
    %477 = vector.extract_strided_slice %476 {offsets = [0, 0], sizes = [8, 64], strides = [1, 1]} : vector<8x256xf32> to vector<8x64xf32>
    %cst_190 = arith.constant 1.000000e+00 : f32
    %478 = vector.broadcast %cst_190 : f32 to vector<8x64xf32>
    %479 = arith.addf %477, %478 : vector<8x64xf32>
    %cst_191 = arith.constant 5.000000e-01 : f32
    %480 = vector.broadcast %cst_191 : f32 to vector<8x64xf32>
    %481 = arith.mulf %480, %479 : vector<8x64xf32>
    %482 = vector.extract_strided_slice %476 {offsets = [0, 64], sizes = [8, 64], strides = [1, 1]} : vector<8x256xf32> to vector<8x64xf32>
    %cst_192 = arith.constant 1.000000e+00 : f32
    %483 = vector.broadcast %cst_192 : f32 to vector<8x64xf32>
    %484 = arith.addf %482, %483 : vector<8x64xf32>
    %cst_193 = arith.constant 5.000000e-01 : f32
    %485 = vector.broadcast %cst_193 : f32 to vector<8x64xf32>
    %486 = arith.mulf %485, %484 : vector<8x64xf32>
    %487 = vector.extract_strided_slice %476 {offsets = [0, 128], sizes = [8, 64], strides = [1, 1]} : vector<8x256xf32> to vector<8x64xf32>
    %488 = vector.extract_strided_slice %476 {offsets = [0, 192], sizes = [8, 64], strides = [1, 1]} : vector<8x256xf32> to vector<8x64xf32>
    %cst_194 = arith.constant 1.000000e+00 : f32
    %489 = vector.broadcast %cst_194 : f32 to vector<8x64xf32>
    %490 = arith.addf %488, %489 : vector<8x64xf32>
    %cst_195 = arith.constant 5.000000e-01 : f32
    %491 = vector.broadcast %cst_195 : f32 to vector<8x64xf32>
    %492 = arith.mulf %491, %490 : vector<8x64xf32>
    %493 = arith.mulf %486, %441 : vector<8x64xf32>
    %494 = arith.mulf %481, %487 : vector<8x64xf32>
    %495 = arith.addf %493, %494 : vector<8x64xf32>
    %496 = math.tanh %495 : vector<8x64xf32>
    %497 = arith.mulf %492, %496 : vector<8x64xf32>
    %498 = arith.truncf %497 : vector<8x64xf32> to vector<8x64xbf16>
    %c0_196 = arith.constant 0 : index
    %c0_197 = arith.constant 0 : index
    %499 = vector.load %arg10[%c0_196, %c0_197] : memref<64x32xbf16, #tpu.memory_space<vmem>>, vector<64x32xbf16>
    %cst_198 = arith.constant dense<0.000000e+00> : vector<8x32xf32>
    %500 = tpu.matmul %498, %499, %cst_198 {dimension_numbers = #tpu.dot_dimension_numbers<[1], [0], [0], [1], [0, 0, 1, 1], [], []>} : vector<8x64xbf16>, vector<64x32xbf16>, vector<8x32xf32> -> vector<8x32xf32>
    %c0_199 = arith.constant 0 : index
    %c0_200 = arith.constant 0 : index
    %501 = vector.load %arg11[%c0_199, %c0_200] : memref<1x32xf32, #tpu.memory_space<vmem>>, vector<1x32xf32>
    %502 = vector.broadcast %501 : vector<1x32xf32> to vector<8x32xf32>
    %503 = arith.addf %500, %502 : vector<8x32xf32>
    %cst_201 = arith.constant 0.000000e+00 : f32
    %504 = vector.broadcast %cst_201 : f32 to vector<8x32xf32>
    %505 = arith.maximumf %503, %504 : vector<8x32xf32>
    %c0_202 = arith.constant 0 : index
    %c0_203 = arith.constant 0 : index
    %506 = vector.load %arg12[%c0_202, %c0_203] : memref<1x32xf32, #tpu.memory_space<vmem>>, vector<1x32xf32>
    %507 = vector.broadcast %506 : vector<1x32xf32> to vector<8x32xf32>
    %508 = arith.mulf %505, %507 : vector<8x32xf32>
    %cst_204 = arith.constant dense<0.000000e+00> : vector<8xf32>
    %509 = vector.multi_reduction <add>, %508, %cst_204 [1] : vector<8x32xf32> to vector<8xf32>
    %510 = vector.shape_cast %509 : vector<8xf32> to vector<8x1xf32>
    %c0_205 = arith.constant 0 : index
    %c0_206 = arith.constant 0 : index
    %511 = vector.load %arg13[%c0_205, %c0_206] : memref<1x1xf32, #tpu.memory_space<vmem>>, vector<1x1xf32>
    %512 = vector.broadcast %511 : vector<1x1xf32> to vector<8x1xf32>
    %513 = arith.addf %510, %512 : vector<8x1xf32>
    %c0_207 = arith.constant 0 : index
    %c0_208 = arith.constant 0 : index
    %514 = vector.load %arg14[%c0_207, %c0_208] : memref<8x1xf32, #tpu.memory_space<vmem>>, vector<8x1xf32>
    tpu.vector_store %arg14[%c0_207, %c0_208], %513 {strides = array<i32>} : memref<8x1xf32, #tpu.memory_space<vmem>>, vector<8x1xf32>,
    return
  }
}

</mosaic_0001>

<llo_original>
// kernel: cnn_lstm_forward.1
$region0: #{cnn_lstm_forward.1}
  #allocation0 [shape = 'u32[]', space=smem, size = 0x4, offset = 0x4, fixed_abs, tag = 'smem constant byte address 0x4 - core index']
  #allocation1 [shape = 'u32[144,128]{1,0:T(1,128)}', space=vmem, size = 0x12000, scoped, tag = 'internal scratch']
  #allocation2 [shape = 'f32[128,256]{1,0:T(8,128)}', space=vmem, size = 0x20000, scoped, tag = 'scratch operand']
  #allocation3 [shape = 'f32[1,1]{1,0:T(1,128)S(1)}', space=vmem, size = 0x200, scoped, tag = 'scoped memory for cnn_lstm_forward.1']
  %s0 = inlined_call_operand.vmem [shape: f32[128,8], index: 0, kind: input, shape index: {}]
  %s1 = inlined_call_operand.vmem [shape: bf16[3,8,16], index: 1, kind: input, shape index: {}]
  %s2 = inlined_call_operand.vmem [shape: f32[1,16], index: 2, kind: input, shape index: {}]
  %s3 = inlined_call_operand.vmem [shape: bf16[3,16,8], index: 3, kind: input, shape index: {}]
  %s4 = inlined_call_operand.vmem [shape: f32[1,8], index: 4, kind: input, shape index: {}]
  %s5 = inlined_call_operand.vmem [shape: bf16[8,256], index: 5, kind: input, shape index: {}]
  %s6 = inlined_call_operand.vmem [shape: bf16[64,256], index: 6, kind: input, shape index: {}]
  %s7 = inlined_call_operand.vmem [shape: f32[1,256], index: 7, kind: input, shape index: {}]
  %s8 = inlined_call_operand.vmem [shape: bf16[128,256], index: 8, kind: input, shape index: {}]
  %s9 = inlined_call_operand.vmem [shape: f32[1,256], index: 9, kind: input, shape index: {}]
  %s10 = inlined_call_operand.vmem [shape: bf16[64,32], index: 10, kind: input, shape index: {}]
  %s11 = inlined_call_operand.vmem [shape: f32[1,32], index: 11, kind: input, shape index: {}]
  %s12 = inlined_call_operand.vmem [shape: f32[1,32], index: 12, kind: input, shape index: {}]
  %s13 = inlined_call_operand.<no memory space> [shape: f32[1,1], index: 13, kind: input, shape index: {}]
  %s14 = inlined_call_operand.vmem [shape: f32[8,1], index: 14, kind: output, shape index: {}]
  %s15 = sld [smem:[#allocation0]]
  $region66: #{cnn_lstm_forward.1} parent=0
    _
  %s17 = ssub.s32 1, %s15
  %s18 = scalar_select 0, %s17, %s15
  %v19 = vstv %s13
  %20 = vst [vmem:[#allocation3] sm:$0x1] %v19
  // Predicated region
  $region2: #{cnn_lstm_forward.1} parent=0 // pred_check
    _
  $region3: #{cnn_lstm_forward.1} parent=0 // pred_check_branch
    %22 = sbr.rel (0) target = $region5
  $region4: #{cnn_lstm_forward.1} parent=0 // pred_region
    _
  $region5: #{cnn_lstm_forward.1} parent=0 // pred_fallthru
    _
  // Predicated region
  $region6: #{cnn_lstm_forward.1} parent=0 // pred_check
    _
  $region7: #{cnn_lstm_forward.1} parent=0 // pred_check_branch
    %24 = sbr.rel (0) target = $region9
  $region8: #{cnn_lstm_forward.1} parent=0 // pred_region
    _
  $region9: #{cnn_lstm_forward.1} parent=0 // pred_fallthru
    _
  // Predicated region
  $region10: #{cnn_lstm_forward.1} parent=0 // pred_check
    _
  $region11: #{cnn_lstm_forward.1} parent=0 // pred_check_branch
    %26 = sbr.rel (0) target = $region13
  $region12: #{cnn_lstm_forward.1} parent=0 // pred_region
    _
  $region13: #{cnn_lstm_forward.1} parent=0 // pred_fallthru
    _
  // Predicated region
  $region14: #{cnn_lstm_forward.1} parent=0 // pred_check
    _
  $region15: #{cnn_lstm_forward.1} parent=0 // pred_check_branch
    %28 = sbr.rel (0) target = $region17
  $region16: #{cnn_lstm_forward.1} parent=0 // pred_region
    _
  $region17: #{cnn_lstm_forward.1} parent=0 // pred_fallthru
    _
  // Predicated region
  $region18: #{cnn_lstm_forward.1} parent=0 // pred_check
    _
  $region19: #{cnn_lstm_forward.1} parent=0 // pred_check_branch
    %30 = sbr.rel (0) target = $region21
  $region20: #{cnn_lstm_forward.1} parent=0 // pred_region
    _
  $region21: #{cnn_lstm_forward.1} parent=0 // pred_fallthru
    _
  // Predicated region
  $region22: #{cnn_lstm_forward.1} parent=0 // pred_check
    _
  $region23: #{cnn_lstm_forward.1} parent=0 // pred_check_branch
    %32 = sbr.rel (0) target = $region25
  $region24: #{cnn_lstm_forward.1} parent=0 // pred_region
    _
  $region25: #{cnn_lstm_forward.1} parent=0 // pred_fallthru
    _
  // Predicated region
  $region26: #{cnn_lstm_forward.1} parent=0 // pred_check
    _
  $region27: #{cnn_lstm_forward.1} parent=0 // pred_check_branch
    %34 = sbr.rel (0) target = $region29
  $region28: #{cnn_lstm_forward.1} parent=0 // pred_region
    _
  $region29: #{cnn_lstm_forward.1} parent=0 // pred_fallthru
    _
  // Predicated region
  $region30: #{cnn_lstm_forward.1} parent=0 // pred_check
    _
  $region31: #{cnn_lstm_forward.1} parent=0 // pred_check_branch
    %36 = sbr.rel (0) target = $region33
  $region32: #{cnn_lstm_forward.1} parent=0 // pred_region
    _
  $region33: #{cnn_lstm_forward.1} parent=0 // pred_fallthru
    _
  // Predicated region
  $region34: #{cnn_lstm_forward.1} parent=0 // pred_check
    _
  $region35: #{cnn_lstm_forward.1} parent=0 // pred_check_branch
    %38 = sbr.rel (0) target = $region37
  $region36: #{cnn_lstm_forward.1} parent=0 // pred_region
    _
  $region37: #{cnn_lstm_forward.1} parent=0 // pred_fallthru
    _
  // Predicated region
  $region38: #{cnn_lstm_forward.1} parent=0 // pred_check
    _
  $region39: #{cnn_lstm_forward.1} parent=0 // pred_check_branch
    %40 = sbr.rel (0) target = $region41
  $region40: #{cnn_lstm_forward.1} parent=0 // pred_region
    _
  $region41: #{cnn_lstm_forward.1} parent=0 // pred_fallthru
    _
  // Predicated region
  $region42: #{cnn_lstm_forward.1} parent=0 // pred_check
    _
  $region43: #{cnn_lstm_forward.1} parent=0 // pred_check_branch
    %42 = sbr.rel (0) target = $region45
  $region44: #{cnn_lstm_forward.1} parent=0 // pred_region
    _
  $region45: #{cnn_lstm_forward.1} parent=0 // pred_fallthru
    _
  // Predicated region
  $region46: #{cnn_lstm_forward.1} parent=0 // pred_check
    _
  $region47: #{cnn_lstm_forward.1} parent=0 // pred_check_branch
    %44 = sbr.rel (0) target = $region49
  $region48: #{cnn_lstm_forward.1} parent=0 // pred_region
    _
  $region49: #{cnn_lstm_forward.1} parent=0 // pred_fallthru
    _
  // Predicated region
  $region50: #{cnn_lstm_forward.1} parent=0 // pred_check
    _
  $region51: #{cnn_lstm_forward.1} parent=0 // pred_check_branch
    %46 = sbr.rel (0) target = $region53
  $region52: #{cnn_lstm_forward.1} parent=0 // pred_region
    _
  $region53: #{cnn_lstm_forward.1} parent=0 // pred_fallthru
    _
  // Predicated region
  $region54: #{cnn_lstm_forward.1} parent=0 // pred_check
    _
  $region55: #{cnn_lstm_forward.1} parent=0 // pred_check_branch
    %48 = sbr.rel (0) target = $region57
  $region56: #{cnn_lstm_forward.1} parent=0 // pred_region
    _
  $region57: #{cnn_lstm_forward.1} parent=0 // pred_fallthru
    _
  %v50 = vld [vmem:[%s0] sm:$0xff]
  %v51 = vld [vmem:[%s0 + $0x8] sm:$0xff]
  %v52 = vld [vmem:[%s0 + $0x10] sm:$0xff]
  %v53 = vld [vmem:[%s0 + $0x18] sm:$0xff]
  %v54 = vld [vmem:[%s0 + $0x20] sm:$0xff]
  %v55 = vld [vmem:[%s0 + $0x28] sm:$0xff]
  %v56 = vld [vmem:[%s0 + $0x30] sm:$0xff]
  %v57 = vld [vmem:[%s0 + $0x38] sm:$0xff]
  %v58 = vld [vmem:[%s0 + $0x40] sm:$0xff]
  %v59 = vld [vmem:[%s0 + $0x48] sm:$0xff]
  %v60 = vld [vmem:[%s0 + $0x50] sm:$0xff]
  %v61 = vld [vmem:[%s0 + $0x58] sm:$0xff]
  %v62 = vld [vmem:[%s0 + $0x60] sm:$0xff]
  %v63 = vld [vmem:[%s0 + $0x68] sm:$0xff]
  %v64 = vld [vmem:[%s0 + $0x70] sm:$0xff]
  %v65 = vld [vmem:[%s0 + $0x78] sm:$0xff]
  %v66 = vpack.c.bf16 %v50, 0.0
  %v67 = vpack.c.bf16 %v52, %v51
  %v68 = vpack.c.bf16 %v54, %v53
  %v69 = vpack.c.bf16 %v56, %v55
  %v70 = vpack.c.bf16 %v58, %v57
  %v71 = vpack.c.bf16 %v60, %v59
  %v72 = vpack.c.bf16 %v62, %v61
  %v73 = vpack.c.bf16 %v64, %v63
  %v74 = vld [vmem:[%s1] sm:$0xf]
  %v75 = vpack.c.bf16 %v51, %v50
  %v76 = vpack.c.bf16 %v53, %v52
  %v77 = vpack.c.bf16 %v55, %v54
  %v78 = vpack.c.bf16 %v57, %v56
  %v79 = vpack.c.bf16 %v59, %v58
  %v80 = vpack.c.bf16 %v61, %v60
  %v81 = vpack.c.bf16 %v63, %v62
  %v82 = vpack.c.bf16 %v65, %v64
  %s83 = scalar_lea.vmem %s1, 4
  %v84 = vld [vmem:[%s83] sm:$0xf]
  %vm85 = vcmask 64512
  %v87 = vsel %vm85, %v75, 0
  %v90 = vsel %vm85, %v76, 0
  %v93 = vsel %vm85, %v77, 0
  %v96 = vsel %vm85, %v78, 0
  %v99 = vsel %vm85, %v79, 0
  %v102 = vsel %vm85, %v80, 0
  %v105 = vsel %vm85, %v81, 0
  %v108 = vsel %vm85, %v82, 0
  %vm110 = vcmask 1043456
  %v112 = vsel %vm110, %v84, 0
  %114 = vmatprep.subr.bf16.mxu0 0
  %115 = vmatpush1.bf16.msra.mxu0 %v112
  %116 = vmatprep.subr.bf16.mxu0 0
  %117 = vmatpush1.bf16.msra.mxu0 0
  %118 = vmatprep.subr.bf16.mxu0 0
  %119 = vmatpush1.bf16.msra.mxu0 0
  %120 = vmatprep.subr.bf16.mxu0 0
  %121 = vmatpush1.bf16.msra.mxu0 0
  %122 = vmatprep.subr.bf16.mxu0 0
  %123 = vmatpush1.bf16.msra.mxu0 0
  %124 = vmatprep.subr.bf16.mxu0 0
  %125 = vmatpush1.bf16.msra.mxu0 0
  %126 = vmatprep.subr.bf16.mxu0 0
  %127 = vmatpush1.bf16.msra.mxu0 0
  %128 = vmatprep.subr.bf16.mxu0 0
  %129 = vmatpush1.bf16.msra.mxu0 0
  %130 = vmatprep.subr.bf16.mxu0 0
  %131 = vmatpush1.bf16.msra.mxu0 0
  %132 = vmatprep.subr.bf16.mxu0 0
  %133 = vmatpush1.bf16.msra.mxu0 0
  %134 = vmatprep.subr.bf16.mxu0 0
  %135 = vmatpush1.bf16.msra.mxu0 0
  %136 = vmatprep.subr.bf16.mxu0 0
  %137 = vmatpush1.bf16.msra.mxu0 0
  %138 = vmatprep.subr.bf16.mxu0 0
  %139 = vmatpush1.bf16.msra.mxu0 0
  %140 = vmatprep.subr.bf16.mxu0 0
  %141 = vmatpush1.bf16.msra.mxu0 0
  %142 = vmatprep.subr.bf16.mxu0 0
  %143 = vmatpush1.bf16.msra.mxu0 0
  %144 = vmatprep.subr.bf16.mxu0 0
  %145 = vmatpush1.bf16.msra.mxu0 0
  %146 = vmatprep.mubr.bf16.mxu0 0
  %147 = vmatmul.mubr.bf16.gmra.mrb[0].mxu0 %v87
  %v148 = vpop.f32.mrb[0].mxu0
  %v149 = vadd.f32 0.0, %v148
  %v150 = vpop.f32.mrb[0].mxu0
  %v151 = vpop.f32.mrb[0].mxu0
  %v152 = vadd.f32 0.0, %v151
  %v153 = vpop.f32.mrb[0].mxu0
  %154 = vmatprep.mubr.bf16.mxu0 0
  %155 = vmatmul.mubr.bf16.gmra.mrb[0].mxu0 %v90
  %v156 = vpop.f32.mrb[0].mxu0
  %v157 = vadd.f32 0.0, %v156
  %v158 = vpop.f32.mrb[0].mxu0
  %v159 = vpop.f32.mrb[0].mxu0
  %v160 = vadd.f32 0.0, %v159
  %v161 = vpop.f32.mrb[0].mxu0
  %162 = vmatprep.mubr.bf16.mxu0 0
  %163 = vmatmul.mubr.bf16.gmra.mrb[0].mxu0 %v93
  %v164 = vpop.f32.mrb[0].mxu0
  %v165 = vadd.f32 0.0, %v164
  %v166 = vpop.f32.mrb[0].mxu0
  %v167 = vpop.f32.mrb[0].mxu0
  %v168 = vadd.f32 0.0, %v167
  %v169 = vpop.f32.mrb[0].mxu0
  %170 = vmatprep.mubr.bf16.mxu0 0
  %171 = vmatmul.mubr.bf16.gmra.mrb[0].mxu0 %v96
  %v172 = vpop.f32.mrb[0].mxu0
  %v173 = vadd.f32 0.0, %v172
  %v174 = vpop.f32.mrb[0].mxu0
  %v175 = vpop.f32.mrb[0].mxu0
  %v176 = vadd.f32 0.0, %v175
  %v177 = vpop.f32.mrb[0].mxu0
  %178 = vmatprep.mubr.bf16.mxu0 0
  %179 = vmatmul.mubr.bf16.gmra.mrb[0].mxu0 %v99
  %v180 = vpop.f32.mrb[0].mxu0
  %v181 = vadd.f32 0.0, %v180
  %v182 = vpop.f32.mrb[0].mxu0
  %v183 = vpop.f32.mrb[0].mxu0
  %v184 = vadd.f32 0.0, %v183
  %v185 = vpop.f32.mrb[0].mxu0
  %186 = vmatprep.mubr.bf16.mxu0 0
  %187 = vmatmul.mubr.bf16.gmra.mrb[0].mxu0 %v102
  %v188 = vpop.f32.mrb[0].mxu0
  %v189 = vadd.f32 0.0, %v188
  %v190 = vpop.f32.mrb[0].mxu0
  %v191 = vpop.f32.mrb[0].mxu0
  %v192 = vadd.f32 0.0, %v191
  %v193 = vpop.f32.mrb[0].mxu0
  %194 = vmatprep.mubr.bf16.mxu0 0
  %195 = vmatmul.mubr.bf16.gmra.mrb[0].mxu0 %v105
  %v196 = vpop.f32.mrb[0].mxu0
  %v197 = vadd.f32 0.0, %v196
  %v198 = vpop.f32.mrb[0].mxu0
  %v199 = vpop.f32.mrb[0].mxu0
  %v200 = vadd.f32 0.0, %v199
  %v201 = vpop.f32.mrb[0].mxu0
  %202 = vmatprep.mubr.bf16.mxu0 0
  %203 = vmatmul.mubr.bf16.gmra.mrb[0].mxu0 %v108
  %v204 = vpop.f32.mrb[0].mxu0
  %v205 = vadd.f32 0.0, %v204
  %v206 = vpop.f32.mrb[0].mxu0
  %v207 = vpop.f32.mrb[0].mxu0
  %v208 = vadd.f32 0.0, %v207
  %v209 = vpop.f32.mrb[0].mxu0
  %210 = vdwg.mxu0
  %v212 = vsel %vm85, %v66, 0
  %v215 = vsel %vm85, %v67, 0
  %v218 = vsel %vm85, %v68, 0
  %v221 = vsel %vm85, %v69, 0
  %v224 = vsel %vm85, %v70, 0
  %v227 = vsel %vm85, %v71, 0
  %v230 = vsel %vm85, %v72, 0
  %v233 = vsel %vm85, %v73, 0
  %v236 = vsel %vm110, %v74, 0
  %238 = vmatprep.subr.bf16.mxu0 0
  %239 = vmatpush1.bf16.msra.mxu0 %v236
  %240 = vmatprep.subr.bf16.mxu0 0
  %241 = vmatpush1.bf16.msra.mxu0 0
  %242 = vmatprep.subr.bf16.mxu0 0
  %243 = vmatpush1.bf16.msra.mxu0 0
  %244 = vmatprep.subr.bf16.mxu0 0
  %245 = vmatpush1.bf16.msra.mxu0 0
  %246 = vmatprep.subr.bf16.mxu0 0
  %247 = vmatpush1.bf16.msra.mxu0 0
  %248 = vmatprep.subr.bf16.mxu0 0
  %249 = vmatpush1.bf16.msra.mxu0 0
  %250 = vmatprep.subr.bf16.mxu0 0
  %251 = vmatpush1.bf16.msra.mxu0 0
  %252 = vmatprep.subr.bf16.mxu0 0
  %253 = vmatpush1.bf16.msra.mxu0 0
  %254 = vmatprep.subr.bf16.mxu0 0
  %255 = vmatpush1.bf16.msra.mxu0 0
  %256 = vmatprep.subr.bf16.mxu0 0
  %257 = vmatpush1.bf16.msra.mxu0 0
  %258 = vmatprep.subr.bf16.mxu0 0
  %259 = vmatpush1.bf16.msra.mxu0 0
  %260 = vmatprep.subr.bf16.mxu0 0
  %261 = vmatpush1.bf16.msra.mxu0 0
  %262 = vmatprep.subr.bf16.mxu0 0
  %263 = vmatpush1.bf16.msra.mxu0 0
  %264 = vmatprep.subr.bf16.mxu0 0
  %265 = vmatpush1.bf16.msra.mxu0 0
  %266 = vmatprep.subr.bf16.mxu0 0
  %267 = vmatpush1.bf16.msra.mxu0 0
  %268 = vmatprep.subr.bf16.mxu0 0
  %269 = vmatpush1.bf16.msra.mxu0 0
  %270 = vmatprep.mubr.bf16.mxu0 0
  %271 = vmatmul.mubr.bf16.gmra.mrb[0].mxu0 %v212
  %v272 = vpop.f32.mrb[0].mxu0
  %v273 = vadd.f32 %v149, %v272
  %v274 = vpop.f32.mrb[0].mxu0
  %v275 = vpop.f32.mrb[0].mxu0
  %v276 = vadd.f32 %v152, %v275
  %v277 = vpop.f32.mrb[0].mxu0
  %278 = vmatprep.mubr.bf16.mxu0 0
  %279 = vmatmul.mubr.bf16.gmra.mrb[0].mxu0 %v215
  %v280 = vpop.f32.mrb[0].mxu0
  %v281 = vadd.f32 %v157, %v280
  %v282 = vpop.f32.mrb[0].mxu0
  %v283 = vpop.f32.mrb[0].mxu0
  %v284 = vadd.f32 %v160, %v283
  %v285 = vpop.f32.mrb[0].mxu0
  %286 = vmatprep.mubr.bf16.mxu0 0
  %287 = vmatmul.mubr.bf16.gmra.mrb[0].mxu0 %v218
  %v288 = vpop.f32.mrb[0].mxu0
  %v289 = vadd.f32 %v165, %v288
  %v290 = vpop.f32.mrb[0].mxu0
  %v291 = vpop.f32.mrb[0].mxu0
  %v292 = vadd.f32 %v168, %v291
  %v293 = vpop.f32.mrb[0].mxu0
  %294 = vmatprep.mubr.bf16.mxu0 0
  %295 = vmatmul.mubr.bf16.gmra.mrb[0].mxu0 %v221
  %v296 = vpop.f32.mrb[0].mxu0
  %v297 = vadd.f32 %v173, %v296
  %v298 = vpop.f32.mrb[0].mxu0
  %v299 = vpop.f32.mrb[0].mxu0
  %v300 = vadd.f32 %v176, %v299
  %v301 = vpop.f32.mrb[0].mxu0
  %302 = vmatprep.mubr.bf16.mxu0 0
  %303 = vmatmul.mubr.bf16.gmra.mrb[0].mxu0 %v224
  %v304 = vpop.f32.mrb[0].mxu0
  %v305 = vadd.f32 %v181, %v304
  %v306 = vpop.f32.mrb[0].mxu0
  %v307 = vpop.f32.mrb[0].mxu0
  %v308 = vadd.f32 %v184, %v307
  %v309 = vpop.f32.mrb[0].mxu0
  %310 = vmatprep.mubr.bf16.mxu0 0
  %311 = vmatmul.mubr.bf16.gmra.mrb[0].mxu0 %v227
  %v312 = vpop.f32.mrb[0].mxu0
  %v313 = vadd.f32 %v189, %v312
  %v314 = vpop.f32.mrb[0].mxu0
  %v315 = vpop.f32.mrb[0].mxu0
  %v316 = vadd.f32 %v192, %v315
  %v317 = vpop.f32.mrb[0].mxu0
  %318 = vmatprep.mubr.bf16.mxu0 0
  %319 = vmatmul.mubr.bf16.gmra.mrb[0].mxu0 %v230
  %v320 = vpop.f32.mrb[0].mxu0
  %v321 = vadd.f32 %v197, %v320
  %v322 = vpop.f32.mrb[0].mxu0
  %v323 = vpop.f32.mrb[0].mxu0
  %v324 = vadd.f32 %v200, %v323
  %v325 = vpop.f32.mrb[0].mxu0
  %326 = vmatprep.mubr.bf16.mxu0 0
  %327 = vmatmul.mubr.bf16.gmra.mrb[0].mxu0 %v233
  %v328 = vpop.f32.mrb[0].mxu0
  %v329 = vadd.f32 %v205, %v328
  %v330 = vpop.f32.mrb[0].mxu0
  %v331 = vpop.f32.mrb[0].mxu0
  %v332 = vadd.f32 %v208, %v331
  %v333 = vpop.f32.mrb[0].mxu0
  %334 = vdwg.mxu0
  %v335 = vpack.c.bf16 0.0, %v65
  %s336 = scalar_lea.vmem %s1, 8
  %v337 = vld [vmem:[%s336] sm:$0xf]
  %v339 = vsel %vm85, %v335, 0
  %v342 = vsel %vm110, %v337, 0
  %344 = vmatprep.subr.bf16.mxu0 0
  %345 = vmatpush1.bf16.msra.mxu0 %v342
  %346 = vmatprep.subr.bf16.mxu0 0
  %347 = vmatpush1.bf16.msra.mxu0 0
  %348 = vmatprep.subr.bf16.mxu0 0
  %349 = vmatpush1.bf16.msra.mxu0 0
  %350 = vmatprep.subr.bf16.mxu0 0
  %351 = vmatpush1.bf16.msra.mxu0 0
  %352 = vmatprep.subr.bf16.mxu0 0
  %353 = vmatpush1.bf16.msra.mxu0 0
  %354 = vmatprep.subr.bf16.mxu0 0
  %355 = vmatpush1.bf16.msra.mxu0 0
  %356 = vmatprep.subr.bf16.mxu0 0
  %357 = vmatpush1.bf16.msra.mxu0 0
  %358 = vmatprep.subr.bf16.mxu0 0
  %359 = vmatpush1.bf16.msra.mxu0 0
  %360 = vmatprep.subr.bf16.mxu0 0
  %361 = vmatpush1.bf16.msra.mxu0 0
  %362 = vmatprep.subr.bf16.mxu0 0
  %363 = vmatpush1.bf16.msra.mxu0 0
  %364 = vmatprep.subr.bf16.mxu0 0
  %365 = vmatpush1.bf16.msra.mxu0 0
  %366 = vmatprep.subr.bf16.mxu0 0
  %367 = vmatpush1.bf16.msra.mxu0 0
  %368 = vmatprep.subr.bf16.mxu0 0
  %369 = vmatpush1.bf16.msra.mxu0 0
  %370 = vmatprep.subr.bf16.mxu0 0
  %371 = vmatpush1.bf16.msra.mxu0 0
  %372 = vmatprep.subr.bf16.mxu0 0
  %373 = vmatpush1.bf16.msra.mxu0 0
  %374 = vmatprep.subr.bf16.mxu0 0
  %375 = vmatpush1.bf16.msra.mxu0 0
  %376 = vmatprep.mubr.bf16.mxu0 0
  %377 = vmatmul.mubr.bf16.gmra.mrb[0].mxu0 %v215
  %v378 = vpop.f32.mrb[0].mxu0
  %v379 = vadd.f32 0.0, %v378
  %v380 = vpop.f32.mrb[0].mxu0
  %v381 = vpop.f32.mrb[0].mxu0
  %v382 = vadd.f32 0.0, %v381
  %v383 = vpop.f32.mrb[0].mxu0
  %384 = vmatprep.mubr.bf16.mxu0 0
  %385 = vmatmul.mubr.bf16.gmra.mrb[0].mxu0 %v218
  %v386 = vpop.f32.mrb[0].mxu0
  %v387 = vadd.f32 0.0, %v386
  %v388 = vpop.f32.mrb[0].mxu0
  %v389 = vpop.f32.mrb[0].mxu0
  %v390 = vadd.f32 0.0, %v389
  %v391 = vpop.f32.mrb[0].mxu0
  %392 = vmatprep.mubr.bf16.mxu0 0
  %393 = vmatmul.mubr.bf16.gmra.mrb[0].mxu0 %v221
  %v394 = vpop.f32.mrb[0].mxu0
  %v395 = vadd.f32 0.0, %v394
  %v396 = vpop.f32.mrb[0].mxu0
  %v397 = vpop.f32.mrb[0].mxu0
  %v398 = vadd.f32 0.0, %v397
  %v399 = vpop.f32.mrb[0].mxu0
  %400 = vmatprep.mubr.bf16.mxu0 0
  %401 = vmatmul.mubr.bf16.gmra.mrb[0].mxu0 %v224
  %v402 = vpop.f32.mrb[0].mxu0
  %v403 = vadd.f32 0.0, %v402
  %v404 = vpop.f32.mrb[0].mxu0
  %v405 = vpop.f32.mrb[0].mxu0
  %v406 = vadd.f32 0.0, %v405
  %v407 = vpop.f32.mrb[0].mxu0
  %408 = vmatprep.mubr.bf16.mxu0 0
  %409 = vmatmul.mubr.bf16.gmra.mrb[0].mxu0 %v227
  %v410 = vpop.f32.mrb[0].mxu0
  %v411 = vadd.f32 0.0, %v410
  %v412 = vpop.f32.mrb[0].mxu0
  %v413 = vpop.f32.mrb[0].mxu0
  %v414 = vadd.f32 0.0, %v413
  %v415 = vpop.f32.mrb[0].mxu0
  %416 = vmatprep.mubr.bf16.mxu0 0
  %417 = vmatmul.mubr.bf16.gmra.mrb[0].mxu0 %v230
  %v418 = vpop.f32.mrb[0].mxu0
  %v419 = vadd.f32 0.0, %v418
  %v420 = vpop.f32.mrb[0].mxu0
  %v421 = vpop.f32.mrb[0].mxu0
  %v422 = vadd.f32 0.0, %v421
  %v423 = vpop.f32.mrb[0].mxu0
  %424 = vmatprep.mubr.bf16.mxu0 0
  %425 = vmatmul.mubr.bf16.gmra.mrb[0].mxu0 %v233
  %v426 = vpop.f32.mrb[0].mxu0
  %v427 = vadd.f32 0.0, %v426
  %v428 = vpop.f32.mrb[0].mxu0
  %v429 = vpop.f32.mrb[0].mxu0
  %v430 = vadd.f32 0.0, %v429
  %v431 = vpop.f32.mrb[0].mxu0
  %432 = vmatprep.mubr.bf16.mxu0 0
  %433 = vmatmul.mubr.bf16.gmra.mrb[0].mxu0 %v339
  %v434 = vpop.f32.mrb[0].mxu0
  %v435 = vadd.f32 0.0, %v434
  %v436 = vpop.f32.mrb[0].mxu0
  %v437 = vpop.f32.mrb[0].mxu0
  %v438 = vadd.f32 0.0, %v437
  %v439 = vpop.f32.mrb[0].mxu0
  %440 = vdwg.mxu0
  %v441 = vadd.f32 %v273, %v379
  %v442 = vadd.f32 %v276, %v382
  %v443 = vadd.f32 %v281, %v387
  %v444 = vadd.f32 %v284, %v390
  %v445 = vadd.f32 %v289, %v395
  %v446 = vadd.f32 %v292, %v398
  %v447 = vadd.f32 %v297, %v403
  %v448 = vadd.f32 %v300, %v406
  %v449 = vadd.f32 %v305, %v411
  %v450 = vadd.f32 %v308, %v414
  %v451 = vadd.f32 %v313, %v419
  %v452 = vadd.f32 %v316, %v422
  %v453 = vadd.f32 %v321, %v427
  %v454 = vadd.f32 %v324, %v430
  %v455 = vadd.f32 %v329, %v435
  %v456 = vadd.f32 %v332, %v438
  %v457 = vld [vmem:[%s2] sm:$0x1]
  %v459 = vlaneseq
  %v460 = vshrl.u32 %v459, 7
  %v461 = vsub.s32 0, %v460
  %v462 = vrot.slane %v457, %v461
  %v464 = vadd.f32 %v441, %v462
  %v465 = vadd.f32 %v442, %v462
  %v466 = vadd.f32 %v443, %v462
  %v467 = vadd.f32 %v444, %v462
  %v468 = vadd.f32 %v445, %v462
  %v469 = vadd.f32 %v446, %v462
  %v470 = vadd.f32 %v447, %v462
  %v471 = vadd.f32 %v448, %v462
  %v472 = vadd.f32 %v449, %v462
  %v473 = vadd.f32 %v450, %v462
  %v474 = vadd.f32 %v451, %v462
  %v475 = vadd.f32 %v452, %v462
  %v476 = vadd.f32 %v453, %v462
  %v477 = vadd.f32 %v454, %v462
  %v478 = vadd.f32 %v455, %v462
  %v479 = vadd.f32 %v456, %v462
  %v480 = vmax.f32 %v464, 0.0
  %v481 = vmax.f32 %v465, 0.0
  %v482 = vmax.f32 %v466, 0.0
  %v483 = vmax.f32 %v467, 0.0
  %v484 = vmax.f32 %v468, 0.0
  %v485 = vmax.f32 %v469, 0.0
  %v486 = vmax.f32 %v470, 0.0
  %v487 = vmax.f32 %v471, 0.0
  %v488 = vmax.f32 %v472, 0.0
  %v489 = vmax.f32 %v473, 0.0
  %v490 = vmax.f32 %v474, 0.0
  %v491 = vmax.f32 %v475, 0.0
  %v492 = vmax.f32 %v476, 0.0
  %v493 = vmax.f32 %v477, 0.0
  %v494 = vmax.f32 %v478, 0.0
  %v495 = vmax.f32 %v479, 0.0
  %v496 = vpack.c.bf16 %v480, 0.0
  %v497 = vpack.c.bf16 %v482, %v481
  %v498 = vpack.c.bf16 %v484, %v483
  %v499 = vpack.c.bf16 %v486, %v485
  %v500 = vpack.c.bf16 %v488, %v487
  %v501 = vpack.c.bf16 %v490, %v489
  %v502 = vpack.c.bf16 %v492, %v491
  %v503 = vpack.c.bf16 %v494, %v493
  %v504 = vld [vmem:[%s3] sm:$0xf]
  %v505 = vld [vmem:[%s3 + $0x4] sm:$0xf]
  %v506 = vpack.c.bf16 %v481, %v480
  %v507 = vpack.c.bf16 %v483, %v482
  %v508 = vpack.c.bf16 %v485, %v484
  %v509 = vpack.c.bf16 %v487, %v486
  %v510 = vpack.c.bf16 %v489, %v488
  %v511 = vpack.c.bf16 %v491, %v490
  %v512 = vpack.c.bf16 %v493, %v492
  %v513 = vpack.c.bf16 %v495, %v494
  %s514 = scalar_lea.vmem %s3, 8
  %v515 = vld [vmem:[%s514] sm:$0xf]
  %v516 = vld [vmem:[%s514 + $0x4] sm:$0xf]
  %v519 = vunpack.c.l.b16 %v515
  %v520 = vunpack.c.l.b16 %v516
  %v521 = vpack.c.b16 %v520, %v519
  %vm523 = vcmask 130048
  %v525 = vsel %vm523, %v506, 0
  %v528 = vsel %vm523, %v507, 0
  %v531 = vsel %vm523, %v508, 0
  %v534 = vsel %vm523, %v509, 0
  %v537 = vsel %vm523, %v510, 0
  %v540 = vsel %vm523, %v511, 0
  %v543 = vsel %vm523, %v512, 0
  %v546 = vsel %vm523, %v513, 0
  %548 = vmatprep.subr.bf16.mxu0 0
  %549 = vmatpush1.bf16.msra.mxu0 %v521
  %550 = vmatprep.subr.bf16.mxu0 0
  %551 = vmatpush1.bf16.msra.mxu0 0
  %552 = vmatprep.subr.bf16.mxu0 0
  %553 = vmatpush1.bf16.msra.mxu0 0
  %554 = vmatprep.subr.bf16.mxu0 0
  %555 = vmatpush1.bf16.msra.mxu0 0
  %556 = vmatprep.subr.bf16.mxu0 0
  %557 = vmatpush1.bf16.msra.mxu0 0
  %558 = vmatprep.subr.bf16.mxu0 0
  %559 = vmatpush1.bf16.msra.mxu0 0
  %560 = vmatprep.subr.bf16.mxu0 0
  %561 = vmatpush1.bf16.msra.mxu0 0
  %562 = vmatprep.subr.bf16.mxu0 0
  %563 = vmatpush1.bf16.msra.mxu0 0
  %564 = vmatprep.subr.bf16.mxu0 0
  %565 = vmatpush1.bf16.msra.mxu0 0
  %566 = vmatprep.subr.bf16.mxu0 0
  %567 = vmatpush1.bf16.msra.mxu0 0
  %568 = vmatprep.subr.bf16.mxu0 0
  %569 = vmatpush1.bf16.msra.mxu0 0
  %570 = vmatprep.subr.bf16.mxu0 0
  %571 = vmatpush1.bf16.msra.mxu0 0
  %572 = vmatprep.subr.bf16.mxu0 0
  %573 = vmatpush1.bf16.msra.mxu0 0
  %574 = vmatprep.subr.bf16.mxu0 0
  %575 = vmatpush1.bf16.msra.mxu0 0
  %576 = vmatprep.subr.bf16.mxu0 0
  %577 = vmatpush1.bf16.msra.mxu0 0
  %578 = vmatprep.subr.bf16.mxu0 0
  %579 = vmatpush1.bf16.msra.mxu0 0
  %580 = vmatprep.mubr.bf16.mxu0 0
  %581 = vmatmul.mubr.bf16.gmra.mrb[0].mxu0 %v525
  %v582 = vpop.f32.mrb[0].mxu0
  %v583 = vadd.f32 0.0, %v582
  %v584 = vpop.f32.mrb[0].mxu0
  %v585 = vpop.f32.mrb[0].mxu0
  %v586 = vadd.f32 0.0, %v585
  %v587 = vpop.f32.mrb[0].mxu0
  %588 = vmatprep.mubr.bf16.mxu0 0
  %589 = vmatmul.mubr.bf16.gmra.mrb[0].mxu0 %v528
  %v590 = vpop.f32.mrb[0].mxu0
  %v591 = vadd.f32 0.0, %v590
  %v592 = vpop.f32.mrb[0].mxu0
  %v593 = vpop.f32.mrb[0].mxu0
  %v594 = vadd.f32 0.0, %v593
  %v595 = vpop.f32.mrb[0].mxu0
  %596 = vmatprep.mubr.bf16.mxu0 0
  %597 = vmatmul.mubr.bf16.gmra.mrb[0].mxu0 %v531
  %v598 = vpop.f32.mrb[0].mxu0
  %v599 = vadd.f32 0.0, %v598
  %v600 = vpop.f32.mrb[0].mxu0
  %v601 = vpop.f32.mrb[0].mxu0
  %v602 = vadd.f32 0.0, %v601
  %v603 = vpop.f32.mrb[0].mxu0
  %604 = vmatprep.mubr.bf16.mxu0 0
  %605 = vmatmul.mubr.bf16.gmra.mrb[0].mxu0 %v534
  %v606 = vpop.f32.mrb[0].mxu0
  %v607 = vadd.f32 0.0, %v606
  %v608 = vpop.f32.mrb[0].mxu0
  %v609 = vpop.f32.mrb[0].mxu0
  %v610 = vadd.f32 0.0, %v609
  %v611 = vpop.f32.mrb[0].mxu0
  %612 = vmatprep.mubr.bf16.mxu0 0
  %613 = vmatmul.mubr.bf16.gmra.mrb[0].mxu0 %v537
  %v614 = vpop.f32.mrb[0].mxu0
  %v615 = vadd.f32 0.0, %v614
  %v616 = vpop.f32.mrb[0].mxu0
  %v617 = vpop.f32.mrb[0].mxu0
  %v618 = vadd.f32 0.0, %v617
  %v619 = vpop.f32.mrb[0].mxu0
  %620 = vmatprep.mubr.bf16.mxu0 0
  %621 = vmatmul.mubr.bf16.gmra.mrb[0].mxu0 %v540
  %v622 = vpop.f32.mrb[0].mxu0
  %v623 = vadd.f32 0.0, %v622
  %v624 = vpop.f32.mrb[0].mxu0
  %v625 = vpop.f32.mrb[0].mxu0
  %v626 = vadd.f32 0.0, %v625
  %v627 = vpop.f32.mrb[0].mxu0
  %628 = vmatprep.mubr.bf16.mxu0 0
  %629 = vmatmul.mubr.bf16.gmra.mrb[0].mxu0 %v543
  %v630 = vpop.f32.mrb[0].mxu0
  %v631 = vadd.f32 0.0, %v630
  %v632 = vpop.f32.mrb[0].mxu0
  %v633 = vpop.f32.mrb[0].mxu0
  %v634 = vadd.f32 0.0, %v633
  %v635 = vpop.f32.mrb[0].mxu0
  %636 = vmatprep.mubr.bf16.mxu0 0
  %637 = vmatmul.mubr.bf16.gmra.mrb[0].mxu0 %v546
  %v638 = vpop.f32.mrb[0].mxu0
  %v639 = vadd.f32 0.0, %v638
  %v640 = vpop.f32.mrb[0].mxu0
  %v641 = vpop.f32.mrb[0].mxu0
  %v642 = vadd.f32 0.0, %v641
  %v643 = vpop.f32.mrb[0].mxu0
  %644 = vdwg.mxu0
  %v647 = vunpack.c.l.b16 %v504
  %v648 = vunpack.c.l.b16 %v505
  %v649 = vpack.c.b16 %v648, %v647
  %v652 = vsel %vm523, %v496, 0
  %v655 = vsel %vm523, %v497, 0
  %v658 = vsel %vm523, %v498, 0
  %v661 = vsel %vm523, %v499, 0
  %v664 = vsel %vm523, %v500, 0
  %v667 = vsel %vm523, %v501, 0
  %v670 = vsel %vm523, %v502, 0
  %v673 = vsel %vm523, %v503, 0
  %675 = vmatprep.subr.bf16.mxu0 0
  %676 = vmatpush1.bf16.msra.mxu0 %v649
  %677 = vmatprep.subr.bf16.mxu0 0
  %678 = vmatpush1.bf16.msra.mxu0 0
  %679 = vmatprep.subr.bf16.mxu0 0
  %680 = vmatpush1.bf16.msra.mxu0 0
  %681 = vmatprep.subr.bf16.mxu0 0
  %682 = vmatpush1.bf16.msra.mxu0 0
  %683 = vmatprep.subr.bf16.mxu0 0
  %684 = vmatpush1.bf16.msra.mxu0 0
  %685 = vmatprep.subr.bf16.mxu0 0
  %686 = vmatpush1.bf16.msra.mxu0 0
  %687 = vmatprep.subr.bf16.mxu0 0
  %688 = vmatpush1.bf16.msra.mxu0 0
  %689 = vmatprep.subr.bf16.mxu0 0
  %690 = vmatpush1.bf16.msra.mxu0 0
  %691 = vmatprep.subr.bf16.mxu0 0
  %692 = vmatpush1.bf16.msra.mxu0 0
  %693 = vmatprep.subr.bf16.mxu0 0
  %694 = vmatpush1.bf16.msra.mxu0 0
  %695 = vmatprep.subr.bf16.mxu0 0
  %696 = vmatpush1.bf16.msra.mxu0 0
  %697 = vmatprep.subr.bf16.mxu0 0
  %698 = vmatpush1.bf16.msra.mxu0 0
  %699 = vmatprep.subr.bf16.mxu0 0
  %700 = vmatpush1.bf16.msra.mxu0 0
  %701 = vmatprep.subr.bf16.mxu0 0
  %702 = vmatpush1.bf16.msra.mxu0 0
  %703 = vmatprep.subr.bf16.mxu0 0
  %704 = vmatpush1.bf16.msra.mxu0 0
  %705 = vmatprep.subr.bf16.mxu0 0
  %706 = vmatpush1.bf16.msra.mxu0 0
  %707 = vmatprep.mubr.bf16.mxu0 0
  %708 = vmatmul.mubr.bf16.gmra.mrb[0].mxu0 %v652
  %v709 = vpop.f32.mrb[0].mxu0
  %v710 = vadd.f32 %v583, %v709
  %v711 = vpop.f32.mrb[0].mxu0
  %v712 = vpop.f32.mrb[0].mxu0
  %v713 = vadd.f32 %v586, %v712
  %v714 = vpop.f32.mrb[0].mxu0
  %715 = vmatprep.mubr.bf16.mxu0 0
  %716 = vmatmul.mubr.bf16.gmra.mrb[0].mxu0 %v655
  %v717 = vpop.f32.mrb[0].mxu0
  %v718 = vadd.f32 %v591, %v717
  %v719 = vpop.f32.mrb[0].mxu0
  %v720 = vpop.f32.mrb[0].mxu0
  %v721 = vadd.f32 %v594, %v720
  %v722 = vpop.f32.mrb[0].mxu0
  %723 = vmatprep.mubr.bf16.mxu0 0
  %724 = vmatmul.mubr.bf16.gmra.mrb[0].mxu0 %v658
  %v725 = vpop.f32.mrb[0].mxu0
  %v726 = vadd.f32 %v599, %v725
  %v727 = vpop.f32.mrb[0].mxu0
  %v728 = vpop.f32.mrb[0].mxu0
  %v729 = vadd.f32 %v602, %v728
  %v730 = vpop.f32.mrb[0].mxu0
  %731 = vmatprep.mubr.bf16.mxu0 0
  %732 = vmatmul.mubr.bf16.gmra.mrb[0].mxu0 %v661
  %v733 = vpop.f32.mrb[0].mxu0
  %v734 = vadd.f32 %v607, %v733
  %v735 = vpop.f32.mrb[0].mxu0
  %v736 = vpop.f32.mrb[0].mxu0
  %v737 = vadd.f32 %v610, %v736
  %v738 = vpop.f32.mrb[0].mxu0
  %739 = vmatprep.mubr.bf16.mxu0 0
  %740 = vmatmul.mubr.bf16.gmra.mrb[0].mxu0 %v664
  %v741 = vpop.f32.mrb[0].mxu0
  %v742 = vadd.f32 %v615, %v741
  %v743 = vpop.f32.mrb[0].mxu0
  %v744 = vpop.f32.mrb[0].mxu0
  %v745 = vadd.f32 %v618, %v744
  %v746 = vpop.f32.mrb[0].mxu0
  %747 = vmatprep.mubr.bf16.mxu0 0
  %748 = vmatmul.mubr.bf16.gmra.mrb[0].mxu0 %v667
  %v749 = vpop.f32.mrb[0].mxu0
  %v750 = vadd.f32 %v623, %v749
  %v751 = vpop.f32.mrb[0].mxu0
  %v752 = vpop.f32.mrb[0].mxu0
  %v753 = vadd.f32 %v626, %v752
  %v754 = vpop.f32.mrb[0].mxu0
  %755 = vmatprep.mubr.bf16.mxu0 0
  %756 = vmatmul.mubr.bf16.gmra.mrb[0].mxu0 %v670
  %v757 = vpop.f32.mrb[0].mxu0
  %v758 = vadd.f32 %v631, %v757
  %v759 = vpop.f32.mrb[0].mxu0
  %v760 = vpop.f32.mrb[0].mxu0
  %v761 = vadd.f32 %v634, %v760
  %v762 = vpop.f32.mrb[0].mxu0
  %763 = vmatprep.mubr.bf16.mxu0 0
  %764 = vmatmul.mubr.bf16.gmra.mrb[0].mxu0 %v673
  %v765 = vpop.f32.mrb[0].mxu0
  %v766 = vadd.f32 %v639, %v765
  %v767 = vpop.f32.mrb[0].mxu0
  %v768 = vpop.f32.mrb[0].mxu0
  %v769 = vadd.f32 %v642, %v768
  %v770 = vpop.f32.mrb[0].mxu0
  %771 = vdwg.mxu0
  %v772 = vpack.c.bf16 0.0, %v495
  %s773 = scalar_lea.vmem %s3, 16
  %v774 = vld [vmem:[%s773] sm:$0xf]
  %v775 = vld [vmem:[%s773 + $0x4] sm:$0xf]
  %v778 = vunpack.c.l.b16 %v774
  %v779 = vunpack.c.l.b16 %v775
  %v780 = vpack.c.b16 %v779, %v778
  %v783 = vsel %vm523, %v772, 0
  %785 = vmatprep.subr.bf16.mxu0 0
  %786 = vmatpush1.bf16.msra.mxu0 %v780
  %787 = vmatprep.subr.bf16.mxu0 0
  %788 = vmatpush1.bf16.msra.mxu0 0
  %789 = vmatprep.subr.bf16.mxu0 0
  %790 = vmatpush1.bf16.msra.mxu0 0
  %791 = vmatprep.subr.bf16.mxu0 0
  %792 = vmatpush1.bf16.msra.mxu0 0
  %793 = vmatprep.subr.bf16.mxu0 0
  %794 = vmatpush1.bf16.msra.mxu0 0
  %795 = vmatprep.subr.bf16.mxu0 0
  %796 = vmatpush1.bf16.msra.mxu0 0
  %797 = vmatprep.subr.bf16.mxu0 0
  %798 = vmatpush1.bf16.msra.mxu0 0
  %799 = vmatprep.subr.bf16.mxu0 0
  %800 = vmatpush1.bf16.msra.mxu0 0
  %801 = vmatprep.subr.bf16.mxu0 0
  %802 = vmatpush1.bf16.msra.mxu0 0
  %803 = vmatprep.subr.bf16.mxu0 0
  %804 = vmatpush1.bf16.msra.mxu0 0
  %805 = vmatprep.subr.bf16.mxu0 0
  %806 = vmatpush1.bf16.msra.mxu0 0
  %807 = vmatprep.subr.bf16.mxu0 0
  %808 = vmatpush1.bf16.msra.mxu0 0
  %809 = vmatprep.subr.bf16.mxu0 0
  %810 = vmatpush1.bf16.msra.mxu0 0
  %811 = vmatprep.subr.bf16.mxu0 0
  %812 = vmatpush1.bf16.msra.mxu0 0
  %813 = vmatprep.subr.bf16.mxu0 0
  %814 = vmatpush1.bf16.msra.mxu0 0
  %815 = vmatprep.subr.bf16.mxu0 0
  %816 = vmatpush1.bf16.msra.mxu0 0
  %817 = vmatprep.mubr.bf16.mxu0 0
  %818 = vmatmul.mubr.bf16.gmra.mrb[0].mxu0 %v655
  %v819 = vpop.f32.mrb[0].mxu0
  %v820 = vadd.f32 0.0, %v819
  %v821 = vpop.f32.mrb[0].mxu0
  %v822 = vpop.f32.mrb[0].mxu0
  %v823 = vadd.f32 0.0, %v822
  %v824 = vpop.f32.mrb[0].mxu0
  %825 = vmatprep.mubr.bf16.mxu0 0
  %826 = vmatmul.mubr.bf16.gmra.mrb[0].mxu0 %v658
  %v827 = vpop.f32.mrb[0].mxu0
  %v828 = vadd.f32 0.0, %v827
  %v829 = vpop.f32.mrb[0].mxu0
  %v830 = vpop.f32.mrb[0].mxu0
  %v831 = vadd.f32 0.0, %v830
  %v832 = vpop.f32.mrb[0].mxu0
  %833 = vmatprep.mubr.bf16.mxu0 0
  %834 = vmatmul.mubr.bf16.gmra.mrb[0].mxu0 %v661
  %v835 = vpop.f32.mrb[0].mxu0
  %v836 = vadd.f32 0.0, %v835
  %v837 = vpop.f32.mrb[0].mxu0
  %v838 = vpop.f32.mrb[0].mxu0
  %v839 = vadd.f32 0.0, %v838
  %v840 = vpop.f32.mrb[0].mxu0
  %841 = vmatprep.mubr.bf16.mxu0 0
  %842 = vmatmul.mubr.bf16.gmra.mrb[0].mxu0 %v664
  %v843 = vpop.f32.mrb[0].mxu0
  %v844 = vadd.f32 0.0, %v843
  %v845 = vpop.f32.mrb[0].mxu0
  %v846 = vpop.f32.mrb[0].mxu0
  %v847 = vadd.f32 0.0, %v846
  %v848 = vpop.f32.mrb[0].mxu0
  %849 = vmatprep.mubr.bf16.mxu0 0
  %850 = vmatmul.mubr.bf16.gmra.mrb[0].mxu0 %v667
  %v851 = vpop.f32.mrb[0].mxu0
  %v852 = vadd.f32 0.0, %v851
  %v853 = vpop.f32.mrb[0].mxu0
  %v854 = vpop.f32.mrb[0].mxu0
  %v855 = vadd.f32 0.0, %v854
  %v856 = vpop.f32.mrb[0].mxu0
  %857 = vmatprep.mubr.bf16.mxu0 0
  %858 = vmatmul.mubr.bf16.gmra.mrb[0].mxu0 %v670
  %v859 = vpop.f32.mrb[0].mxu0
  %v860 = vadd.f32 0.0, %v859
  %v861 = vpop.f32.mrb[0].mxu0
  %v862 = vpop.f32.mrb[0].mxu0
  %v863 = vadd.f32 0.0, %v862
  %v864 = vpop.f32.mrb[0].mxu0
  %865 = vmatprep.mubr.bf16.mxu0 0
  %866 = vmatmul.mubr.bf16.gmra.mrb[0].mxu0 %v673
  %v867 = vpop.f32.mrb[0].mxu0
  %v868 = vadd.f32 0.0, %v867
  %v869 = vpop.f32.mrb[0].mxu0
  %v870 = vpop.f32.mrb[0].mxu0
  %v871 = vadd.f32 0.0, %v870
  %v872 = vpop.f32.mrb[0].mxu0
  %873 = vmatprep.mubr.bf16.mxu0 0
  %874 = vmatmul.mubr.bf16.gmra.mrb[0].mxu0 %v783
  %v875 = vpop.f32.mrb[0].mxu0
  %v876 = vadd.f32 0.0, %v875
  %v877 = vpop.f32.mrb[0].mxu0
  %v878 = vpop.f32.mrb[0].mxu0
  %v879 = vadd.f32 0.0, %v878
  %v880 = vpop.f32.mrb[0].mxu0
  %881 = vdwg.mxu0
  %v882 = vadd.f32 %v710, %v820
  %v883 = vadd.f32 %v713, %v823
  %v884 = vadd.f32 %v718, %v828
  %v885 = vadd.f32 %v721, %v831
  %v886 = vadd.f32 %v726, %v836
  %v887 = vadd.f32 %v729, %v839
  %v888 = vadd.f32 %v734, %v844
  %v889 = vadd.f32 %v737, %v847
  %v890 = vadd.f32 %v742, %v852
  %v891 = vadd.f32 %v745, %v855
  %v892 = vadd.f32 %v750, %v860
  %v893 = vadd.f32 %v753, %v863
  %v894 = vadd.f32 %v758, %v868
  %v895 = vadd.f32 %v761, %v871
  %v896 = vadd.f32 %v766, %v876
  %v897 = vadd.f32 %v769, %v879
  %v898 = vld [vmem:[%s4] sm:$0x1]
  %v900 = vlaneseq
  %v901 = vshrl.u32 %v900, 7
  %v902 = vsub.s32 0, %v901
  %v903 = vrot.slane %v898, %v902
  %v905 = vadd.f32 %v882, %v903
  %v906 = vadd.f32 %v883, %v903
  %v907 = vadd.f32 %v884, %v903
  %v908 = vadd.f32 %v885, %v903
  %v909 = vadd.f32 %v886, %v903
  %v910 = vadd.f32 %v887, %v903
  %v911 = vadd.f32 %v888, %v903
  %v912 = vadd.f32 %v889, %v903
  %v913 = vadd.f32 %v890, %v903
  %v914 = vadd.f32 %v891, %v903
  %v915 = vadd.f32 %v892, %v903
  %v916 = vadd.f32 %v893, %v903
  %v917 = vadd.f32 %v894, %v903
  %v918 = vadd.f32 %v895, %v903
  %v919 = vadd.f32 %v896, %v903
  %v920 = vadd.f32 %v897, %v903
  %v921 = vmax.f32 %v905, 0.0
  %v922 = vmax.f32 %v906, 0.0
  %v923 = vmax.f32 %v907, 0.0
  %v924 = vmax.f32 %v908, 0.0
  %v925 = vmax.f32 %v909, 0.0
  %v926 = vmax.f32 %v910, 0.0
  %v927 = vmax.f32 %v911, 0.0
  %v928 = vmax.f32 %v912, 0.0
  %v929 = vmax.f32 %v913, 0.0
  %v930 = vmax.f32 %v914, 0.0
  %v931 = vmax.f32 %v915, 0.0
  %v932 = vmax.f32 %v916, 0.0
  %v933 = vmax.f32 %v917, 0.0
  %v934 = vmax.f32 %v918, 0.0
  %v935 = vmax.f32 %v919, 0.0
  %v936 = vmax.f32 %v920, 0.0
  %v937 = vmax.f32 %v921, %v922
  %v938 = vmax.f32 %v922, %v923
  %v939 = vmax.f32 %v923, %v924
  %v940 = vmax.f32 %v924, %v925
  %v941 = vmax.f32 %v925, %v926
  %v942 = vmax.f32 %v926, %v927
  %v943 = vmax.f32 %v927, %v928
  %v944 = vmax.f32 %v928, %v929
  %v945 = vmax.f32 %v929, %v930
  %v946 = vmax.f32 %v930, %v931
  %v947 = vmax.f32 %v931, %v932
  %v948 = vmax.f32 %v932, %v933
  %v949 = vmax.f32 %v933, %v934
  %v950 = vmax.f32 %v934, %v935
  %v951 = vmax.f32 %v935, %v936
  %v952 = vmax.f32 %v936, 0.0
  %v953 = vpack.c.bf16 %v938, %v937
  %v954 = vpack.c.bf16 %v940, %v939
  %v955 = vpack.c.bf16 %v942, %v941
  %v956 = vpack.c.bf16 %v944, %v943
  %v957 = vpack.c.bf16 %v946, %v945
  %v958 = vpack.c.bf16 %v948, %v947
  %v959 = vpack.c.bf16 %v950, %v949
  %v960 = vpack.c.bf16 %v952, %v951
  %v961 = vld [vmem:[%s5] sm:$0xff]
  %v962 = vld [vmem:[%s7] sm:$0x3]
  %v964 = vlaneseq
  %v965 = vshrl.u32 %v964, 7
  %v966 = vsub.s32 0, %v965
  %v967 = vrot.slane %v962, %v966
  %v968 = vlaneseq
  %v969 = vshrl.u32 %v968, 7
  %v970 = vsub.s32 1, %v969
  %v971 = vrot.slane %v962, %v970
  %v975 = vunpack.c.l.b16 %v961
  %v976 = vunpack.c.h.b16 %v961
  %v977 = vpack.c.b16 %v975, %v975
  %v978 = vpack.c.b16 %v976, %v976
  %v980 = vsel %vm85, %v953, 0
  %v983 = vsel %vm85, %v954, 0
  %v986 = vsel %vm85, %v955, 0
  %v989 = vsel %vm85, %v956, 0
  %v992 = vsel %vm85, %v957, 0
  %v995 = vsel %vm85, %v958, 0
  %v998 = vsel %vm85, %v959, 0
  %v1001 = vsel %vm85, %v960, 0
  %v1004 = vsel %vm110, %v977, 0
  %v1007 = vsel %vm110, %v978, 0
  %1009 = vmatprep.subr.bf16.mxu0 %v1007
  %1010 = vmatpush1.bf16.msra.mxu0 %v1004
  %1011 = vmatprep.subr.bf16.mxu0 0
  %1012 = vmatpush1.bf16.msra.mxu0 0
  %1013 = vmatprep.subr.bf16.mxu0 0
  %1014 = vmatpush1.bf16.msra.mxu0 0
  %1015 = vmatprep.subr.bf16.mxu0 0
  %1016 = vmatpush1.bf16.msra.mxu0 0
  %1017 = vmatprep.subr.bf16.mxu0 0
  %1018 = vmatpush1.bf16.msra.mxu0 0
  %1019 = vmatprep.subr.bf16.mxu0 0
  %1020 = vmatpush1.bf16.msra.mxu0 0
  %1021 = vmatprep.subr.bf16.mxu0 0
  %1022 = vmatpush1.bf16.msra.mxu0 0
  %1023 = vmatprep.subr.bf16.mxu0 0
  %1024 = vmatpush1.bf16.msra.mxu0 0
  %1025 = vmatprep.subr.bf16.mxu0 0
  %1026 = vmatpush1.bf16.msra.mxu0 0
  %1027 = vmatprep.subr.bf16.mxu0 0
  %1028 = vmatpush1.bf16.msra.mxu0 0
  %1029 = vmatprep.subr.bf16.mxu0 0
  %1030 = vmatpush1.bf16.msra.mxu0 0
  %1031 = vmatprep.subr.bf16.mxu0 0
  %1032 = vmatpush1.bf16.msra.mxu0 0
  %1033 = vmatprep.subr.bf16.mxu0 0
  %1034 = vmatpush1.bf16.msra.mxu0 0
  %1035 = vmatprep.subr.bf16.mxu0 0
  %1036 = vmatpush1.bf16.msra.mxu0 0
  %1037 = vmatprep.subr.bf16.mxu0 0
  %1038 = vmatpush1.bf16.msra.mxu0 0
  %1039 = vmatprep.subr.bf16.mxu0 0
  %1040 = vmatpush1.bf16.msra.mxu0 0
  %1041 = vmatprep.mubr.bf16.mxu0 0
  %1042 = vmatmul.mubr.bf16.gmra.mrb[0].mxu0 %v980
  %v1043 = vpop.f32.mrb[0].mxu0
  %v1044 = vadd.f32 %v967, %v1043
  %v1045 = vpop.f32.mrb[0].mxu0
  %v1046 = vadd.f32 %v971, %v1045
  %v1047 = vpop.f32.mrb[0].mxu0
  %v1048 = vadd.f32 %v967, %v1047
  %v1049 = vpop.f32.mrb[0].mxu0
  %v1050 = vadd.f32 %v971, %v1049
  %1051 = vmatprep.mubr.bf16.mxu0 0
  %1052 = vmatmul.mubr.bf16.gmra.mrb[0].mxu0 %v983
  %v1053 = vpop.f32.mrb[0].mxu0
  %v1054 = vadd.f32 %v967, %v1053
  %v1055 = vpop.f32.mrb[0].mxu0
  %v1056 = vadd.f32 %v971, %v1055
  %v1057 = vpop.f32.mrb[0].mxu0
  %v1058 = vadd.f32 %v967, %v1057
  %v1059 = vpop.f32.mrb[0].mxu0
  %v1060 = vadd.f32 %v971, %v1059
  %1061 = vmatprep.mubr.bf16.mxu0 0
  %1062 = vmatmul.mubr.bf16.gmra.mrb[0].mxu0 %v986
  %v1063 = vpop.f32.mrb[0].mxu0
  %v1064 = vadd.f32 %v967, %v1063
  %v1065 = vpop.f32.mrb[0].mxu0
  %v1066 = vadd.f32 %v971, %v1065
  %v1067 = vpop.f32.mrb[0].mxu0
  %v1068 = vadd.f32 %v967, %v1067
  %v1069 = vpop.f32.mrb[0].mxu0
  %v1070 = vadd.f32 %v971, %v1069
  %1071 = vmatprep.mubr.bf16.mxu0 0
  %1072 = vmatmul.mubr.bf16.gmra.mrb[0].mxu0 %v989
  %v1073 = vpop.f32.mrb[0].mxu0
  %v1074 = vadd.f32 %v967, %v1073
  %v1075 = vpop.f32.mrb[0].mxu0
  %v1076 = vadd.f32 %v971, %v1075
  %v1077 = vpop.f32.mrb[0].mxu0
  %v1078 = vadd.f32 %v967, %v1077
  %v1079 = vpop.f32.mrb[0].mxu0
  %v1080 = vadd.f32 %v971, %v1079
  %1081 = vmatprep.mubr.bf16.mxu0 0
  %1082 = vmatmul.mubr.bf16.gmra.mrb[0].mxu0 %v992
  %v1083 = vpop.f32.mrb[0].mxu0
  %v1084 = vadd.f32 %v967, %v1083
  %v1085 = vpop.f32.mrb[0].mxu0
  %v1086 = vadd.f32 %v971, %v1085
  %v1087 = vpop.f32.mrb[0].mxu0
  %v1088 = vadd.f32 %v967, %v1087
  %v1089 = vpop.f32.mrb[0].mxu0
  %v1090 = vadd.f32 %v971, %v1089
  %1091 = vmatprep.mubr.bf16.mxu0 0
  %1092 = vmatmul.mubr.bf16.gmra.mrb[0].mxu0 %v995
  %v1093 = vpop.f32.mrb[0].mxu0
  %v1094 = vadd.f32 %v967, %v1093
  %v1095 = vpop.f32.mrb[0].mxu0
  %v1096 = vadd.f32 %v971, %v1095
  %v1097 = vpop.f32.mrb[0].mxu0
  %v1098 = vadd.f32 %v967, %v1097
  %v1099 = vpop.f32.mrb[0].mxu0
  %v1100 = vadd.f32 %v971, %v1099
  %1101 = vmatprep.mubr.bf16.mxu0 0
  %1102 = vmatmul.mubr.bf16.gmra.mrb[0].mxu0 %v998
  %v1103 = vpop.f32.mrb[0].mxu0
  %v1104 = vadd.f32 %v967, %v1103
  %v1105 = vpop.f32.mrb[0].mxu0
  %v1106 = vadd.f32 %v971, %v1105
  %v1107 = vpop.f32.mrb[0].mxu0
  %v1108 = vadd.f32 %v967, %v1107
  %v1109 = vpop.f32.mrb[0].mxu0
  %v1110 = vadd.f32 %v971, %v1109
  %1111 = vmatprep.mubr.bf16.mxu0 0
  %1112 = vmatmul.mubr.bf16.gmra.mrb[0].mxu0 %v1001
  %v1113 = vpop.f32.mrb[0].mxu0
  %v1114 = vadd.f32 %v967, %v1113
  %v1115 = vpop.f32.mrb[0].mxu0
  %v1116 = vadd.f32 %v971, %v1115
  %v1117 = vpop.f32.mrb[0].mxu0
  %v1118 = vadd.f32 %v967, %v1117
  %v1119 = vpop.f32.mrb[0].mxu0
  %v1120 = vadd.f32 %v971, %v1119
  %1121 = vdwg.mxu0
  %1122 = vst [vmem:[#allocation2] sm:$0xff] %v1044
  %1123 = vst [vmem:[#allocation2 + $0x8] sm:$0xff] %v1046
  %1124 = vst [vmem:[#allocation2 + $0x10] sm:$0xff] %v1048
  %1125 = vst [vmem:[#allocation2 + $0x18] sm:$0xff] %v1050
  %1126 = vst [vmem:[#allocation2 + $0x20] sm:$0xff] %v1054
  %1127 = vst [vmem:[#allocation2 + $0x28] sm:$0xff] %v1056
  %1128 = vst [vmem:[#allocation2 + $0x30] sm:$0xff] %v1058
  %1129 = vst [vmem:[#allocation2 + $0x38] sm:$0xff] %v1060
  %1130 = vst [vmem:[#allocation2 + $0x40] sm:$0xff] %v1064
  %1131 = vst [vmem:[#allocation2 + $0x48] sm:$0xff] %v1066
  %1132 = vst [vmem:[#allocation2 + $0x50] sm:$0xff] %v1068
  %1133 = vst [vmem:[#allocation2 + $0x58] sm:$0xff] %v1070
  %1134 = vst [vmem:[#allocation2 + $0x60] sm:$0xff] %v1074
  %1135 = vst [vmem:[#allocation2 + $0x68] sm:$0xff] %v1076
  %1136 = vst [vmem:[#allocation2 + $0x70] sm:$0xff] %v1078
  %1137 = vst [vmem:[#allocation2 + $0x78] sm:$0xff] %v1080
  %1138 = vst [vmem:[#allocation2 + $0x80] sm:$0xff] %v1084
  %1139 = vst [vmem:[#allocation2 + $0x88] sm:$0xff] %v1086
  %1140 = vst [vmem:[#allocation2 + $0x90] sm:$0xff] %v1088
  %1141 = vst [vmem:[#allocation2 + $0x98] sm:$0xff] %v1090
  %1142 = vst [vmem:[#allocation2 + $0xa0] sm:$0xff] %v1094
  %1143 = vst [vmem:[#allocation2 + $0xa8] sm:$0xff] %v1096
  %1144 = vst [vmem:[#allocation2 + $0xb0] sm:$0xff] %v1098
  %1145 = vst [vmem:[#allocation2 + $0xb8] sm:$0xff] %v1100
  %1146 = vst [vmem:[#allocation2 + $0xc0] sm:$0xff] %v1104
  %1147 = vst [vmem:[#allocation2 + $0xc8] sm:$0xff] %v1106
  %1148 = vst [vmem:[#allocation2 + $0xd0] sm:$0xff] %v1108
  %1149 = vst [vmem:[#allocation2 + $0xd8] sm:$0xff] %v1110
  %1150 = vst [vmem:[#allocation2 + $0xe0] sm:$0xff] %v1114
  %1151 = vst [vmem:[#allocation2 + $0xe8] sm:$0xff] %v1116
  %1152 = vst [vmem:[#allocation2 + $0xf0] sm:$0xff] %v1118
  %1153 = vst [vmem:[#allocation2 + $0xf8] sm:$0xff] %v1120
  %v1154 = vld [vmem:[%s9] sm:$0x3]
  %v1156 = vlaneseq
  %v1157 = vshrl.u32 %v1156, 7
  %v1158 = vsub.s32 0, %v1157
  %v1159 = vrot.slane %v1154, %v1158
  %v1160 = vlaneseq
  %v1161 = vshrl.u32 %v1160, 7
  %v1162 = vsub.s32 1, %v1161
  %v1163 = vrot.slane %v1154, %v1162
  %v1166 = vld [vmem:[#allocation2] sm:$0xff]
  %v1167 = vld [vmem:[#allocation2 + $0x8] sm:$0xff]
  %v1168 = vld [vmem:[%s6] sm:$0xff]
  %v1169 = vld [vmem:[%s6 + $0x8] sm:$0xff]
  %v1170 = vld [vmem:[%s6 + $0x10] sm:$0xff]
  %v1171 = vld [vmem:[%s6 + $0x18] sm:$0xff]
  %v1172 = vld [vmem:[%s6 + $0x20] sm:$0xff]
  %v1173 = vld [vmem:[%s6 + $0x28] sm:$0xff]
  %v1174 = vld [vmem:[%s6 + $0x30] sm:$0xff]
  %v1175 = vld [vmem:[%s6 + $0x38] sm:$0xff]
  %v1184 = vunpack.c.l.b16 %v1168
  %v1185 = vunpack.c.h.b16 %v1168
  %v1186 = vunpack.c.l.b16 %v1169
  %v1187 = vunpack.c.h.b16 %v1169
  %v1188 = vunpack.c.l.b16 %v1170
  %v1189 = vunpack.c.h.b16 %v1170
  %v1190 = vunpack.c.l.b16 %v1171
  %v1191 = vunpack.c.h.b16 %v1171
  %v1192 = vunpack.c.l.b16 %v1172
  %v1193 = vunpack.c.h.b16 %v1172
  %v1194 = vunpack.c.l.b16 %v1173
  %v1195 = vunpack.c.h.b16 %v1173
  %v1196 = vunpack.c.l.b16 %v1174
  %v1197 = vunpack.c.h.b16 %v1174
  %v1198 = vunpack.c.l.b16 %v1175
  %v1199 = vunpack.c.h.b16 %v1175
  %v1200 = vpack.c.b16 %v1186, %v1184
  %v1201 = vpack.c.b16 %v1187, %v1185
  %v1202 = vpack.c.b16 %v1190, %v1188
  %v1203 = vpack.c.b16 %v1191, %v1189
  %v1204 = vpack.c.b16 %v1194, %v1192
  %v1205 = vpack.c.b16 %v1195, %v1193
  %v1206 = vpack.c.b16 %v1198, %v1196
  %v1207 = vpack.c.b16 %v1199, %v1197
  %vm1216 = vcmask 523264
  %v1218 = vsel %vm1216, 0, 0
  %1220 = vmatprep.subr.bf16.mxu0 %v1201
  %1221 = vmatpush1.bf16.msra.mxu0 %v1200
  %1222 = vmatprep.subr.bf16.mxu0 %v1203
  %1223 = vmatpush1.bf16.msra.mxu0 %v1202
  %1224 = vmatprep.subr.bf16.mxu0 %v1205
  %1225 = vmatpush1.bf16.msra.mxu0 %v1204
  %1226 = vmatprep.subr.bf16.mxu0 %v1207
  %1227 = vmatpush1.bf16.msra.mxu0 %v1206
  %1228 = vmatprep.subr.bf16.mxu0 0
  %1229 = vmatpush1.bf16.msra.mxu0 0
  %1230 = vmatprep.subr.bf16.mxu0 0
  %1231 = vmatpush1.bf16.msra.mxu0 0
  %1232 = vmatprep.subr.bf16.mxu0 0
  %1233 = vmatpush1.bf16.msra.mxu0 0
  %1234 = vmatprep.subr.bf16.mxu0 0
  %1235 = vmatpush1.bf16.msra.mxu0 0
  %1236 = vmatprep.subr.bf16.mxu0 0
  %1237 = vmatpush1.bf16.msra.mxu0 0
  %1238 = vmatprep.subr.bf16.mxu0 0
  %1239 = vmatpush1.bf16.msra.mxu0 0
  %1240 = vmatprep.subr.bf16.mxu0 0
  %1241 = vmatpush1.bf16.msra.mxu0 0
  %1242 = vmatprep.subr.bf16.mxu0 0
  %1243 = vmatpush1.bf16.msra.mxu0 0
  %1244 = vmatprep.subr.bf16.mxu0 0
  %1245 = vmatpush1.bf16.msra.mxu0 0
  %1246 = vmatprep.subr.bf16.mxu0 0
  %1247 = vmatpush1.bf16.msra.mxu0 0
  %1248 = vmatprep.subr.bf16.mxu0 0
  %1249 = vmatpush1.bf16.msra.mxu0 0
  %1250 = vmatprep.subr.bf16.mxu0 0
  %1251 = vmatpush1.bf16.msra.mxu0 0
  %1252 = vmatprep.mubr.bf16.mxu0 0
  %1253 = vmatmul.mubr.bf16.gmra.mrb[0].mxu0 %v1218
  %v1254 = vpop.f32.mrb[0].mxu0
  %v1255 = vadd.f32 0.0, %v1254
  %v1256 = vpop.f32.mrb[0].mxu0
  %v1257 = vadd.f32 0.0, %v1256
  %v1258 = vpop.f32.mrb[0].mxu0
  %v1259 = vpop.f32.mrb[0].mxu0
  %1260 = vdwg.mxu0
  %v1261 = vadd.f32 %v1166, %v1255
  %v1262 = vadd.f32 %v1167, %v1257
  %v1263 = vtanh.pop %v1261
  %v1264 = vtanh.pop %v1262
  %v1265 = vadd.f32 %v1263, 1.0
  %v1266 = vmul.f32 %v1265, 0.5
  %v1267 = vadd.f32 %v1264, 1.0
  %v1268 = vmul.f32 %v1267, 0.5
  %v1269 = vmul.f32 %v1266, 0.0
  %v1270 = vmul.f32 %v1266, %v1264
  %1272 = vrot.lane.b32.xlu0 %v1270, 64
  %v1273 = vpop.permute.xlu0 %1272
  %v1275 = vadd.f32 %v1269, %v1273
  %v1276 = vtanh.pop %v1275
  %v1277 = vmul.f32 %v1268, %v1276
  %1279 = vrot.lane.b32.xlu0 %v1277, 64
  %v1280 = vpop.permute.xlu0 %1279
  %v1282 = vsel %vm1216, %v1280, 0.0
  %v1283 = vpack.c.bf16 %v1282, %v1282
  %v1284 = vld [vmem:[%s8] sm:$0xff]
  %v1285 = vld [vmem:[%s8 + $0x8] sm:$0xff]
  %v1286 = vld [vmem:[%s8 + $0x10] sm:$0xff]
  %v1287 = vld [vmem:[%s8 + $0x18] sm:$0xff]
  %v1288 = vld [vmem:[%s8 + $0x20] sm:$0xff]
  %v1289 = vld [vmem:[%s8 + $0x28] sm:$0xff]
  %v1290 = vld [vmem:[%s8 + $0x30] sm:$0xff]
  %v1291 = vld [vmem:[%s8 + $0x38] sm:$0xff]
  %v1292 = vld [vmem:[%s8 + $0x40] sm:$0xff]
  %v1293 = vld [vmem:[%s8 + $0x48] sm:$0xff]
  %v1294 = vld [vmem:[%s8 + $0x50] sm:$0xff]
  %v1295 = vld [vmem:[%s8 + $0x58] sm:$0xff]
  %v1296 = vld [vmem:[%s8 + $0x60] sm:$0xff]
  %v1297 = vld [vmem:[%s8 + $0x68] sm:$0xff]
  %v1298 = vld [vmem:[%s8 + $0x70] sm:$0xff]
  %v1299 = vld [vmem:[%s8 + $0x78] sm:$0xff]
  %v1316 = vunpack.c.l.b16 %v1284
  %v1317 = vunpack.c.h.b16 %v1284
  %v1318 = vunpack.c.l.b16 %v1285
  %v1319 = vunpack.c.h.b16 %v1285
  %v1320 = vunpack.c.l.b16 %v1286
  %v1321 = vunpack.c.h.b16 %v1286
  %v1322 = vunpack.c.l.b16 %v1287
  %v1323 = vunpack.c.h.b16 %v1287
  %v1324 = vunpack.c.l.b16 %v1288
  %v1325 = vunpack.c.h.b16 %v1288
  %v1326 = vunpack.c.l.b16 %v1289
  %v1327 = vunpack.c.h.b16 %v1289
  %v1328 = vunpack.c.l.b16 %v1290
  %v1329 = vunpack.c.h.b16 %v1290
  %v1330 = vunpack.c.l.b16 %v1291
  %v1331 = vunpack.c.h.b16 %v1291
  %v1332 = vunpack.c.l.b16 %v1292
  %v1333 = vunpack.c.h.b16 %v1292
  %v1334 = vunpack.c.l.b16 %v1293
  %v1335 = vunpack.c.h.b16 %v1293
  %v1336 = vunpack.c.l.b16 %v1294
  %v1337 = vunpack.c.h.b16 %v1294
  %v1338 = vunpack.c.l.b16 %v1295
  %v1339 = vunpack.c.h.b16 %v1295
  %v1340 = vunpack.c.l.b16 %v1296
  %v1341 = vunpack.c.h.b16 %v1296
  %v1342 = vunpack.c.l.b16 %v1297
  %v1343 = vunpack.c.h.b16 %v1297
  %v1344 = vunpack.c.l.b16 %v1298
  %v1345 = vunpack.c.h.b16 %v1298
  %v1346 = vunpack.c.l.b16 %v1299
  %v1347 = vunpack.c.h.b16 %v1299
  %v1348 = vpack.c.b16 %v1318, %v1316
  %v1349 = vpack.c.b16 %v1319, %v1317
  %v1350 = vpack.c.b16 %v1322, %v1320
  %v1351 = vpack.c.b16 %v1323, %v1321
  %v1352 = vpack.c.b16 %v1326, %v1324
  %v1353 = vpack.c.b16 %v1327, %v1325
  %v1354 = vpack.c.b16 %v1330, %v1328
  %v1355 = vpack.c.b16 %v1331, %v1329
  %v1356 = vpack.c.b16 %v1334, %v1332
  %v1357 = vpack.c.b16 %v1335, %v1333
  %v1358 = vpack.c.b16 %v1338, %v1336
  %v1359 = vpack.c.b16 %v1339, %v1337
  %v1360 = vpack.c.b16 %v1342, %v1340
  %v1361 = vpack.c.b16 %v1343, %v1341
  %v1362 = vpack.c.b16 %v1346, %v1344
  %v1363 = vpack.c.b16 %v1347, %v1345
  %1380 = vmatprep.subr.bf16.mxu0 %v1349
  %1381 = vmatpush1.bf16.msra.mxu0 %v1348
  %1382 = vmatprep.subr.bf16.mxu0 %v1351
  %1383 = vmatpush1.bf16.msra.mxu0 %v1350
  %1384 = vmatprep.subr.bf16.mxu0 %v1353
  %1385 = vmatpush1.bf16.msra.mxu0 %v1352
  %1386 = vmatprep.subr.bf16.mxu0 %v1355
  %1387 = vmatpush1.bf16.msra.mxu0 %v1354
  %1388 = vmatprep.subr.bf16.mxu0 %v1357
  %1389 = vmatpush1.bf16.msra.mxu0 %v1356
  %1390 = vmatprep.subr.bf16.mxu0 %v1359
  %1391 = vmatpush1.bf16.msra.mxu0 %v1358
  %1392 = vmatprep.subr.bf16.mxu0 %v1361
  %1393 = vmatpush1.bf16.msra.mxu0 %v1360
  %1394 = vmatprep.subr.bf16.mxu0 %v1363
  %1395 = vmatpush1.bf16.msra.mxu0 %v1362
  %1396 = vmatprep.subr.bf16.mxu0 0
  %1397 = vmatpush1.bf16.msra.mxu0 0
  %1398 = vmatprep.subr.bf16.mxu0 0
  %1399 = vmatpush1.bf16.msra.mxu0 0
  %1400 = vmatprep.subr.bf16.mxu0 0
  %1401 = vmatpush1.bf16.msra.mxu0 0
  %1402 = vmatprep.subr.bf16.mxu0 0
  %1403 = vmatpush1.bf16.msra.mxu0 0
  %1404 = vmatprep.subr.bf16.mxu0 0
  %1405 = vmatpush1.bf16.msra.mxu0 0
  %1406 = vmatprep.subr.bf16.mxu0 0
  %1407 = vmatpush1.bf16.msra.mxu0 0
  %1408 = vmatprep.subr.bf16.mxu0 0
  %1409 = vmatpush1.bf16.msra.mxu0 0
  %1410 = vmatprep.subr.bf16.mxu0 0
  %1411 = vmatpush1.bf16.msra.mxu0 0
  %1412 = vmatprep.mubr.bf16.mxu0 0
  %1413 = vmatmul.mubr.bf16.gmra.mrb[0].mxu0 %v1283
  %v1414 = vpop.f32.mrb[0].mxu0
  %v1415 = vadd.f32 0.0, %v1414
  %v1416 = vpop.f32.mrb[0].mxu0
  %v1417 = vadd.f32 0.0, %v1416
  %v1418 = vpop.f32.mrb[0].mxu0
  %v1419 = vpop.f32.mrb[0].mxu0
  %1420 = vdwg.mxu0
  %v1421 = vadd.f32 %v1159, %v1415
  %v1422 = vadd.f32 %v1163, %v1417
  %v1423 = vtanh.pop %v1421
  %v1424 = vtanh.pop %v1422
  %v1425 = vadd.f32 %v1423, 1.0
  %v1426 = vmul.f32 %v1425, 0.5
  %v1427 = vadd.f32 %v1424, 1.0
  %v1428 = vmul.f32 %v1427, 0.5
  %v1429 = vmul.f32 %v1426, 0.0
  %v1430 = vmul.f32 %v1426, %v1424
  %1432 = vrot.lane.b32.xlu0 %v1430, 64
  %v1433 = vpop.permute.xlu0 %1432
  %v1435 = vadd.f32 %v1429, %v1433
  %v1436 = vtanh.pop %v1435
  %v1437 = vmul.f32 %v1428, %v1436
  %v1438 = vld [vmem:[#allocation2 + $0x20] sm:$0xff]
  %v1439 = vld [vmem:[#allocation2 + $0x28] sm:$0xff]
  %v1440 = vpack.c.bf16 %v1277, %v1277
  %1442 = vrot.lane.b32.xlu0 %v1440, 64
  %v1443 = vpop.permute.xlu0 %1442
  %v1445 = vsel %vm1216, %v1443, 0
  %1447 = vmatprep.subr.bf16.mxu0 %v1201
  %1448 = vmatpush1.bf16.msra.mxu0 %v1200
  %1449 = vmatprep.subr.bf16.mxu0 %v1203
  %1450 = vmatpush1.bf16.msra.mxu0 %v1202
  %1451 = vmatprep.subr.bf16.mxu0 %v1205
  %1452 = vmatpush1.bf16.msra.mxu0 %v1204
  %1453 = vmatprep.subr.bf16.mxu0 %v1207
  %1454 = vmatpush1.bf16.msra.mxu0 %v1206
  %1455 = vmatprep.subr.bf16.mxu0 0
  %1456 = vmatpush1.bf16.msra.mxu0 0
  %1457 = vmatprep.subr.bf16.mxu0 0
  %1458 = vmatpush1.bf16.msra.mxu0 0
  %1459 = vmatprep.subr.bf16.mxu0 0
  %1460 = vmatpush1.bf16.msra.mxu0 0
  %1461 = vmatprep.subr.bf16.mxu0 0
  %1462 = vmatpush1.bf16.msra.mxu0 0
  %1463 = vmatprep.subr.bf16.mxu0 0
  %1464 = vmatpush1.bf16.msra.mxu0 0
  %1465 = vmatprep.subr.bf16.mxu0 0
  %1466 = vmatpush1.bf16.msra.mxu0 0
  %1467 = vmatprep.subr.bf16.mxu0 0
  %1468 = vmatpush1.bf16.msra.mxu0 0
  %1469 = vmatprep.subr.bf16.mxu0 0
  %1470 = vmatpush1.bf16.msra.mxu0 0
  %1471 = vmatprep.subr.bf16.mxu0 0
  %1472 = vmatpush1.bf16.msra.mxu0 0
  %1473 = vmatprep.subr.bf16.mxu0 0
  %1474 = vmatpush1.bf16.msra.mxu0 0
  %1475 = vmatprep.subr.bf16.mxu0 0
  %1476 = vmatpush1.bf16.msra.mxu0 0
  %1477 = vmatprep.subr.bf16.mxu0 0
  %1478 = vmatpush1.bf16.msra.mxu0 0
  %1479 = vmatprep.mubr.bf16.mxu0 0
  %1480 = vmatmul.mubr.bf16.gmra.mrb[0].mxu0 %v1445
  %v1481 = vpop.f32.mrb[0].mxu0
  %v1482 = vadd.f32 0.0, %v1481
  %v1483 = vpop.f32.mrb[0].mxu0
  %v1484 = vadd.f32 0.0, %v1483
  %v1485 = vpop.f32.mrb[0].mxu0
  %v1486 = vpop.f32.mrb[0].mxu0
  %1487 = vdwg.mxu0
  %v1488 = vadd.f32 %v1438, %v1482
  %v1489 = vadd.f32 %v1439, %v1484
  %v1490 = vtanh.pop %v1488
  %v1491 = vtanh.pop %v1489
  %v1492 = vadd.f32 %v1490, 1.0
  %v1493 = vmul.f32 %v1492, 0.5
  %v1494 = vadd.f32 %v1491, 1.0
  %v1495 = vmul.f32 %v1494, 0.5
  %v1496 = vmul.f32 %v1493, %v1275
  %v1497 = vmul.f32 %v1493, %v1491
  %1499 = vrot.lane.b32.xlu0 %v1497, 64
  %v1500 = vpop.permute.xlu0 %1499
  %v1502 = vadd.f32 %v1496, %v1500
  %v1503 = vtanh.pop %v1502
  %v1504 = vmul.f32 %v1495, %v1503
  %1506 = vrot.lane.b32.xlu0 %v1504, 64
  %v1507 = vpop.permute.xlu0 %1506
  %v1509 = vsel %vm1216, %v1507, %v1437
  %v1510 = vpack.c.bf16 %v1509, %v1509
  %1511 = vmatprep.subr.bf16.mxu0 %v1349
  %1512 = vmatpush1.bf16.msra.mxu0 %v1348
  %1513 = vmatprep.subr.bf16.mxu0 %v1351
  %1514 = vmatpush1.bf16.msra.mxu0 %v1350
  %1515 = vmatprep.subr.bf16.mxu0 %v1353
  %1516 = vmatpush1.bf16.msra.mxu0 %v1352
  %1517 = vmatprep.subr.bf16.mxu0 %v1355
  %1518 = vmatpush1.bf16.msra.mxu0 %v1354
  %1519 = vmatprep.subr.bf16.mxu0 %v1357
  %1520 = vmatpush1.bf16.msra.mxu0 %v1356
  %1521 = vmatprep.subr.bf16.mxu0 %v1359
  %1522 = vmatpush1.bf16.msra.mxu0 %v1358
  %1523 = vmatprep.subr.bf16.mxu0 %v1361
  %1524 = vmatpush1.bf16.msra.mxu0 %v1360
  %1525 = vmatprep.subr.bf16.mxu0 %v1363
  %1526 = vmatpush1.bf16.msra.mxu0 %v1362
  %1527 = vmatprep.subr.bf16.mxu0 0
  %1528 = vmatpush1.bf16.msra.mxu0 0
  %1529 = vmatprep.subr.bf16.mxu0 0
  %1530 = vmatpush1.bf16.msra.mxu0 0
  %1531 = vmatprep.subr.bf16.mxu0 0
  %1532 = vmatpush1.bf16.msra.mxu0 0
  %1533 = vmatprep.subr.bf16.mxu0 0
  %1534 = vmatpush1.bf16.msra.mxu0 0
  %1535 = vmatprep.subr.bf16.mxu0 0
  %1536 = vmatpush1.bf16.msra.mxu0 0
  %1537 = vmatprep.subr.bf16.mxu0 0
  %1538 = vmatpush1.bf16.msra.mxu0 0
  %1539 = vmatprep.subr.bf16.mxu0 0
  %1540 = vmatpush1.bf16.msra.mxu0 0
  %1541 = vmatprep.subr.bf16.mxu0 0
  %1542 = vmatpush1.bf16.msra.mxu0 0
  %1543 = vmatprep.mubr.bf16.mxu0 0
  %1544 = vmatmul.mubr.bf16.gmra.mrb[0].mxu0 %v1510
  %v1545 = vpop.f32.mrb[0].mxu0
  %v1546 = vadd.f32 0.0, %v1545
  %v1547 = vpop.f32.mrb[0].mxu0
  %v1548 = vadd.f32 0.0, %v1547
  %v1549 = vpop.f32.mrb[0].mxu0
  %v1550 = vpop.f32.mrb[0].mxu0
  %1551 = vdwg.mxu0
  %v1552 = vadd.f32 %v1159, %v1546
  %v1553 = vadd.f32 %v1163, %v1548
  %v1554 = vtanh.pop %v1552
  %v1555 = vtanh.pop %v1553
  %v1556 = vadd.f32 %v1554, 1.0
  %v1557 = vmul.f32 %v1556, 0.5
  %v1558 = vadd.f32 %v1555, 1.0
  %v1559 = vmul.f32 %v1558, 0.5
  %v1560 = vmul.f32 %v1557, %v1435
  %v1561 = vmul.f32 %v1557, %v1555
  %1563 = vrot.lane.b32.xlu0 %v1561, 64
  %v1564 = vpop.permute.xlu0 %1563
  %v1566 = vadd.f32 %v1560, %v1564
  %v1567 = vtanh.pop %v1566
  %v1568 = vmul.f32 %v1559, %v1567
  %v1569 = vld [vmem:[#allocation2 + $0x40] sm:$0xff]
  %v1570 = vld [vmem:[#allocation2 + $0x48] sm:$0xff]
  %v1571 = vpack.c.bf16 %v1504, %v1504
  %1573 = vrot.lane.b32.xlu0 %v1571, 64
  %v1574 = vpop.permute.xlu0 %1573
  %v1576 = vsel %vm1216, %v1574, 0
  %1578 = vmatprep.subr.bf16.mxu0 %v1201
  %1579 = vmatpush1.bf16.msra.mxu0 %v1200
  %1580 = vmatprep.subr.bf16.mxu0 %v1203
  %1581 = vmatpush1.bf16.msra.mxu0 %v1202
  %1582 = vmatprep.subr.bf16.mxu0 %v1205
  %1583 = vmatpush1.bf16.msra.mxu0 %v1204
  %1584 = vmatprep.subr.bf16.mxu0 %v1207
  %1585 = vmatpush1.bf16.msra.mxu0 %v1206
  %1586 = vmatprep.subr.bf16.mxu0 0
  %1587 = vmatpush1.bf16.msra.mxu0 0
  %1588 = vmatprep.subr.bf16.mxu0 0
  %1589 = vmatpush1.bf16.msra.mxu0 0
  %1590 = vmatprep.subr.bf16.mxu0 0
  %1591 = vmatpush1.bf16.msra.mxu0 0
  %1592 = vmatprep.subr.bf16.mxu0 0
  %1593 = vmatpush1.bf16.msra.mxu0 0
  %1594 = vmatprep.subr.bf16.mxu0 0
  %1595 = vmatpush1.bf16.msra.mxu0 0
  %1596 = vmatprep.subr.bf16.mxu0 0
  %1597 = vmatpush1.bf16.msra.mxu0 0
  %1598 = vmatprep.subr.bf16.mxu0 0
  %1599 = vmatpush1.bf16.msra.mxu0 0
  %1600 = vmatprep.subr.bf16.mxu0 0
  %1601 = vmatpush1.bf16.msra.mxu0 0
  %1602 = vmatprep.subr.bf16.mxu0 0
  %1603 = vmatpush1.bf16.msra.mxu0 0
  %1604 = vmatprep.subr.bf16.mxu0 0
  %1605 = vmatpush1.bf16.msra.mxu0 0
  %1606 = vmatprep.subr.bf16.mxu0 0
  %1607 = vmatpush1.bf16.msra.mxu0 0
  %1608 = vmatprep.subr.bf16.mxu0 0
  %1609 = vmatpush1.bf16.msra.mxu0 0
  %1610 = vmatprep.mubr.bf16.mxu0 0
  %1611 = vmatmul.mubr.bf16.gmra.mrb[0].mxu0 %v1576
  %v1612 = vpop.f32.mrb[0].mxu0
  %v1613 = vadd.f32 0.0, %v1612
  %v1614 = vpop.f32.mrb[0].mxu0
  %v1615 = vadd.f32 0.0, %v1614
  %v1616 = vpop.f32.mrb[0].mxu0
  %v1617 = vpop.f32.mrb[0].mxu0
  %1618 = vdwg.mxu0
  %v1619 = vadd.f32 %v1569, %v1613
  %v1620 = vadd.f32 %v1570, %v1615
  %v1621 = vtanh.pop %v1619
  %v1622 = vtanh.pop %v1620
  %v1623 = vadd.f32 %v1621, 1.0
  %v1624 = vmul.f32 %v1623, 0.5
  %v1625 = vadd.f32 %v1622, 1.0
  %v1626 = vmul.f32 %v1625, 0.5
  %v1627 = vmul.f32 %v1624, %v1502
  %v1628 = vmul.f32 %v1624, %v1622
  %1630 = vrot.lane.b32.xlu0 %v1628, 64
  %v1631 = vpop.permute.xlu0 %1630
  %v1633 = vadd.f32 %v1627, %v1631
  %v1634 = vtanh.pop %v1633
  %v1635 = vmul.f32 %v1626, %v1634
  %1637 = vrot.lane.b32.xlu0 %v1635, 64
  %v1638 = vpop.permute.xlu0 %1637
  %v1640 = vsel %vm1216, %v1638, %v1568
  %v1641 = vpack.c.bf16 %v1640, %v1640
  %1642 = vmatprep.subr.bf16.mxu0 %v1349
  %1643 = vmatpush1.bf16.msra.mxu0 %v1348
  %1644 = vmatprep.subr.bf16.mxu0 %v1351
  %1645 = vmatpush1.bf16.msra.mxu0 %v1350
  %1646 = vmatprep.subr.bf16.mxu0 %v1353
  %1647 = vmatpush1.bf16.msra.mxu0 %v1352
  %1648 = vmatprep.subr.bf16.mxu0 %v1355
  %1649 = vmatpush1.bf16.msra.mxu0 %v1354
  %1650 = vmatprep.subr.bf16.mxu0 %v1357
  %1651 = vmatpush1.bf16.msra.mxu0 %v1356
  %1652 = vmatprep.subr.bf16.mxu0 %v1359
  %1653 = vmatpush1.bf16.msra.mxu0 %v1358
  %1654 = vmatprep.subr.bf16.mxu0 %v1361
  %1655 = vmatpush1.bf16.msra.mxu0 %v1360
  %1656 = vmatprep.subr.bf16.mxu0 %v1363
  %1657 = vmatpush1.bf16.msra.mxu0 %v1362
  %1658 = vmatprep.subr.bf16.mxu0 0
  %1659 = vmatpush1.bf16.msra.mxu0 0
  %1660 = vmatprep.subr.bf16.mxu0 0
  %1661 = vmatpush1.bf16.msra.mxu0 0
  %1662 = vmatprep.subr.bf16.mxu0 0
  %1663 = vmatpush1.bf16.msra.mxu0 0
  %1664 = vmatprep.subr.bf16.mxu0 0
  %1665 = vmatpush1.bf16.msra.mxu0 0
  %1666 = vmatprep.subr.bf16.mxu0 0
  %1667 = vmatpush1.bf16.msra.mxu0 0
  %1668 = vmatprep.subr.bf16.mxu0 0
  %1669 = vmatpush1.bf16.msra.mxu0 0
  %1670 = vmatprep.subr.bf16.mxu0 0
  %1671 = vmatpush1.bf16.msra.mxu0 0
  %1672 = vmatprep.subr.bf16.mxu0 0
  %1673 = vmatpush1.bf16.msra.mxu0 0
  %1674 = vmatprep.mubr.bf16.mxu0 0
  %1675 = vmatmul.mubr.bf16.gmra.mrb[0].mxu0 %v1641
  %v1676 = vpop.f32.mrb[0].mxu0
  %v1677 = vadd.f32 0.0, %v1676
  %v1678 = vpop.f32.mrb[0].mxu0
  %v1679 = vadd.f32 0.0, %v1678
  %v1680 = vpop.f32.mrb[0].mxu0
  %v1681 = vpop.f32.mrb[0].mxu0
  %1682 = vdwg.mxu0
  %v1683 = vadd.f32 %v1159, %v1677
  %v1684 = vadd.f32 %v1163, %v1679
  %v1685 = vtanh.pop %v1683
  %v1686 = vtanh.pop %v1684
  %v1687 = vadd.f32 %v1685, 1.0
  %v1688 = vmul.f32 %v1687, 0.5
  %v1689 = vadd.f32 %v1686, 1.0
  %v1690 = vmul.f32 %v1689, 0.5
  %v1691 = vmul.f32 %v1688, %v1566
  %v1692 = vmul.f32 %v1688, %v1686
  %1694 = vrot.lane.b32.xlu0 %v1692, 64
  %v1695 = vpop.permute.xlu0 %1694
  %v1697 = vadd.f32 %v1691, %v1695
  %v1698 = vtanh.pop %v1697
  %v1699 = vmul.f32 %v1690, %v1698
  %v1700 = vld [vmem:[#allocation2 + $0x60] sm:$0xff]
  %v1701 = vld [vmem:[#allocation2 + $0x68] sm:$0xff]
  %v1702 = vpack.c.bf16 %v1635, %v1635
  %1704 = vrot.lane.b32.xlu0 %v1702, 64
  %v1705 = vpop.permute.xlu0 %1704
  %v1707 = vsel %vm1216, %v1705, 0
  %1709 = vmatprep.subr.bf16.mxu0 %v1201
  %1710 = vmatpush1.bf16.msra.mxu0 %v1200
  %1711 = vmatprep.subr.bf16.mxu0 %v1203
  %1712 = vmatpush1.bf16.msra.mxu0 %v1202
  %1713 = vmatprep.subr.bf16.mxu0 %v1205
  %1714 = vmatpush1.bf16.msra.mxu0 %v1204
  %1715 = vmatprep.subr.bf16.mxu0 %v1207
  %1716 = vmatpush1.bf16.msra.mxu0 %v1206
  %1717 = vmatprep.subr.bf16.mxu0 0
  %1718 = vmatpush1.bf16.msra.mxu0 0
  %1719 = vmatprep.subr.bf16.mxu0 0
  %1720 = vmatpush1.bf16.msra.mxu0 0
  %1721 = vmatprep.subr.bf16.mxu0 0
  %1722 = vmatpush1.bf16.msra.mxu0 0
  %1723 = vmatprep.subr.bf16.mxu0 0
  %1724 = vmatpush1.bf16.msra.mxu0 0
  %1725 = vmatprep.subr.bf16.mxu0 0
  %1726 = vmatpush1.bf16.msra.mxu0 0
  %1727 = vmatprep.subr.bf16.mxu0 0
  %1728 = vmatpush1.bf16.msra.mxu0 0
  %1729 = vmatprep.subr.bf16.mxu0 0
  %1730 = vmatpush1.bf16.msra.mxu0 0
  %1731 = vmatprep.subr.bf16.mxu0 0
  %1732 = vmatpush1.bf16.msra.mxu0 0
  %1733 = vmatprep.subr.bf16.mxu0 0
  %1734 = vmatpush1.bf16.msra.mxu0 0
  %1735 = vmatprep.subr.bf16.mxu0 0
  %1736 = vmatpush1.bf16.msra.mxu0 0
  %1737 = vmatprep.subr.bf16.mxu0 0
  %1738 = vmatpush1.bf16.msra.mxu0 0
  %1739 = vmatprep.subr.bf16.mxu0 0
  %1740 = vmatpush1.bf16.msra.mxu0 0
  %1741 = vmatprep.mubr.bf16.mxu0 0
  %1742 = vmatmul.mubr.bf16.gmra.mrb[0].mxu0 %v1707
  %v1743 = vpop.f32.mrb[0].mxu0
  %v1744 = vadd.f32 0.0, %v1743
  %v1745 = vpop.f32.mrb[0].mxu0
  %v1746 = vadd.f32 0.0, %v1745
  %v1747 = vpop.f32.mrb[0].mxu0
  %v1748 = vpop.f32.mrb[0].mxu0
  %1749 = vdwg.mxu0
  %v1750 = vadd.f32 %v1700, %v1744
  %v1751 = vadd.f32 %v1701, %v1746
  %v1752 = vtanh.pop %v1750
  %v1753 = vtanh.pop %v1751
  %v1754 = vadd.f32 %v1752, 1.0
  %v1755 = vmul.f32 %v1754, 0.5
  %v1756 = vadd.f32 %v1753, 1.0
  %v1757 = vmul.f32 %v1756, 0.5
  %v1758 = vmul.f32 %v1755, %v1633
  %v1759 = vmul.f32 %v1755, %v1753
  %1761 = vrot.lane.b32.xlu0 %v1759, 64
  %v1762 = vpop.permute.xlu0 %1761
  %v1764 = vadd.f32 %v1758, %v1762
  %v1765 = vtanh.pop %v1764
  %v1766 = vmul.f32 %v1757, %v1765
  %1768 = vrot.lane.b32.xlu0 %v1766, 64
  %v1769 = vpop.permute.xlu0 %1768
  %v1771 = vsel %vm1216, %v1769, %v1699
  %v1772 = vpack.c.bf16 %v1771, %v1771
  %1773 = vmatprep.subr.bf16.mxu0 %v1349
  %1774 = vmatpush1.bf16.msra.mxu0 %v1348
  %1775 = vmatprep.subr.bf16.mxu0 %v1351
  %1776 = vmatpush1.bf16.msra.mxu0 %v1350
  %1777 = vmatprep.subr.bf16.mxu0 %v1353
  %1778 = vmatpush1.bf16.msra.mxu0 %v1352
  %1779 = vmatprep.subr.bf16.mxu0 %v1355
  %1780 = vmatpush1.bf16.msra.mxu0 %v1354
  %1781 = vmatprep.subr.bf16.mxu0 %v1357
  %1782 = vmatpush1.bf16.msra.mxu0 %v1356
  %1783 = vmatprep.subr.bf16.mxu0 %v1359
  %1784 = vmatpush1.bf16.msra.mxu0 %v1358
  %1785 = vmatprep.subr.bf16.mxu0 %v1361
  %1786 = vmatpush1.bf16.msra.mxu0 %v1360
  %1787 = vmatprep.subr.bf16.mxu0 %v1363
  %1788 = vmatpush1.bf16.msra.mxu0 %v1362
  %1789 = vmatprep.subr.bf16.mxu0 0
  %1790 = vmatpush1.bf16.msra.mxu0 0
  %1791 = vmatprep.subr.bf16.mxu0 0
  %1792 = vmatpush1.bf16.msra.mxu0 0
  %1793 = vmatprep.subr.bf16.mxu0 0
  %1794 = vmatpush1.bf16.msra.mxu0 0
  %1795 = vmatprep.subr.bf16.mxu0 0
  %1796 = vmatpush1.bf16.msra.mxu0 0
  %1797 = vmatprep.subr.bf16.mxu0 0
  %1798 = vmatpush1.bf16.msra.mxu0 0
  %1799 = vmatprep.subr.bf16.mxu0 0
  %1800 = vmatpush1.bf16.msra.mxu0 0
  %1801 = vmatprep.subr.bf16.mxu0 0
  %1802 = vmatpush1.bf16.msra.mxu0 0
  %1803 = vmatprep.subr.bf16.mxu0 0
  %1804 = vmatpush1.bf16.msra.mxu0 0
  %1805 = vmatprep.mubr.bf16.mxu0 0
  %1806 = vmatmul.mubr.bf16.gmra.mrb[0].mxu0 %v1772
  %v1807 = vpop.f32.mrb[0].mxu0
  %v1808 = vadd.f32 0.0, %v1807
  %v1809 = vpop.f32.mrb[0].mxu0
  %v1810 = vadd.f32 0.0, %v1809
  %v1811 = vpop.f32.mrb[0].mxu0
  %v1812 = vpop.f32.mrb[0].mxu0
  %1813 = vdwg.mxu0
  %v1814 = vadd.f32 %v1159, %v1808
  %v1815 = vadd.f32 %v1163, %v1810
  %v1816 = vtanh.pop %v1814
  %v1817 = vtanh.pop %v1815
  %v1818 = vadd.f32 %v1816, 1.0
  %v1819 = vmul.f32 %v1818, 0.5
  %v1820 = vadd.f32 %v1817, 1.0
  %v1821 = vmul.f32 %v1820, 0.5
  %v1822 = vmul.f32 %v1819, %v1697
  %v1823 = vmul.f32 %v1819, %v1817
  %1825 = vrot.lane.b32.xlu0 %v1823, 64
  %v1826 = vpop.permute.xlu0 %1825
  %v1828 = vadd.f32 %v1822, %v1826
  %v1829 = vtanh.pop %v1828
  %v1830 = vmul.f32 %v1821, %v1829
  %v1831 = vld [vmem:[#allocation2 + $0x80] sm:$0xff]
  %v1832 = vld [vmem:[#allocation2 + $0x88] sm:$0xff]
  %v1833 = vpack.c.bf16 %v1766, %v1766
  %1835 = vrot.lane.b32.xlu0 %v1833, 64
  %v1836 = vpop.permute.xlu0 %1835
  %v1838 = vsel %vm1216, %v1836, 0
  %1840 = vmatprep.subr.bf16.mxu0 %v1201
  %1841 = vmatpush1.bf16.msra.mxu0 %v1200
  %1842 = vmatprep.subr.bf16.mxu0 %v1203
  %1843 = vmatpush1.bf16.msra.mxu0 %v1202
  %1844 = vmatprep.subr.bf16.mxu0 %v1205
  %1845 = vmatpush1.bf16.msra.mxu0 %v1204
  %1846 = vmatprep.subr.bf16.mxu0 %v1207
  %1847 = vmatpush1.bf16.msra.mxu0 %v1206
  %1848 = vmatprep.subr.bf16.mxu0 0
  %1849 = vmatpush1.bf16.msra.mxu0 0
  %1850 = vmatprep.subr.bf16.mxu0 0
  %1851 = vmatpush1.bf16.msra.mxu0 0
  %1852 = vmatprep.subr.bf16.mxu0 0
  %1853 = vmatpush1.bf16.msra.mxu0 0
  %1854 = vmatprep.subr.bf16.mxu0 0
  %1855 = vmatpush1.bf16.msra.mxu0 0
  %1856 = vmatprep.subr.bf16.mxu0 0
  %1857 = vmatpush1.bf16.msra.mxu0 0
  %1858 = vmatprep.subr.bf16.mxu0 0
  %1859 = vmatpush1.bf16.msra.mxu0 0
  %1860 = vmatprep.subr.bf16.mxu0 0
  %1861 = vmatpush1.bf16.msra.mxu0 0
  %1862 = vmatprep.subr.bf16.mxu0 0
  %1863 = vmatpush1.bf16.msra.mxu0 0
  %1864 = vmatprep.subr.bf16.mxu0 0
  %1865 = vmatpush1.bf16.msra.mxu0 0
  %1866 = vmatprep.subr.bf16.mxu0 0
  %1867 = vmatpush1.bf16.msra.mxu0 0
  %1868 = vmatprep.subr.bf16.mxu0 0
  %1869 = vmatpush1.bf16.msra.mxu0 0
  %1870 = vmatprep.subr.bf16.mxu0 0
  %1871 = vmatpush1.bf16.msra.mxu0 0
  %1872 = vmatprep.mubr.bf16.mxu0 0
  %1873 = vmatmul.mubr.bf16.gmra.mrb[0].mxu0 %v1838
  %v1874 = vpop.f32.mrb[0].mxu0
  %v1875 = vadd.f32 0.0, %v1874
  %v1876 = vpop.f32.mrb[0].mxu0
  %v1877 = vadd.f32 0.0, %v1876
  %v1878 = vpop.f32.mrb[0].mxu0
  %v1879 = vpop.f32.mrb[0].mxu0
  %1880 = vdwg.mxu0
  %v1881 = vadd.f32 %v1831, %v1875
  %v1882 = vadd.f32 %v1832, %v1877
  %v1883 = vtanh.pop %v1881
  %v1884 = vtanh.pop %v1882
  %v1885 = vadd.f32 %v1883, 1.0
  %v1886 = vmul.f32 %v1885, 0.5
  %v1887 = vadd.f32 %v1884, 1.0
  %v1888 = vmul.f32 %v1887, 0.5
  %v1889 = vmul.f32 %v1886, %v1764
  %v1890 = vmul.f32 %v1886, %v1884
  %1892 = vrot.lane.b32.xlu0 %v1890, 64
  %v1893 = vpop.permute.xlu0 %1892
  %v1895 = vadd.f32 %v1889, %v1893
  %v1896 = vtanh.pop %v1895
  %v1897 = vmul.f32 %v1888, %v1896
  %1899 = vrot.lane.b32.xlu0 %v1897, 64
  %v1900 = vpop.permute.xlu0 %1899
  %v1902 = vsel %vm1216, %v1900, %v1830
  %v1903 = vpack.c.bf16 %v1902, %v1902
  %1904 = vmatprep.subr.bf16.mxu0 %v1349
  %1905 = vmatpush1.bf16.msra.mxu0 %v1348
  %1906 = vmatprep.subr.bf16.mxu0 %v1351
  %1907 = vmatpush1.bf16.msra.mxu0 %v1350
  %1908 = vmatprep.subr.bf16.mxu0 %v1353
  %1909 = vmatpush1.bf16.msra.mxu0 %v1352
  %1910 = vmatprep.subr.bf16.mxu0 %v1355
  %1911 = vmatpush1.bf16.msra.mxu0 %v1354
  %1912 = vmatprep.subr.bf16.mxu0 %v1357
  %1913 = vmatpush1.bf16.msra.mxu0 %v1356
  %1914 = vmatprep.subr.bf16.mxu0 %v1359
  %1915 = vmatpush1.bf16.msra.mxu0 %v1358
  %1916 = vmatprep.subr.bf16.mxu0 %v1361
  %1917 = vmatpush1.bf16.msra.mxu0 %v1360
  %1918 = vmatprep.subr.bf16.mxu0 %v1363
  %1919 = vmatpush1.bf16.msra.mxu0 %v1362
  %1920 = vmatprep.subr.bf16.mxu0 0
  %1921 = vmatpush1.bf16.msra.mxu0 0
  %1922 = vmatprep.subr.bf16.mxu0 0
  %1923 = vmatpush1.bf16.msra.mxu0 0
  %1924 = vmatprep.subr.bf16.mxu0 0
  %1925 = vmatpush1.bf16.msra.mxu0 0
  %1926 = vmatprep.subr.bf16.mxu0 0
  %1927 = vmatpush1.bf16.msra.mxu0 0
  %1928 = vmatprep.subr.bf16.mxu0 0
  %1929 = vmatpush1.bf16.msra.mxu0 0
  %1930 = vmatprep.subr.bf16.mxu0 0
  %1931 = vmatpush1.bf16.msra.mxu0 0
  %1932 = vmatprep.subr.bf16.mxu0 0
  %1933 = vmatpush1.bf16.msra.mxu0 0
  %1934 = vmatprep.subr.bf16.mxu0 0
  %1935 = vmatpush1.bf16.msra.mxu0 0
  %1936 = vmatprep.mubr.bf16.mxu0 0
  %1937 = vmatmul.mubr.bf16.gmra.mrb[0].mxu0 %v1903
  %v1938 = vpop.f32.mrb[0].mxu0
  %v1939 = vadd.f32 0.0, %v1938
  %v1940 = vpop.f32.mrb[0].mxu0
  %v1941 = vadd.f32 0.0, %v1940
  %v1942 = vpop.f32.mrb[0].mxu0
  %v1943 = vpop.f32.mrb[0].mxu0
  %1944 = vdwg.mxu0
  %v1945 = vadd.f32 %v1159, %v1939
  %v1946 = vadd.f32 %v1163, %v1941
  %v1947 = vtanh.pop %v1945
  %v1948 = vtanh.pop %v1946
  %v1949 = vadd.f32 %v1947, 1.0
  %v1950 = vmul.f32 %v1949, 0.5
  %v1951 = vadd.f32 %v1948, 1.0
  %v1952 = vmul.f32 %v1951, 0.5
  %v1953 = vmul.f32 %v1950, %v1828
  %v1954 = vmul.f32 %v1950, %v1948
  %1956 = vrot.lane.b32.xlu0 %v1954, 64
  %v1957 = vpop.permute.xlu0 %1956
  %v1959 = vadd.f32 %v1953, %v1957
  %v1960 = vtanh.pop %v1959
  %v1961 = vmul.f32 %v1952, %v1960
  %v1962 = vld [vmem:[#allocation2 + $0xa0] sm:$0xff]
  %v1963 = vld [vmem:[#allocation2 + $0xa8] sm:$0xff]
  %v1964 = vpack.c.bf16 %v1897, %v1897
  %1966 = vrot.lane.b32.xlu0 %v1964, 64
  %v1967 = vpop.permute.xlu0 %1966
  %v1969 = vsel %vm1216, %v1967, 0
  %1971 = vmatprep.subr.bf16.mxu0 %v1201
  %1972 = vmatpush1.bf16.msra.mxu0 %v1200
  %1973 = vmatprep.subr.bf16.mxu0 %v1203
  %1974 = vmatpush1.bf16.msra.mxu0 %v1202
  %1975 = vmatprep.subr.bf16.mxu0 %v1205
  %1976 = vmatpush1.bf16.msra.mxu0 %v1204
  %1977 = vmatprep.subr.bf16.mxu0 %v1207
  %1978 = vmatpush1.bf16.msra.mxu0 %v1206
  %1979 = vmatprep.subr.bf16.mxu0 0
  %1980 = vmatpush1.bf16.msra.mxu0 0
  %1981 = vmatprep.subr.bf16.mxu0 0
  %1982 = vmatpush1.bf16.msra.mxu0 0
  %1983 = vmatprep.subr.bf16.mxu0 0
  %1984 = vmatpush1.bf16.msra.mxu0 0
  %1985 = vmatprep.subr.bf16.mxu0 0
  %1986 = vmatpush1.bf16.msra.mxu0 0
  %1987 = vmatprep.subr.bf16.mxu0 0
  %1988 = vmatpush1.bf16.msra.mxu0 0
  %1989 = vmatprep.subr.bf16.mxu0 0
  %1990 = vmatpush1.bf16.msra.mxu0 0
  %1991 = vmatprep.subr.bf16.mxu0 0
  %1992 = vmatpush1.bf16.msra.mxu0 0
  %1993 = vmatprep.subr.bf16.mxu0 0
  %1994 = vmatpush1.bf16.msra.mxu0 0
  %1995 = vmatprep.subr.bf16.mxu0 0
  %1996 = vmatpush1.bf16.msra.mxu0 0
  %1997 = vmatprep.subr.bf16.mxu0 0
  %1998 = vmatpush1.bf16.msra.mxu0 0
  %1999 = vmatprep.subr.bf16.mxu0 0
  %2000 = vmatpush1.bf16.msra.mxu0 0
  %2001 = vmatprep.subr.bf16.mxu0 0
  %2002 = vmatpush1.bf16.msra.mxu0 0
  %2003 = vmatprep.mubr.bf16.mxu0 0
  %2004 = vmatmul.mubr.bf16.gmra.mrb[0].mxu0 %v1969
  %v2005 = vpop.f32.mrb[0].mxu0
  %v2006 = vadd.f32 0.0, %v2005
  %v2007 = vpop.f32.mrb[0].mxu0
  %v2008 = vadd.f32 0.0, %v2007
  %v2009 = vpop.f32.mrb[0].mxu0
  %v2010 = vpop.f32.mrb[0].mxu0
  %2011 = vdwg.mxu0
  %v2012 = vadd.f32 %v1962, %v2006
  %v2013 = vadd.f32 %v1963, %v2008
  %v2014 = vtanh.pop %v2012
  %v2015 = vtanh.pop %v2013
  %v2016 = vadd.f32 %v2014, 1.0
  %v2017 = vmul.f32 %v2016, 0.5
  %v2018 = vadd.f32 %v2015, 1.0
  %v2019 = vmul.f32 %v2018, 0.5
  %v2020 = vmul.f32 %v2017, %v1895
  %v2021 = vmul.f32 %v2017, %v2015
  %2023 = vrot.lane.b32.xlu0 %v2021, 64
  %v2024 = vpop.permute.xlu0 %2023
  %v2026 = vadd.f32 %v2020, %v2024
  %v2027 = vtanh.pop %v2026
  %v2028 = vmul.f32 %v2019, %v2027
  %2030 = vrot.lane.b32.xlu0 %v2028, 64
  %v2031 = vpop.permute.xlu0 %2030
  %v2033 = vsel %vm1216, %v2031, %v1961
  %v2034 = vpack.c.bf16 %v2033, %v2033
  %2035 = vmatprep.subr.bf16.mxu0 %v1349
  %2036 = vmatpush1.bf16.msra.mxu0 %v1348
  %2037 = vmatprep.subr.bf16.mxu0 %v1351
  %2038 = vmatpush1.bf16.msra.mxu0 %v1350
  %2039 = vmatprep.subr.bf16.mxu0 %v1353
  %2040 = vmatpush1.bf16.msra.mxu0 %v1352
  %2041 = vmatprep.subr.bf16.mxu0 %v1355
  %2042 = vmatpush1.bf16.msra.mxu0 %v1354
  %2043 = vmatprep.subr.bf16.mxu0 %v1357
  %2044 = vmatpush1.bf16.msra.mxu0 %v1356
  %2045 = vmatprep.subr.bf16.mxu0 %v1359
  %2046 = vmatpush1.bf16.msra.mxu0 %v1358
  %2047 = vmatprep.subr.bf16.mxu0 %v1361
  %2048 = vmatpush1.bf16.msra.mxu0 %v1360
  %2049 = vmatprep.subr.bf16.mxu0 %v1363
  %2050 = vmatpush1.bf16.msra.mxu0 %v1362
  %2051 = vmatprep.subr.bf16.mxu0 0
  %2052 = vmatpush1.bf16.msra.mxu0 0
  %2053 = vmatprep.subr.bf16.mxu0 0
  %2054 = vmatpush1.bf16.msra.mxu0 0
  %2055 = vmatprep.subr.bf16.mxu0 0
  %2056 = vmatpush1.bf16.msra.mxu0 0
  %2057 = vmatprep.subr.bf16.mxu0 0
  %2058 = vmatpush1.bf16.msra.mxu0 0
  %2059 = vmatprep.subr.bf16.mxu0 0
  %2060 = vmatpush1.bf16.msra.mxu0 0
  %2061 = vmatprep.subr.bf16.mxu0 0
  %2062 = vmatpush1.bf16.msra.mxu0 0
  %2063 = vmatprep.subr.bf16.mxu0 0
  %2064 = vmatpush1.bf16.msra.mxu0 0
  %2065 = vmatprep.subr.bf16.mxu0 0
  %2066 = vmatpush1.bf16.msra.mxu0 0
  %2067 = vmatprep.mubr.bf16.mxu0 0
  %2068 = vmatmul.mubr.bf16.gmra.mrb[0].mxu0 %v2034
  %v2069 = vpop.f32.mrb[0].mxu0
  %v2070 = vadd.f32 0.0, %v2069
  %v2071 = vpop.f32.mrb[0].mxu0
  %v2072 = vadd.f32 0.0, %v2071
  %v2073 = vpop.f32.mrb[0].mxu0
  %v2074 = vpop.f32.mrb[0].mxu0
  %2075 = vdwg.mxu0
  %v2076 = vadd.f32 %v1159, %v2070
  %v2077 = vadd.f32 %v1163, %v2072
  %v2078 = vtanh.pop %v2076
  %v2079 = vtanh.pop %v2077
  %v2080 = vadd.f32 %v2078, 1.0
  %v2081 = vmul.f32 %v2080, 0.5
  %v2082 = vadd.f32 %v2079, 1.0
  %v2083 = vmul.f32 %v2082, 0.5
  %v2084 = vmul.f32 %v2081, %v1959
  %v2085 = vmul.f32 %v2081, %v2079
  %2087 = vrot.lane.b32.xlu0 %v2085, 64
  %v2088 = vpop.permute.xlu0 %2087
  %v2090 = vadd.f32 %v2084, %v2088
  %v2091 = vtanh.pop %v2090
  %v2092 = vmul.f32 %v2083, %v2091
  %v2093 = vld [vmem:[#allocation2 + $0xc0] sm:$0xff]
  %v2094 = vld [vmem:[#allocation2 + $0xc8] sm:$0xff]
  %v2095 = vpack.c.bf16 %v2028, %v2028
  %2097 = vrot.lane.b32.xlu0 %v2095, 64
  %v2098 = vpop.permute.xlu0 %2097
  %v2100 = vsel %vm1216, %v2098, 0
  %2102 = vmatprep.subr.bf16.mxu0 %v1201
  %2103 = vmatpush1.bf16.msra.mxu0 %v1200
  %2104 = vmatprep.subr.bf16.mxu0 %v1203
  %2105 = vmatpush1.bf16.msra.mxu0 %v1202
  %2106 = vmatprep.subr.bf16.mxu0 %v1205
  %2107 = vmatpush1.bf16.msra.mxu0 %v1204
  %2108 = vmatprep.subr.bf16.mxu0 %v1207
  %2109 = vmatpush1.bf16.msra.mxu0 %v1206
  %2110 = vmatprep.subr.bf16.mxu0 0
  %2111 = vmatpush1.bf16.msra.mxu0 0
  %2112 = vmatprep.subr.bf16.mxu0 0
  %2113 = vmatpush1.bf16.msra.mxu0 0
  %2114 = vmatprep.subr.bf16.mxu0 0
  %2115 = vmatpush1.bf16.msra.mxu0 0
  %2116 = vmatprep.subr.bf16.mxu0 0
  %2117 = vmatpush1.bf16.msra.mxu0 0
  %2118 = vmatprep.subr.bf16.mxu0 0
  %2119 = vmatpush1.bf16.msra.mxu0 0
  %2120 = vmatprep.subr.bf16.mxu0 0
  %2121 = vmatpush1.bf16.msra.mxu0 0
  %2122 = vmatprep.subr.bf16.mxu0 0
  %2123 = vmatpush1.bf16.msra.mxu0 0
  %2124 = vmatprep.subr.bf16.mxu0 0
  %2125 = vmatpush1.bf16.msra.mxu0 0
  %2126 = vmatprep.subr.bf16.mxu0 0
  %2127 = vmatpush1.bf16.msra.mxu0 0
  %2128 = vmatprep.subr.bf16.mxu0 0
  %2129 = vmatpush1.bf16.msra.mxu0 0
  %2130 = vmatprep.subr.bf16.mxu0 0
  %2131 = vmatpush1.bf16.msra.mxu0 0
  %2132 = vmatprep.subr.bf16.mxu0 0
  %2133 = vmatpush1.bf16.msra.mxu0 0
  %2134 = vmatprep.mubr.bf16.mxu0 0
  %2135 = vmatmul.mubr.bf16.gmra.mrb[0].mxu0 %v2100
  %v2136 = vpop.f32.mrb[0].mxu0
  %v2137 = vadd.f32 0.0, %v2136
  %v2138 = vpop.f32.mrb[0].mxu0
  %v2139 = vadd.f32 0.0, %v2138
  %v2140 = vpop.f32.mrb[0].mxu0
  %v2141 = vpop.f32.mrb[0].mxu0
  %2142 = vdwg.mxu0
  %v2143 = vadd.f32 %v2093, %v2137
  %v2144 = vadd.f32 %v2094, %v2139
  %v2145 = vtanh.pop %v2143
  %v2146 = vtanh.pop %v2144
  %v2147 = vadd.f32 %v2145, 1.0
  %v2148 = vmul.f32 %v2147, 0.5
  %v2149 = vadd.f32 %v2146, 1.0
  %v2150 = vmul.f32 %v2149, 0.5
  %v2151 = vmul.f32 %v2148, %v2026
  %v2152 = vmul.f32 %v2148, %v2146
  %2154 = vrot.lane.b32.xlu0 %v2152, 64
  %v2155 = vpop.permute.xlu0 %2154
  %v2157 = vadd.f32 %v2151, %v2155
  %v2158 = vtanh.pop %v2157
  %v2159 = vmul.f32 %v2150, %v2158
  %2161 = vrot.lane.b32.xlu0 %v2159, 64
  %v2162 = vpop.permute.xlu0 %2161
  %v2164 = vsel %vm1216, %v2162, %v2092
  %v2165 = vpack.c.bf16 %v2164, %v2164
  %2166 = vmatprep.subr.bf16.mxu0 %v1349
  %2167 = vmatpush1.bf16.msra.mxu0 %v1348
  %2168 = vmatprep.subr.bf16.mxu0 %v1351
  %2169 = vmatpush1.bf16.msra.mxu0 %v1350
  %2170 = vmatprep.subr.bf16.mxu0 %v1353
  %2171 = vmatpush1.bf16.msra.mxu0 %v1352
  %2172 = vmatprep.subr.bf16.mxu0 %v1355
  %2173 = vmatpush1.bf16.msra.mxu0 %v1354
  %2174 = vmatprep.subr.bf16.mxu0 %v1357
  %2175 = vmatpush1.bf16.msra.mxu0 %v1356
  %2176 = vmatprep.subr.bf16.mxu0 %v1359
  %2177 = vmatpush1.bf16.msra.mxu0 %v1358
  %2178 = vmatprep.subr.bf16.mxu0 %v1361
  %2179 = vmatpush1.bf16.msra.mxu0 %v1360
  %2180 = vmatprep.subr.bf16.mxu0 %v1363
  %2181 = vmatpush1.bf16.msra.mxu0 %v1362
  %2182 = vmatprep.subr.bf16.mxu0 0
  %2183 = vmatpush1.bf16.msra.mxu0 0
  %2184 = vmatprep.subr.bf16.mxu0 0
  %2185 = vmatpush1.bf16.msra.mxu0 0
  %2186 = vmatprep.subr.bf16.mxu0 0
  %2187 = vmatpush1.bf16.msra.mxu0 0
  %2188 = vmatprep.subr.bf16.mxu0 0
  %2189 = vmatpush1.bf16.msra.mxu0 0
  %2190 = vmatprep.subr.bf16.mxu0 0
  %2191 = vmatpush1.bf16.msra.mxu0 0
  %2192 = vmatprep.subr.bf16.mxu0 0
  %2193 = vmatpush1.bf16.msra.mxu0 0
  %2194 = vmatprep.subr.bf16.mxu0 0
  %2195 = vmatpush1.bf16.msra.mxu0 0
  %2196 = vmatprep.subr.bf16.mxu0 0
  %2197 = vmatpush1.bf16.msra.mxu0 0
  %2198 = vmatprep.mubr.bf16.mxu0 0
  %2199 = vmatmul.mubr.bf16.gmra.mrb[0].mxu0 %v2165
  %v2200 = vpop.f32.mrb[0].mxu0
  %v2201 = vadd.f32 0.0, %v2200
  %v2202 = vpop.f32.mrb[0].mxu0
  %v2203 = vadd.f32 0.0, %v2202
  %v2204 = vpop.f32.mrb[0].mxu0
  %v2205 = vpop.f32.mrb[0].mxu0
  %2206 = vdwg.mxu0
  %v2207 = vadd.f32 %v1159, %v2201
  %v2208 = vadd.f32 %v1163, %v2203
  %v2209 = vtanh.pop %v2207
  %v2210 = vtanh.pop %v2208
  %v2211 = vadd.f32 %v2209, 1.0
  %v2212 = vmul.f32 %v2211, 0.5
  %v2213 = vadd.f32 %v2210, 1.0
  %v2214 = vmul.f32 %v2213, 0.5
  %v2215 = vmul.f32 %v2212, %v2090
  %v2216 = vmul.f32 %v2212, %v2210
  %2218 = vrot.lane.b32.xlu0 %v2216, 64
  %v2219 = vpop.permute.xlu0 %2218
  %v2221 = vadd.f32 %v2215, %v2219
  %v2222 = vtanh.pop %v2221
  %v2223 = vmul.f32 %v2214, %v2222
  %v2224 = vld [vmem:[#allocation2 + $0xe0] sm:$0xff]
  %v2225 = vld [vmem:[#allocation2 + $0xe8] sm:$0xff]
  %v2226 = vpack.c.bf16 %v2159, %v2159
  %2228 = vrot.lane.b32.xlu0 %v2226, 64
  %v2229 = vpop.permute.xlu0 %2228
  %v2231 = vsel %vm1216, %v2229, 0
  %2233 = vmatprep.subr.bf16.mxu0 %v1201
  %2234 = vmatpush1.bf16.msra.mxu0 %v1200
  %2235 = vmatprep.subr.bf16.mxu0 %v1203
  %2236 = vmatpush1.bf16.msra.mxu0 %v1202
  %2237 = vmatprep.subr.bf16.mxu0 %v1205
  %2238 = vmatpush1.bf16.msra.mxu0 %v1204
  %2239 = vmatprep.subr.bf16.mxu0 %v1207
  %2240 = vmatpush1.bf16.msra.mxu0 %v1206
  %2241 = vmatprep.subr.bf16.mxu0 0
  %2242 = vmatpush1.bf16.msra.mxu0 0
  %2243 = vmatprep.subr.bf16.mxu0 0
  %2244 = vmatpush1.bf16.msra.mxu0 0
  %2245 = vmatprep.subr.bf16.mxu0 0
  %2246 = vmatpush1.bf16.msra.mxu0 0
  %2247 = vmatprep.subr.bf16.mxu0 0
  %2248 = vmatpush1.bf16.msra.mxu0 0
  %2249 = vmatprep.subr.bf16.mxu0 0
  %2250 = vmatpush1.bf16.msra.mxu0 0
  %2251 = vmatprep.subr.bf16.mxu0 0
  %2252 = vmatpush1.bf16.msra.mxu0 0
  %2253 = vmatprep.subr.bf16.mxu0 0
  %2254 = vmatpush1.bf16.msra.mxu0 0
  %2255 = vmatprep.subr.bf16.mxu0 0
  %2256 = vmatpush1.bf16.msra.mxu0 0
  %2257 = vmatprep.subr.bf16.mxu0 0
  %2258 = vmatpush1.bf16.msra.mxu0 0
  %2259 = vmatprep.subr.bf16.mxu0 0
  %2260 = vmatpush1.bf16.msra.mxu0 0
  %2261 = vmatprep.subr.bf16.mxu0 0
  %2262 = vmatpush1.bf16.msra.mxu0 0
  %2263 = vmatprep.subr.bf16.mxu0 0
  %2264 = vmatpush1.bf16.msra.mxu0 0
  %2265 = vmatprep.mubr.bf16.mxu0 0
  %2266 = vmatmul.mubr.bf16.gmra.mrb[0].mxu0 %v2231
  %v2267 = vpop.f32.mrb[0].mxu0
  %v2268 = vadd.f32 0.0, %v2267
  %v2269 = vpop.f32.mrb[0].mxu0
  %v2270 = vadd.f32 0.0, %v2269
  %v2271 = vpop.f32.mrb[0].mxu0
  %v2272 = vpop.f32.mrb[0].mxu0
  %2273 = vdwg.mxu0
  %v2274 = vadd.f32 %v2224, %v2268
  %v2275 = vadd.f32 %v2225, %v2270
  %v2276 = vtanh.pop %v2274
  %v2277 = vtanh.pop %v2275
  %v2278 = vadd.f32 %v2276, 1.0
  %v2279 = vmul.f32 %v2278, 0.5
  %v2280 = vadd.f32 %v2277, 1.0
  %v2281 = vmul.f32 %v2280, 0.5
  %v2282 = vmul.f32 %v2279, %v2157
  %v2283 = vmul.f32 %v2279, %v2277
  %2285 = vrot.lane.b32.xlu0 %v2283, 64
  %v2286 = vpop.permute.xlu0 %2285
  %v2288 = vadd.f32 %v2282, %v2286
  %v2289 = vtanh.pop %v2288
  %v2290 = vmul.f32 %v2281, %v2289
  %2292 = vrot.lane.b32.xlu0 %v2290, 64
  %v2293 = vpop.permute.xlu0 %2292
  %v2295 = vsel %vm1216, %v2293, %v2223
  %v2296 = vpack.c.bf16 %v2295, %v2295
  %2297 = vmatprep.subr.bf16.mxu0 %v1349
  %2298 = vmatpush1.bf16.msra.mxu0 %v1348
  %2299 = vmatprep.subr.bf16.mxu0 %v1351
  %2300 = vmatpush1.bf16.msra.mxu0 %v1350
  %2301 = vmatprep.subr.bf16.mxu0 %v1353
  %2302 = vmatpush1.bf16.msra.mxu0 %v1352
  %2303 = vmatprep.subr.bf16.mxu0 %v1355
  %2304 = vmatpush1.bf16.msra.mxu0 %v1354
  %2305 = vmatprep.subr.bf16.mxu0 %v1357
  %2306 = vmatpush1.bf16.msra.mxu0 %v1356
  %2307 = vmatprep.subr.bf16.mxu0 %v1359
  %2308 = vmatpush1.bf16.msra.mxu0 %v1358
  %2309 = vmatprep.subr.bf16.mxu0 %v1361
  %2310 = vmatpush1.bf16.msra.mxu0 %v1360
  %2311 = vmatprep.subr.bf16.mxu0 %v1363
  %2312 = vmatpush1.bf16.msra.mxu0 %v1362
  %2313 = vmatprep.subr.bf16.mxu0 0
  %2314 = vmatpush1.bf16.msra.mxu0 0
  %2315 = vmatprep.subr.bf16.mxu0 0
  %2316 = vmatpush1.bf16.msra.mxu0 0
  %2317 = vmatprep.subr.bf16.mxu0 0
  %2318 = vmatpush1.bf16.msra.mxu0 0
  %2319 = vmatprep.subr.bf16.mxu0 0
  %2320 = vmatpush1.bf16.msra.mxu0 0
  %2321 = vmatprep.subr.bf16.mxu0 0
  %2322 = vmatpush1.bf16.msra.mxu0 0
  %2323 = vmatprep.subr.bf16.mxu0 0
  %2324 = vmatpush1.bf16.msra.mxu0 0
  %2325 = vmatprep.subr.bf16.mxu0 0
  %2326 = vmatpush1.bf16.msra.mxu0 0
  %2327 = vmatprep.subr.bf16.mxu0 0
  %2328 = vmatpush1.bf16.msra.mxu0 0
  %2329 = vmatprep.mubr.bf16.mxu0 0
  %2330 = vmatmul.mubr.bf16.gmra.mrb[0].mxu0 %v2296
  %v2331 = vpop.f32.mrb[0].mxu0
  %v2332 = vadd.f32 0.0, %v2331
  %v2333 = vpop.f32.mrb[0].mxu0
  %v2334 = vadd.f32 0.0, %v2333
  %v2335 = vpop.f32.mrb[0].mxu0
  %v2336 = vpop.f32.mrb[0].mxu0
  %2337 = vdwg.mxu0
  %v2338 = vadd.f32 %v1159, %v2332
  %v2339 = vadd.f32 %v1163, %v2334
  %v2340 = vtanh.pop %v2338
  %v2341 = vtanh.pop %v2339
  %v2342 = vadd.f32 %v2340, 1.0
  %v2343 = vmul.f32 %v2342, 0.5
  %v2344 = vadd.f32 %v2341, 1.0
  %v2345 = vmul.f32 %v2344, 0.5
  %v2346 = vmul.f32 %v2343, %v2221
  %v2347 = vmul.f32 %v2343, %v2341
  %2349 = vrot.lane.b32.xlu0 %v2347, 64
  %v2350 = vpop.permute.xlu0 %2349
  %v2352 = vadd.f32 %v2346, %v2350
  %v2353 = vtanh.pop %v2352
  %v2354 = vmul.f32 %v2345, %v2353
  %v2355 = vpack.c.bf16 %v2354, %v2354
  %v2356 = vld [vmem:[%s10] sm:$0xf]
  %v2357 = vld [vmem:[%s10 + $0x4] sm:$0xf]
  %v2358 = vld [vmem:[%s10 + $0x8] sm:$0xf]
  %v2359 = vld [vmem:[%s10 + $0xc] sm:$0xf]
  %v2360 = vld [vmem:[%s10 + $0x10] sm:$0xf]
  %v2361 = vld [vmem:[%s10 + $0x14] sm:$0xf]
  %v2362 = vld [vmem:[%s10 + $0x18] sm:$0xf]
  %v2363 = vld [vmem:[%s10 + $0x1c] sm:$0xf]
  %v2364 = vld [vmem:[%s11] sm:$0x1]
  %v2366 = vlaneseq
  %v2367 = vshrl.u32 %v2366, 7
  %v2368 = vsub.s32 0, %v2367
  %v2369 = vrot.slane %v2364, %v2368
  %2372 = vrot.lane.b32.xlu0 %v2355, 64
  %v2373 = vpop.permute.xlu0 %2372
  %v2382 = vunpack.c.l.b16 %v2356
  %v2383 = vunpack.c.l.b16 %v2357
  %v2384 = vunpack.c.l.b16 %v2358
  %v2385 = vunpack.c.l.b16 %v2359
  %v2386 = vunpack.c.l.b16 %v2360
  %v2387 = vunpack.c.l.b16 %v2361
  %v2388 = vunpack.c.l.b16 %v2362
  %v2389 = vunpack.c.l.b16 %v2363
  %v2390 = vpack.c.b16 %v2383, %v2382
  %v2391 = vpack.c.b16 %v2385, %v2384
  %v2392 = vpack.c.b16 %v2387, %v2386
  %v2393 = vpack.c.b16 %v2389, %v2388
  %v2399 = vsel %vm1216, %v2373, 0
  %2401 = vmatprep.subr.bf16.mxu0 0
  %2402 = vmatpush1.bf16.msra.mxu0 %v2390
  %2403 = vmatprep.subr.bf16.mxu0 0
  %2404 = vmatpush1.bf16.msra.mxu0 %v2391
  %2405 = vmatprep.subr.bf16.mxu0 0
  %2406 = vmatpush1.bf16.msra.mxu0 %v2392
  %2407 = vmatprep.subr.bf16.mxu0 0
  %2408 = vmatpush1.bf16.msra.mxu0 %v2393
  %2409 = vmatprep.subr.bf16.mxu0 0
  %2410 = vmatpush1.bf16.msra.mxu0 0
  %2411 = vmatprep.subr.bf16.mxu0 0
  %2412 = vmatpush1.bf16.msra.mxu0 0
  %2413 = vmatprep.subr.bf16.mxu0 0
  %2414 = vmatpush1.bf16.msra.mxu0 0
  %2415 = vmatprep.subr.bf16.mxu0 0
  %2416 = vmatpush1.bf16.msra.mxu0 0
  %2417 = vmatprep.subr.bf16.mxu0 0
  %2418 = vmatpush1.bf16.msra.mxu0 0
  %2419 = vmatprep.subr.bf16.mxu0 0
  %2420 = vmatpush1.bf16.msra.mxu0 0
  %2421 = vmatprep.subr.bf16.mxu0 0
  %2422 = vmatpush1.bf16.msra.mxu0 0
  %2423 = vmatprep.subr.bf16.mxu0 0
  %2424 = vmatpush1.bf16.msra.mxu0 0
  %2425 = vmatprep.subr.bf16.mxu0 0
  %2426 = vmatpush1.bf16.msra.mxu0 0
  %2427 = vmatprep.subr.bf16.mxu0 0
  %2428 = vmatpush1.bf16.msra.mxu0 0
  %2429 = vmatprep.subr.bf16.mxu0 0
  %2430 = vmatpush1.bf16.msra.mxu0 0
  %2431 = vmatprep.subr.bf16.mxu0 0
  %2432 = vmatpush1.bf16.msra.mxu0 0
  %2433 = vmatprep.mubr.bf16.mxu0 0
  %2434 = vmatmul.mubr.bf16.gmra.mrb[0].mxu0 %v2399
  %v2435 = vpop.f32.mrb[0].mxu0
  %v2436 = vadd.f32 %v2369, %v2435
  %v2437 = vpop.f32.mrb[0].mxu0
  %v2438 = vpop.f32.mrb[0].mxu0
  %v2439 = vpop.f32.mrb[0].mxu0
  %2440 = vdwg.mxu0
  %v2441 = vmax.f32 %v2436, 0.0
  %v2442 = vld [vmem:[%s12] sm:$0x1]
  %v2444 = vlaneseq
  %v2445 = vshrl.u32 %v2444, 7
  %v2446 = vsub.s32 0, %v2445
  %v2447 = vrot.slane %v2442, %v2446
  %v2449 = vmul.f32 %v2441, %v2447
  %vm2450 = vcmask 261120
  %v2451 = vsel %vm2450, %v2449, 0.0
  %2452 = vadd.xlane.f32.xlu0 %v2451
  %v2453 = vpop.xlane.xlu0 %2452
  %v2454 = vld [vmem:[#allocation3] sm:$0x1]
  %v2456 = vlaneseq
  %v2457 = vshrl.u32 %v2456, 7
  %v2458 = vsub.s32 0, %v2457
  %v2459 = vrot.slane %v2454, %v2458
  %v2461 = vadd.f32 %v2453, %v2459
  %vm2462 = vcmask 7168
  %2463 = vst.msk [vmem:[%s14] sm:$0xff] %vm2462, %v2461
  // Predicated region
  $region58: #{cnn_lstm_forward.1} parent=0 // pred_check
    _
  $region59: #{cnn_lstm_forward.1} parent=0 // pred_check_branch
    %2465 = sbr.rel (0) target = $region61
  $region60: #{cnn_lstm_forward.1} parent=0 // pred_region
    _
  $region61: #{cnn_lstm_forward.1} parent=0 // pred_fallthru
    _
  // Predicated region
  $region62: #{cnn_lstm_forward.1} parent=0 // pred_check
    _
  $region63: #{cnn_lstm_forward.1} parent=0 // pred_check_branch
    %2467 = sbr.rel (0) target = $region65
  $region64: #{cnn_lstm_forward.1} parent=0 // pred_region
    _
  $region65: #{cnn_lstm_forward.1} parent=0 // pred_fallthru
    _

</llo_original>
